<compile_context>
chip_gen: v6e
topology: v6e:2x2x1
jax: 0.10.0
libtpu: 0.0.40
codegen_flags: <defaults>
</compile_context>

<pallas_src>
import functools
import math

import jax
import jax.numpy as jnp
from jax import lax
from jax.experimental import pallas as pl
from jax.experimental.pallas import tpu as pltpu


def _round_up(v, m):
    return (v + m - 1) // m * m


def _pad2(a, rows, cols):
    return jnp.pad(a, ((0, rows - a.shape[0]), (0, cols - a.shape[1])))


def _vmem_capacity_bytes():
    """Physical VMEM of the local TPU; conservative 64 MiB (v7x) fallback."""
    try:
        cap = getattr(pltpu.get_tpu_info(), "vmem_capacity_bytes", None)
        if cap:
            return int(cap)
    except Exception:
        pass
    return 64 * 2 ** 20


# ----------------------------------------------------------------------------
# Kernel
# ----------------------------------------------------------------------------
def _mpgnn_kernel(
    x_ref, batch_ref, ea_ref, row_ref, col_ref,
    wn_ref, bn_ref, wem3_ref, bmf_ref,
    wm1_ref, wm2_ref, wu1_ref, wu2_ref, bu_ref,
    wr1_ref, br1_ref, wr2_ref, br2_ref,
    out_ref,
    h_scr, hw1_scr, hw2_scr, acc_scr, cnt_scr,
    *, spare,
):
    k = pl.program_id(0)
    last = pl.num_programs(0) - 1
    TE = row_ref.shape[0]
    Np = x_ref.shape[0]
    Hp = h_scr.shape[1]
    B = out_ref.shape[0]
    f32, bf16 = jnp.float32, jnp.bfloat16

    def mm(a, b):
        return jnp.dot(a, b, preferred_element_type=f32)

    contract0 = (((0,), (0,)), ((), ()))      # A^T @ B: contract sublane axis of both

    # ---- init (once): node projection, folded message operands, zero acc ----
    @pl.when(k == 0)
    def _init():
        h = mm(x_ref[...].astype(bf16), wn_ref[...]) + bn_ref[...]   # [Np, Hp] f32
        h_scr[...] = h
        hb = h.astype(bf16)
        hw1_scr[...] = mm(hb, wm1_ref[...]).astype(bf16)             # h @ Wm1
        hw2_scr[...] = mm(hb, wm2_ref[...]).astype(bf16)             # h @ Wm2
        acc_scr[...] = jnp.zeros_like(acc_scr)
        if not spare:
            cnt_scr[...] = jnp.zeros_like(cnt_scr)

    # ---- per-edge-tile work --------------------------------------------------
    iota_n = lax.broadcasted_iota(jnp.int32, (TE, Np), 1)
    g_src = (row_ref[...] == iota_n).astype(bf16)                    # [TE, Np]
    g_tgt = (col_ref[...] == iota_n).astype(bf16)                    # [TE, Np]

    # message_fn with Wm folded into the gathered operands / edge projection:
    #   relu(h[row]@Wm1 + h[col]@Wm2 + ea@(We@Wm3) + (be@Wm3 + bm))
    # When `spare`, bmf carries an extra 1.0 in padded lane Hp-1 so msg lane
    # Hp-1 == 1 exactly and the in-degree falls out of the scatter matmul free.
    msg = mm(g_src, hw1_scr[...]) + mm(g_tgt, hw2_scr[...]) \
        + mm(ea_ref[...].astype(bf16), wem3_ref[...]) + bmf_ref[...]
    msg = jnp.maximum(msg, 0.0)                                      # [TE, Hp] f32

    if not spare:
        # hidden_dim is an exact multiple of 128: no spare lane, so keep the
        # in-degree in a small lane-major scratch (XLU sublane reduce).
        cnt_scr[...] += jnp.sum(g_tgt.astype(f32), axis=0, keepdims=True)

    # scatter-add over col: g_tgt^T @ msg.  Dim-0 contraction so the same
    # one-hot feeds both the gather and the scatter (no second one-hot build).
    acc_scr[...] += lax.dot_general(g_tgt, msg.astype(bf16), contract0,
                                    preferred_element_type=f32)      # [Np, Hp]

    # ---- finalize (last tile): mean-agg, update, pool, readout --------------
    @pl.when(k == last)
    def _finalize():
        acc = acc_scr[...]
        if spare:
            cnt = acc[:, Hp - 1:Hp]                                  # in-degree [Np,1]
        else:
            cnt = jnp.transpose(cnt_scr[...])                        # one-time (1,Np)->(Np,1)
        agg = acc * pl.reciprocal(jnp.maximum(cnt, 1.0), approx=True)

        h_upd = mm(h_scr[...].astype(bf16), wu1_ref[...]) \
            + mm(agg.astype(bf16), wu2_ref[...]) + bu_ref[...]
        h_upd = jnp.maximum(h_upd, 0.0)                              # [Np, Hp]

        # global mean pool: lane-dense [B, Np] one-hot (batch is lane-major);
        # per-graph node count is a lane reduce, already column-shaped.
        p_bn = (batch_ref[...] ==
                lax.broadcasted_iota(jnp.int32, (B, Np), 0)).astype(bf16)
        gsum = mm(p_bn, h_upd.astype(bf16))                          # [B, Hp]
        gcnt = jnp.sum(p_bn.astype(f32), axis=1, keepdims=True)      # [B, 1]
        gmean = gsum * pl.reciprocal(jnp.maximum(gcnt, 1.0), approx=True)

        r = jnp.maximum(mm(gmean.astype(bf16), wr1_ref[...]) + br1_ref[...], 0.0)
        out_ref[...] = mm(r.astype(bf16), wr2_ref[...]) + br2_ref[...]   # [B, Op]


# ----------------------------------------------------------------------------
# Wrapper: weight folding, padding, tiling, pallas_call
# ----------------------------------------------------------------------------
def _prep_params(p, Hp, Op, spare):
    bf16 = jnp.bfloat16
    node_dim = p["Wn"].shape[0]
    edge_dim = p["We"].shape[0]
    wem3 = p["We"] @ p["Wm3"]                       # fold edge_proj into message_fn
    bmf = _pad2(p["be"] @ p["Wm3"] + p["bm"], 1, Hp)
    if spare:
        bmf = bmf.at[0, Hp - 1].set(1.0)            # count lane rides the fused bias
    return dict(
        Wn=_pad2(p["Wn"], node_dim, Hp).astype(bf16), bn=_pad2(p["bn"], 1, Hp),
        WeWm3=_pad2(wem3, edge_dim, Hp).astype(bf16), bmf=bmf,
        Wm1=_pad2(p["Wm1"], Hp, Hp).astype(bf16),
        Wm2=_pad2(p["Wm2"], Hp, Hp).astype(bf16),
        Wu1=_pad2(p["Wu1"], Hp, Hp).astype(bf16),
        Wu2=_pad2(p["Wu2"], Hp, Hp).astype(bf16),     bu=_pad2(p["bu"], 1, Hp),
        Wr1=_pad2(p["Wr1"], Hp, Hp).astype(bf16),     br1=_pad2(p["br1"], 1, Hp),
        Wr2=_pad2(p["Wr2"], Hp, Op).astype(bf16),     br2=_pad2(p["br2"], 1, Op),
    )


def mpgnn_forward(x, edge_attr, row, col, batch, params, *,
                  num_graphs, hidden_dim, out_dim, edge_tile=None):
    """Fused SimpleMPGNN forward. row/col/batch are 1-D int32 index arrays."""
    N, node_dim = x.shape
    E, edge_dim = edge_attr.shape
    B = num_graphs
    f32, i32 = jnp.float32, jnp.int32

    Hp = _round_up(hidden_dim, 128)          # lane-dense hidden block (no +1 blowup)
    spare = hidden_dim < Hp                  # a zero-padded lane exists for the count
    Op = _round_up(out_dim, 128)             # lane-dense output
    Np = _round_up(max(N, 128), 128)         # lane dim of one-hots / MXU K dim

    cap = _vmem_capacity_bytes()
    big_vmem = cap > 64 * 2 ** 20            # 128 MiB parts (v5e/v6e) vs v7x

    if edge_tile is None:
        # Per-tile working set: two bf16 [TE,Np] one-hots + f32 [TE,Hp]
        # intermediates + double-buffered edge stream.  Bigger TE amortizes the
        # per-step O(Np*Hp) accumulator RMW and ~0.35us pipeline overhead.
        budget = (24 if big_vmem else 12) * 2 ** 20
        per_edge = 2 * Np * 2 + 8 * Hp * 4 + 2 * (edge_dim + 2) * 4
        edge_tile = max(16, min(8192, (budget // per_edge) // 16 * 16))
    TE = max(16, _round_up(min(edge_tile, E), 16))
    Ep = _round_up(max(E, TE), TE)
    n_tiles = Ep // TE

    # pad inputs; out-of-range index sentinels (Np / B) vanish from the one-hots
    xp = _pad2(x.astype(f32), Np, node_dim)
    batchp = jnp.pad(batch.astype(i32), (0, Np - N),
                     constant_values=B).reshape(1, Np)               # lane-major
    eap = _pad2(edge_attr.astype(f32), Ep, edge_dim)
    rowp = jnp.pad(row.astype(i32), (0, Ep - E), constant_values=Np).reshape(Ep, 1)
    colp = jnp.pad(col.astype(i32), (0, Ep - E), constant_values=Np).reshape(Ep, 1)

    pp = _prep_params(params, Hp, Op, spare)
    weights = (pp["Wn"], pp["bn"], pp["WeWm3"], pp["bmf"],
               pp["Wm1"], pp["Wm2"], pp["Wu1"], pp["Wu2"], pp["bu"],
               pp["Wr1"], pp["br1"], pp["Wr2"], pp["br2"])
    args = (xp, batchp, eap, rowp, colp) + weights

    def const_spec(shape):
        # TODO(synk): pipeline_mode=pl.Buffered(1) would halve the VMEM of these
        # constant-index operands; skipped for lowering compatibility.
        return pl.BlockSpec(shape, lambda k: (0, 0))

    in_specs = [
        const_spec(xp.shape), const_spec(batchp.shape),
        pl.BlockSpec((TE, edge_dim), lambda k: (k, 0)),
        pl.BlockSpec((TE, 1), lambda k: (k, 0)),
        pl.BlockSpec((TE, 1), lambda k: (k, 0)),
    ] + [const_spec(w.shape) for w in weights]

    # VMEM budget from per-block footprints only (streamed inputs count one
    # block x2 buffers), capped well under physical VMEM: <=48 MiB of v7x's
    # 64 MiB, <=100 MiB on 128 MiB parts.
    const_bytes = 2 * sum(a.size * a.dtype.itemsize for a in (xp, batchp) + weights)
    stream_bytes = 2 * TE * (edge_dim * 4 + 2 * 4)
    scratch_bytes = Np * Hp * (4 + 2 + 2 + 4) + 8 * Np * 4
    work_bytes = 2 * TE * Np * 2 + 8 * TE * Hp * 4 + 2 * B * Op * 4
    est = const_bytes + stream_bytes + scratch_bytes + work_bytes
    ceiling = (100 if big_vmem else 48) * 2 ** 20
    vmem_limit = int(min(ceiling, max(32 * 2 ** 20, int(1.5 * est))))

    kernel = functools.partial(_mpgnn_kernel, spare=spare)

    out = pl.pallas_call(
        kernel,
        out_shape=jax.ShapeDtypeStruct((B, Op), f32),
        grid_spec=pltpu.PrefetchScalarGridSpec(
            num_scalar_prefetch=0,
            grid=(n_tiles,),
            in_specs=in_specs,
            out_specs=pl.BlockSpec((B, Op), lambda k: (0, 0)),
            scratch_shapes=[
                pltpu.VMEM((Np, Hp), f32),            # h (node projection)
                pltpu.VMEM((Np, Hp), jnp.bfloat16),   # h @ Wm1 (gathered by row)
                pltpu.VMEM((Np, Hp), jnp.bfloat16),   # h @ Wm2 (gathered by col)
                pltpu.VMEM((Np, Hp), f32),            # scatter accumulator
                pltpu.VMEM((1, Np), f32),             # in-degree (used iff not spare)
            ],
        ),
        compiler_params=pltpu.CompilerParams(
            dimension_semantics=("arbitrary",),       # edge-tile axis is a reduction
            vmem_limit_bytes=vmem_limit,
        ),
    )(*args)
    return out[:, :out_dim]


# ----------------------------------------------------------------------------
# Parameter init (PyTorch-Linear-style uniform) + pure-JAX f32 reference
# ----------------------------------------------------------------------------
def init_params(key, node_dim, edge_dim, hidden_dim, out_dim):
    def linear(k, fan_in, fan_out):
        kw, kb = jax.random.split(k)
        bound = 1.0 / jnp.sqrt(fan_in)
        w = jax.random.uniform(kw, (fan_in, fan_out), jnp.float32, -bound, bound)
        b = jax.random.uniform(kb, (1, fan_out), jnp.float32, -bound, bound)
        return w, b

    keys = jax.random.split(key, 7)
    H = hidden_dim
    Wn, bn = linear(keys[0], node_dim, H)
    We, be = linear(keys[1], edge_dim, H)
    Wm, bm = linear(keys[2], 3 * H, H)      # message_fn Linear(3H -> H)
    Wu, bu = linear(keys[3], 2 * H, H)      # update_fn  Linear(2H -> H)
    Wr1, br1 = linear(keys[4], H, H)
    Wr2, br2 = linear(keys[5], H, out_dim)
    return {
        "Wn": Wn, "bn": bn, "We": We, "be": be,
        "Wm1": Wm[:H], "Wm2": Wm[H:2 * H], "Wm3": Wm[2 * H:], "bm": bm,
        "Wu1": Wu[:H], "Wu2": Wu[H:], "bu": bu,
        "Wr1": Wr1, "br1": br1, "Wr2": Wr2, "br2": br2,
    }


def ref_forward(x, ea, row, col, batch, params, num_graphs):
    relu = lambda v: jnp.maximum(v, 0.0)
    h = x @ params["Wn"] + params["bn"]
    e = ea @ params["We"] + params["be"]
    h_src, h_tgt = h[row], h[col]
    Wm = jnp.concatenate([params["Wm1"], params["Wm2"], params["Wm3"]], axis=0)
    msg = relu(jnp.concatenate([h_src, h_tgt, e], axis=-1) @ Wm + params["bm"])
    N, H = h.shape
    agg = jnp.zeros((N, H), jnp.float32).at[col].add(msg)
    cnt = jnp.zeros((N,), jnp.float32).at[col].add(1.0)
    agg = agg / jnp.maximum(cnt, 1.0)[:, None]
    Wu = jnp.concatenate([params["Wu1"], params["Wu2"]], axis=0)
    h_upd = relu(jnp.concatenate([h, agg], axis=-1) @ Wu + params["bu"])
    gsum = jnp.zeros((num_graphs, H), jnp.float32).at[batch].add(h_upd)
    gcnt = jnp.zeros((num_graphs,), jnp.float32).at[batch].add(1.0)
    gmean = gsum / jnp.maximum(gcnt, 1.0)[:, None]
    r = relu(gmean @ params["Wr1"] + params["br1"])
    return r @ params["Wr2"] + params["br2"]


if __name__ == "__main__":
    NODE_DIM, EDGE_DIM, HIDDEN, OUT_DIM = 4, 6, 32, 1
    N, E, B = 16, 24, 2  # num_nodes, num_edges, num_graphs

    key = jax.random.PRNGKey(0)
    k_x, k_e, k_r, k_c, k_p = jax.random.split(key, 5)

    x = jax.random.normal(k_x, (N, NODE_DIM), jnp.float32)
    edge_attr = jax.random.normal(k_e, (E, EDGE_DIM), jnp.float32)
    row = jax.random.randint(k_r, (E,), 0, N, jnp.int32)
    col = jax.random.randint(k_c, (E,), 0, N, jnp.int32)
    batch = jnp.concatenate(
        [jnp.zeros((N // 2,), jnp.int32), jnp.ones((N - N // 2,), jnp.int32)])

    params = init_params(k_p, NODE_DIM, EDGE_DIM, HIDDEN, OUT_DIM)

    # edge_tile=16 -> 2 grid steps (incl. padded edges), exercising the accumulator.
    out = mpgnn_forward(
        x, edge_attr, row, col, batch, params,
        num_graphs=B, hidden_dim=HIDDEN, out_dim=OUT_DIM, edge_tile=16)
    out = jax.block_until_ready(out)

    expected = ref_forward(x, edge_attr, row, col, batch, params, B)
    assert out.shape == (B, OUT_DIM), out.shape
    # bf16 MXU operands + approx reciprocal -> loosened tolerance vs f32 reference
    assert jnp.allclose(out, expected, atol=2e-2, rtol=2e-2), (out, expected)

    print("KERNEL_OK")
</pallas_src>

<mosaic_0001>
module attributes {stable_mosaic.version = 11 : i64} {
  func.func @_mpgnn_kernel(%arg0: i32, %arg1: memref<128x4xf32, #tpu.memory_space<vmem>>, %arg2: memref<1x128xi32, #tpu.memory_space<vmem>>, %arg3: memref<16x6xf32, #tpu.memory_space<vmem>>, %arg4: memref<16x1xi32, #tpu.memory_space<vmem>>, %arg5: memref<16x1xi32, #tpu.memory_space<vmem>>, %arg6: memref<4x128xbf16, #tpu.memory_space<vmem>>, %arg7: memref<1x128xf32, #tpu.memory_space<vmem>>, %arg8: memref<6x128xbf16, #tpu.memory_space<vmem>>, %arg9: memref<1x128xf32, #tpu.memory_space<vmem>>, %arg10: memref<128x128xbf16, #tpu.memory_space<vmem>>, %arg11: memref<128x128xbf16, #tpu.memory_space<vmem>>, %arg12: memref<128x128xbf16, #tpu.memory_space<vmem>>, %arg13: memref<128x128xbf16, #tpu.memory_space<vmem>>, %arg14: memref<1x128xf32, #tpu.memory_space<vmem>>, %arg15: memref<128x128xbf16, #tpu.memory_space<vmem>>, %arg16: memref<1x128xf32, #tpu.memory_space<vmem>>, %arg17: memref<128x128xbf16, #tpu.memory_space<vmem>>, %arg18: memref<1x128xf32, #tpu.memory_space<vmem>>, %arg19: memref<2x128xf32, #tpu.memory_space<vmem>>, %arg20: memref<128x128xf32, #tpu.memory_space<vmem>>, %arg21: memref<128x128xbf16, #tpu.memory_space<vmem>>, %arg22: memref<128x128xbf16, #tpu.memory_space<vmem>>, %arg23: memref<128x128xf32, #tpu.memory_space<vmem>>, %arg24: memref<1x128xf32, #tpu.memory_space<vmem>>) attributes {dimension_semantics = [#tpu.dimension_semantics<arbitrary>], iteration_bounds = array<i64: 2>, scalar_prefetch = 0 : i64, scratch_operands = 5 : i64, tpu.core_type = #tpu.core_type<tc>, window_params = [{pipeline_mode = #tpu.pipeline_mode<synchronous>, transform_indices = @transform_0, window_bounds = array<i64: 128, 4>}, {pipeline_mode = #tpu.pipeline_mode<synchronous>, transform_indices = @transform_1, window_bounds = array<i64: 1, 128>}, {transform_indices = @transform_2, window_bounds = array<i64: 16, 6>}, {transform_indices = @transform_3, window_bounds = array<i64: 16, 1>}, {transform_indices = @transform_4, window_bounds = array<i64: 16, 1>}, {pipeline_mode = #tpu.pipeline_mode<synchronous>, transform_indices = @transform_5, window_bounds = array<i64: 4, 128>}, {pipeline_mode = #tpu.pipeline_mode<synchronous>, transform_indices = @transform_6, window_bounds = array<i64: 1, 128>}, {pipeline_mode = #tpu.pipeline_mode<synchronous>, transform_indices = @transform_7, window_bounds = array<i64: 6, 128>}, {pipeline_mode = #tpu.pipeline_mode<synchronous>, transform_indices = @transform_8, window_bounds = array<i64: 1, 128>}, {pipeline_mode = #tpu.pipeline_mode<synchronous>, transform_indices = @transform_9, window_bounds = array<i64: 128, 128>}, {pipeline_mode = #tpu.pipeline_mode<synchronous>, transform_indices = @transform_10, window_bounds = array<i64: 128, 128>}, {pipeline_mode = #tpu.pipeline_mode<synchronous>, transform_indices = @transform_11, window_bounds = array<i64: 128, 128>}, {pipeline_mode = #tpu.pipeline_mode<synchronous>, transform_indices = @transform_12, window_bounds = array<i64: 128, 128>}, {pipeline_mode = #tpu.pipeline_mode<synchronous>, transform_indices = @transform_13, window_bounds = array<i64: 1, 128>}, {pipeline_mode = #tpu.pipeline_mode<synchronous>, transform_indices = @transform_14, window_bounds = array<i64: 128, 128>}, {pipeline_mode = #tpu.pipeline_mode<synchronous>, transform_indices = @transform_15, window_bounds = array<i64: 1, 128>}, {pipeline_mode = #tpu.pipeline_mode<synchronous>, transform_indices = @transform_16, window_bounds = array<i64: 128, 128>}, {pipeline_mode = #tpu.pipeline_mode<synchronous>, transform_indices = @transform_17, window_bounds = array<i64: 1, 128>}, {pipeline_mode = #tpu.pipeline_mode<synchronous>, transform_indices = @transform_18, window_bounds = array<i64: 2, 128>}]} {
    %c0_i32 = arith.constant 0 : i32
    %0 = arith.cmpi eq, %arg0, %c0_i32 : i32
    %1 = arith.extui %0 : i1 to i32
    %c0_i32_0 = arith.constant 0 : i32
    %2 = arith.cmpi ne, %1, %c0_i32_0 : i32
    scf.if %2 {
      %c0_23 = arith.constant 0 : index
      %c0_24 = arith.constant 0 : index
      %39 = vector.load %arg1[%c0_23, %c0_24] : memref<128x4xf32, #tpu.memory_space<vmem>>, vector<128x4xf32>
      %40 = arith.truncf %39 : vector<128x4xf32> to vector<128x4xbf16>
      %c0_25 = arith.constant 0 : index
      %c0_26 = arith.constant 0 : index
      %41 = vector.load %arg6[%c0_25, %c0_26] : memref<4x128xbf16, #tpu.memory_space<vmem>>, vector<4x128xbf16>
      %cst_27 = arith.constant dense<0.000000e+00> : vector<128x128xf32>
      %42 = tpu.matmul %40, %41, %cst_27 {dimension_numbers = #tpu.dot_dimension_numbers<[1], [0], [0], [1], [0, 0, 1, 1], [], []>} : vector<128x4xbf16>, vector<4x128xbf16>, vector<128x128xf32> -> vector<128x128xf32>
      %c0_28 = arith.constant 0 : index
      %c0_29 = arith.constant 0 : index
      %43 = vector.load %arg7[%c0_28, %c0_29] : memref<1x128xf32, #tpu.memory_space<vmem>>, vector<1x128xf32>
      %44 = vector.broadcast %43 : vector<1x128xf32> to vector<128x128xf32>
      %45 = arith.addf %42, %44 : vector<128x128xf32>
      %c0_30 = arith.constant 0 : index
      %c0_31 = arith.constant 0 : index
      %46 = vector.load %arg20[%c0_30, %c0_31] : memref<128x128xf32, #tpu.memory_space<vmem>>, vector<128x128xf32>
      tpu.vector_store %arg20[%c0_30, %c0_31], %45 {strides = array<i32>} : memref<128x128xf32, #tpu.memory_space<vmem>>, vector<128x128xf32>,
      %47 = arith.truncf %45 : vector<128x128xf32> to vector<128x128xbf16>
      %c0_32 = arith.constant 0 : index
      %c0_33 = arith.constant 0 : index
      %48 = vector.load %arg10[%c0_32, %c0_33] : memref<128x128xbf16, #tpu.memory_space<vmem>>, vector<128x128xbf16>
      %cst_34 = arith.constant dense<0.000000e+00> : vector<128x128xf32>
      %49 = tpu.matmul %47, %48, %cst_34 {dimension_numbers = #tpu.dot_dimension_numbers<[1], [0], [0], [1], [0, 0, 1, 1], [], []>} : vector<128x128xbf16>, vector<128x128xbf16>, vector<128x128xf32> -> vector<128x128xf32>
      %50 = arith.truncf %49 : vector<128x128xf32> to vector<128x128xbf16>
      %c0_35 = arith.constant 0 : index
      %c0_36 = arith.constant 0 : index
      %51 = vector.load %arg21[%c0_35, %c0_36] : memref<128x128xbf16, #tpu.memory_space<vmem>>, vector<128x128xbf16>
      tpu.vector_store %arg21[%c0_35, %c0_36], %50 {strides = array<i32>} : memref<128x128xbf16, #tpu.memory_space<vmem>>, vector<128x128xbf16>,
      %c0_37 = arith.constant 0 : index
      %c0_38 = arith.constant 0 : index
      %52 = vector.load %arg11[%c0_37, %c0_38] : memref<128x128xbf16, #tpu.memory_space<vmem>>, vector<128x128xbf16>
      %cst_39 = arith.constant dense<0.000000e+00> : vector<128x128xf32>
      %53 = tpu.matmul %47, %52, %cst_39 {dimension_numbers = #tpu.dot_dimension_numbers<[1], [0], [0], [1], [0, 0, 1, 1], [], []>} : vector<128x128xbf16>, vector<128x128xbf16>, vector<128x128xf32> -> vector<128x128xf32>
      %54 = arith.truncf %53 : vector<128x128xf32> to vector<128x128xbf16>
      %c0_40 = arith.constant 0 : index
      %c0_41 = arith.constant 0 : index
      %55 = vector.load %arg22[%c0_40, %c0_41] : memref<128x128xbf16, #tpu.memory_space<vmem>>, vector<128x128xbf16>
      tpu.vector_store %arg22[%c0_40, %c0_41], %54 {strides = array<i32>} : memref<128x128xbf16, #tpu.memory_space<vmem>>, vector<128x128xbf16>,
      %cst_42 = arith.constant 0.000000e+00 : f32
      %56 = vector.broadcast %cst_42 : f32 to vector<128x128xf32>
      %c0_43 = arith.constant 0 : index
      %c0_44 = arith.constant 0 : index
      %57 = vector.load %arg23[%c0_43, %c0_44] : memref<128x128xf32, #tpu.memory_space<vmem>>, vector<128x128xf32>
      tpu.vector_store %arg23[%c0_43, %c0_44], %56 {strides = array<i32>} : memref<128x128xf32, #tpu.memory_space<vmem>>, vector<128x128xf32>,
    } else {
    }
    %3 = tpu.iota {dimensions = array<i32: 1>} : vector<16x128xi32>
    %c0 = arith.constant 0 : index
    %c0_1 = arith.constant 0 : index
    %4 = vector.load %arg4[%c0, %c0_1] : memref<16x1xi32, #tpu.memory_space<vmem>>, vector<16x1xi32>
    %5 = vector.broadcast %4 : vector<16x1xi32> to vector<16x128xi32>
    %6 = arith.cmpi eq, %5, %3 : vector<16x128xi32>
    %7 = arith.extui %6 : vector<16x128xi1> to vector<16x128xi32>
    %8 = arith.sitofp %7 : vector<16x128xi32> to vector<16x128xf32>
    %9 = arith.truncf %8 : vector<16x128xf32> to vector<16x128xbf16>
    %c0_2 = arith.constant 0 : index
    %c0_3 = arith.constant 0 : index
    %10 = vector.load %arg5[%c0_2, %c0_3] : memref<16x1xi32, #tpu.memory_space<vmem>>, vector<16x1xi32>
    %11 = vector.broadcast %10 : vector<16x1xi32> to vector<16x128xi32>
    %12 = arith.cmpi eq, %11, %3 : vector<16x128xi32>
    %13 = arith.extui %12 : vector<16x128xi1> to vector<16x128xi32>
    %14 = arith.sitofp %13 : vector<16x128xi32> to vector<16x128xf32>
    %15 = arith.truncf %14 : vector<16x128xf32> to vector<16x128xbf16>
    %c0_4 = arith.constant 0 : index
    %c0_5 = arith.constant 0 : index
    %16 = vector.load %arg21[%c0_4, %c0_5] : memref<128x128xbf16, #tpu.memory_space<vmem>>, vector<128x128xbf16>
    %cst = arith.constant dense<0.000000e+00> : vector<16x128xf32>
    %17 = tpu.matmul %9, %16, %cst {dimension_numbers = #tpu.dot_dimension_numbers<[1], [0], [0], [1], [0, 0, 1, 1], [], []>} : vector<16x128xbf16>, vector<128x128xbf16>, vector<16x128xf32> -> vector<16x128xf32>
    %c0_6 = arith.constant 0 : index
    %c0_7 = arith.constant 0 : index
    %18 = vector.load %arg22[%c0_6, %c0_7] : memref<128x128xbf16, #tpu.memory_space<vmem>>, vector<128x128xbf16>
    %cst_8 = arith.constant dense<0.000000e+00> : vector<16x128xf32>
    %19 = tpu.matmul %15, %18, %cst_8 {dimension_numbers = #tpu.dot_dimension_numbers<[1], [0], [0], [1], [0, 0, 1, 1], [], []>} : vector<16x128xbf16>, vector<128x128xbf16>, vector<16x128xf32> -> vector<16x128xf32>
    %20 = arith.addf %17, %19 : vector<16x128xf32>
    %c0_9 = arith.constant 0 : index
    %c0_10 = arith.constant 0 : index
    %21 = vector.load %arg3[%c0_9, %c0_10] : memref<16x6xf32, #tpu.memory_space<vmem>>, vector<16x6xf32>
    %22 = arith.truncf %21 : vector<16x6xf32> to vector<16x6xbf16>
    %c0_11 = arith.constant 0 : index
    %c0_12 = arith.constant 0 : index
    %23 = vector.load %arg8[%c0_11, %c0_12] : memref<6x128xbf16, #tpu.memory_space<vmem>>, vector<6x128xbf16>
    %cst_13 = arith.constant dense<0.000000e+00> : vector<16x128xf32>
    %24 = tpu.matmul %22, %23, %cst_13 {dimension_numbers = #tpu.dot_dimension_numbers<[1], [0], [0], [1], [0, 0, 1, 1], [], []>} : vector<16x6xbf16>, vector<6x128xbf16>, vector<16x128xf32> -> vector<16x128xf32>
    %25 = arith.addf %20, %24 : vector<16x128xf32>
    %c0_14 = arith.constant 0 : index
    %c0_15 = arith.constant 0 : index
    %26 = vector.load %arg9[%c0_14, %c0_15] : memref<1x128xf32, #tpu.memory_space<vmem>>, vector<1x128xf32>
    %27 = vector.broadcast %26 : vector<1x128xf32> to vector<16x128xf32>
    %28 = arith.addf %25, %27 : vector<16x128xf32>
    %cst_16 = arith.constant 0.000000e+00 : f32
    %29 = vector.broadcast %cst_16 : f32 to vector<16x128xf32>
    %30 = arith.maximumf %28, %29 : vector<16x128xf32>
    %c0_17 = arith.constant 0 : index
    %c0_18 = arith.constant 0 : index
    %31 = vector.load %arg23[%c0_17, %c0_18] : memref<128x128xf32, #tpu.memory_space<vmem>>, vector<128x128xf32>
    %32 = arith.truncf %30 : vector<16x128xf32> to vector<16x128xbf16>
    %cst_19 = arith.constant dense<0.000000e+00> : vector<128x128xf32>
    %33 = tpu.matmul %15, %32, %cst_19 {dimension_numbers = #tpu.dot_dimension_numbers<[0], [0], [1], [1], [0, 1, 1, 1], [], []>} : vector<16x128xbf16>, vector<16x128xbf16>, vector<128x128xf32> -> vector<128x128xf32>
    %34 = arith.addf %31, %33 : vector<128x128xf32>
    %c0_20 = arith.constant 0 : index
    %c0_21 = arith.constant 0 : index
    %35 = vector.load %arg23[%c0_20, %c0_21] : memref<128x128xf32, #tpu.memory_space<vmem>>, vector<128x128xf32>
    tpu.vector_store %arg23[%c0_20, %c0_21], %34 {strides = array<i32>} : memref<128x128xf32, #tpu.memory_space<vmem>>, vector<128x128xf32>,
    %c1_i32 = arith.constant 1 : i32
    %36 = arith.cmpi eq, %arg0, %c1_i32 : i32
    %37 = arith.extui %36 : i1 to i32
    %c0_i32_22 = arith.constant 0 : i32
    %38 = arith.cmpi ne, %37, %c0_i32_22 : i32
    scf.if %38 {
      %c0_23 = arith.constant 0 : index
      %c0_24 = arith.constant 0 : index
      %39 = vector.load %arg23[%c0_23, %c0_24] : memref<128x128xf32, #tpu.memory_space<vmem>>, vector<128x128xf32>
      %40 = vector.extract_strided_slice %39 {offsets = [0, 127], sizes = [128, 1], strides = [1, 1]} : vector<128x128xf32> to vector<128x1xf32>
      %cst_25 = arith.constant 1.000000e+00 : f32
      %41 = vector.broadcast %cst_25 : f32 to vector<128x1xf32>
      %42 = arith.maximumf %40, %41 : vector<128x1xf32>
      %43 = tpu.reciprocal %42 {approx = true} : vector<128x1xf32> -> vector<128x1xf32>
      %44 = vector.broadcast %43 : vector<128x1xf32> to vector<128x128xf32>
      %45 = arith.mulf %39, %44 : vector<128x128xf32>
      %c0_26 = arith.constant 0 : index
      %c0_27 = arith.constant 0 : index
      %46 = vector.load %arg20[%c0_26, %c0_27] : memref<128x128xf32, #tpu.memory_space<vmem>>, vector<128x128xf32>
      %47 = arith.truncf %46 : vector<128x128xf32> to vector<128x128xbf16>
      %c0_28 = arith.constant 0 : index
      %c0_29 = arith.constant 0 : index
      %48 = vector.load %arg12[%c0_28, %c0_29] : memref<128x128xbf16, #tpu.memory_space<vmem>>, vector<128x128xbf16>
      %cst_30 = arith.constant dense<0.000000e+00> : vector<128x128xf32>
      %49 = tpu.matmul %47, %48, %cst_30 {dimension_numbers = #tpu.dot_dimension_numbers<[1], [0], [0], [1], [0, 0, 1, 1], [], []>} : vector<128x128xbf16>, vector<128x128xbf16>, vector<128x128xf32> -> vector<128x128xf32>
      %50 = arith.truncf %45 : vector<128x128xf32> to vector<128x128xbf16>
      %c0_31 = arith.constant 0 : index
      %c0_32 = arith.constant 0 : index
      %51 = vector.load %arg13[%c0_31, %c0_32] : memref<128x128xbf16, #tpu.memory_space<vmem>>, vector<128x128xbf16>
      %cst_33 = arith.constant dense<0.000000e+00> : vector<128x128xf32>
      %52 = tpu.matmul %50, %51, %cst_33 {dimension_numbers = #tpu.dot_dimension_numbers<[1], [0], [0], [1], [0, 0, 1, 1], [], []>} : vector<128x128xbf16>, vector<128x128xbf16>, vector<128x128xf32> -> vector<128x128xf32>
      %53 = arith.addf %49, %52 : vector<128x128xf32>
      %c0_34 = arith.constant 0 : index
      %c0_35 = arith.constant 0 : index
      %54 = vector.load %arg14[%c0_34, %c0_35] : memref<1x128xf32, #tpu.memory_space<vmem>>, vector<1x128xf32>
      %55 = vector.broadcast %54 : vector<1x128xf32> to vector<128x128xf32>
      %56 = arith.addf %53, %55 : vector<128x128xf32>
      %cst_36 = arith.constant 0.000000e+00 : f32
      %57 = vector.broadcast %cst_36 : f32 to vector<128x128xf32>
      %58 = arith.maximumf %56, %57 : vector<128x128xf32>
      %c0_37 = arith.constant 0 : index
      %c0_38 = arith.constant 0 : index
      %59 = vector.load %arg2[%c0_37, %c0_38] : memref<1x128xi32, #tpu.memory_space<vmem>>, vector<1x128xi32>
      %60 = tpu.iota {dimensions = array<i32: 0>} : vector<2x128xi32>
      %61 = vector.broadcast %59 : vector<1x128xi32> to vector<2x128xi32>
      %62 = arith.cmpi eq, %61, %60 : vector<2x128xi32>
      %63 = arith.extui %62 : vector<2x128xi1> to vector<2x128xi32>
      %64 = arith.sitofp %63 : vector<2x128xi32> to vector<2x128xf32>
      %65 = arith.truncf %64 : vector<2x128xf32> to vector<2x128xbf16>
      %66 = arith.truncf %58 : vector<128x128xf32> to vector<128x128xbf16>
      %cst_39 = arith.constant dense<0.000000e+00> : vector<2x128xf32>
      %67 = tpu.matmul %65, %66, %cst_39 {dimension_numbers = #tpu.dot_dimension_numbers<[1], [0], [0], [1], [0, 0, 1, 1], [], []>} : vector<2x128xbf16>, vector<128x128xbf16>, vector<2x128xf32> -> vector<2x128xf32>
      %68 = arith.extf %65 : vector<2x128xbf16> to vector<2x128xf32>
      %cst_40 = arith.constant dense<0.000000e+00> : vector<2xf32>
      %69 = vector.multi_reduction <add>, %68, %cst_40 [1] : vector<2x128xf32> to vector<2xf32>
      %70 = vector.shape_cast %69 : vector<2xf32> to vector<2x1xf32>
      %cst_41 = arith.constant 1.000000e+00 : f32
      %71 = vector.broadcast %cst_41 : f32 to vector<2x1xf32>
      %72 = arith.maximumf %70, %71 : vector<2x1xf32>
      %73 = tpu.reciprocal %72 {approx = true} : vector<2x1xf32> -> vector<2x1xf32>
      %74 = vector.broadcast %73 : vector<2x1xf32> to vector<2x128xf32>
      %75 = arith.mulf %67, %74 : vector<2x128xf32>
      %76 = arith.truncf %75 : vector<2x128xf32> to vector<2x128xbf16>
      %c0_42 = arith.constant 0 : index
      %c0_43 = arith.constant 0 : index
      %77 = vector.load %arg15[%c0_42, %c0_43] : memref<128x128xbf16, #tpu.memory_space<vmem>>, vector<128x128xbf16>
      %cst_44 = arith.constant dense<0.000000e+00> : vector<2x128xf32>
      %78 = tpu.matmul %76, %77, %cst_44 {dimension_numbers = #tpu.dot_dimension_numbers<[1], [0], [0], [1], [0, 0, 1, 1], [], []>} : vector<2x128xbf16>, vector<128x128xbf16>, vector<2x128xf32> -> vector<2x128xf32>
      %c0_45 = arith.constant 0 : index
      %c0_46 = arith.constant 0 : index
      %79 = vector.load %arg16[%c0_45, %c0_46] : memref<1x128xf32, #tpu.memory_space<vmem>>, vector<1x128xf32>
      %80 = vector.broadcast %79 : vector<1x128xf32> to vector<2x128xf32>
      %81 = arith.addf %78, %80 : vector<2x128xf32>
      %cst_47 = arith.constant 0.000000e+00 : f32
      %82 = vector.broadcast %cst_47 : f32 to vector<2x128xf32>
      %83 = arith.maximumf %81, %82 : vector<2x128xf32>
      %84 = arith.truncf %83 : vector<2x128xf32> to vector<2x128xbf16>
      %c0_48 = arith.constant 0 : index
      %c0_49 = arith.constant 0 : index
      %85 = vector.load %arg17[%c0_48, %c0_49] : memref<128x128xbf16, #tpu.memory_space<vmem>>, vector<128x128xbf16>
      %cst_50 = arith.constant dense<0.000000e+00> : vector<2x128xf32>
      %86 = tpu.matmul %84, %85, %cst_50 {dimension_numbers = #tpu.dot_dimension_numbers<[1], [0], [0], [1], [0, 0, 1, 1], [], []>} : vector<2x128xbf16>, vector<128x128xbf16>, vector<2x128xf32> -> vector<2x128xf32>
      %c0_51 = arith.constant 0 : index
      %c0_52 = arith.constant 0 : index
      %87 = vector.load %arg18[%c0_51, %c0_52] : memref<1x128xf32, #tpu.memory_space<vmem>>, vector<1x128xf32>
      %88 = vector.broadcast %87 : vector<1x128xf32> to vector<2x128xf32>
      %89 = arith.addf %86, %88 : vector<2x128xf32>
      %c0_53 = arith.constant 0 : index
      %c0_54 = arith.constant 0 : index
      %90 = vector.load %arg19[%c0_53, %c0_54] : memref<2x128xf32, #tpu.memory_space<vmem>>, vector<2x128xf32>
      tpu.vector_store %arg19[%c0_53, %c0_54], %89 {strides = array<i32>} : memref<2x128xf32, #tpu.memory_space<vmem>>, vector<2x128xf32>,
    } else {
    }
    return
  }
  func.func @transform_0(%arg0: i32) -> (i32, i32) {
    %c0_i32 = arith.constant 0 : i32
    %c0_i32_0 = arith.constant 0 : i32
    %c0_i32_1 = arith.constant 0 : i32
    return %c0_i32, %c0_i32_0 : i32, i32
  }
  func.func @transform_1(%arg0: i32) -> (i32, i32) {
    %c0_i32 = arith.constant 0 : i32
    %c0_i32_0 = arith.constant 0 : i32
    %c0_i32_1 = arith.constant 0 : i32
    return %c0_i32, %c0_i32_0 : i32, i32
  }
  func.func @transform_2(%arg0: i32) -> (i32, i32) {
    %c0_i32 = arith.constant 0 : i32
    %c0_i32_0 = arith.constant 0 : i32
    return %arg0, %c0_i32 : i32, i32
  }
  func.func @transform_3(%arg0: i32) -> (i32, i32) {
    %c0_i32 = arith.constant 0 : i32
    %c0_i32_0 = arith.constant 0 : i32
    return %arg0, %c0_i32 : i32, i32
  }
  func.func @transform_4(%arg0: i32) -> (i32, i32) {
    %c0_i32 = arith.constant 0 : i32
    %c0_i32_0 = arith.constant 0 : i32
    return %arg0, %c0_i32 : i32, i32
  }
  func.func @transform_5(%arg0: i32) -> (i32, i32) {
    %c0_i32 = arith.constant 0 : i32
    %c0_i32_0 = arith.constant 0 : i32
    %c0_i32_1 = arith.constant 0 : i32
    return %c0_i32, %c0_i32_0 : i32, i32
  }
  func.func @transform_6(%arg0: i32) -> (i32, i32) {
    %c0_i32 = arith.constant 0 : i32
    %c0_i32_0 = arith.constant 0 : i32
    %c0_i32_1 = arith.constant 0 : i32
    return %c0_i32, %c0_i32_0 : i32, i32
  }
  func.func @transform_7(%arg0: i32) -> (i32, i32) {
    %c0_i32 = arith.constant 0 : i32
    %c0_i32_0 = arith.constant 0 : i32
    %c0_i32_1 = arith.constant 0 : i32
    return %c0_i32, %c0_i32_0 : i32, i32
  }
  func.func @transform_8(%arg0: i32) -> (i32, i32) {
    %c0_i32 = arith.constant 0 : i32
    %c0_i32_0 = arith.constant 0 : i32
    %c0_i32_1 = arith.constant 0 : i32
    return %c0_i32, %c0_i32_0 : i32, i32
  }
  func.func @transform_9(%arg0: i32) -> (i32, i32) {
    %c0_i32 = arith.constant 0 : i32
    %c0_i32_0 = arith.constant 0 : i32
    %c0_i32_1 = arith.constant 0 : i32
    return %c0_i32, %c0_i32_0 : i32, i32
  }
  func.func @transform_10(%arg0: i32) -> (i32, i32) {
    %c0_i32 = arith.constant 0 : i32
    %c0_i32_0 = arith.constant 0 : i32
    %c0_i32_1 = arith.constant 0 : i32
    return %c0_i32, %c0_i32_0 : i32, i32
  }
  func.func @transform_11(%arg0: i32) -> (i32, i32) {
    %c0_i32 = arith.constant 0 : i32
    %c0_i32_0 = arith.constant 0 : i32
    %c0_i32_1 = arith.constant 0 : i32
    return %c0_i32, %c0_i32_0 : i32, i32
  }
  func.func @transform_12(%arg0: i32) -> (i32, i32) {
    %c0_i32 = arith.constant 0 : i32
    %c0_i32_0 = arith.constant 0 : i32
    %c0_i32_1 = arith.constant 0 : i32
    return %c0_i32, %c0_i32_0 : i32, i32
  }
  func.func @transform_13(%arg0: i32) -> (i32, i32) {
    %c0_i32 = arith.constant 0 : i32
    %c0_i32_0 = arith.constant 0 : i32
    %c0_i32_1 = arith.constant 0 : i32
    return %c0_i32, %c0_i32_0 : i32, i32
  }
  func.func @transform_14(%arg0: i32) -> (i32, i32) {
    %c0_i32 = arith.constant 0 : i32
    %c0_i32_0 = arith.constant 0 : i32
    %c0_i32_1 = arith.constant 0 : i32
    return %c0_i32, %c0_i32_0 : i32, i32
  }
  func.func @transform_15(%arg0: i32) -> (i32, i32) {
    %c0_i32 = arith.constant 0 : i32
    %c0_i32_0 = arith.constant 0 : i32
    %c0_i32_1 = arith.constant 0 : i32
    return %c0_i32, %c0_i32_0 : i32, i32
  }
  func.func @transform_16(%arg0: i32) -> (i32, i32) {
    %c0_i32 = arith.constant 0 : i32
    %c0_i32_0 = arith.constant 0 : i32
    %c0_i32_1 = arith.constant 0 : i32
    return %c0_i32, %c0_i32_0 : i32, i32
  }
  func.func @transform_17(%arg0: i32) -> (i32, i32) {
    %c0_i32 = arith.constant 0 : i32
    %c0_i32_0 = arith.constant 0 : i32
    %c0_i32_1 = arith.constant 0 : i32
    return %c0_i32, %c0_i32_0 : i32, i32
  }
  func.func @transform_18(%arg0: i32) -> (i32, i32) {
    %c0_i32 = arith.constant 0 : i32
    %c0_i32_0 = arith.constant 0 : i32
    %c0_i32_1 = arith.constant 0 : i32
    return %c0_i32, %c0_i32_0 : i32, i32
  }
}

</mosaic_0001>

<llo_original>
// kernel: tpu_custom_call.1
$region0: #{tpu_custom_call.1}
  #allocation0 [shape = 'u32[]', space=smem, size = 0x4, offset = 0x4, fixed_abs, tag = 'smem constant byte address 0x4 - core index']
  #allocation1 [shape = 'u32[144,128]{1,0:T(1,128)}', space=vmem, size = 0x12000, scoped, tag = 'internal scratch']
  #allocation2 [shape = 'f32[128,128]{1,0:T(8,128)}', space=vmem, size = 0x10000, scoped, tag = 'scratch operand']
  #allocation3 [shape = 'bf16[128,128]{1,0:T(8,128)(2,1)}', space=vmem, size = 0x8000, scoped, tag = 'scratch operand']
  #allocation4 [shape = 'bf16[128,128]{1,0:T(8,128)(2,1)}', space=vmem, size = 0x8000, scoped, tag = 'scratch operand']
  #allocation5 [shape = 'f32[128,128]{1,0:T(8,128)}', space=vmem, size = 0x10000, scoped, tag = 'scratch operand']
  #allocation6 [shape = 'f32[1,128]{1,0:T(1,128)}', space=vmem, size = 0x200, scoped, tag = 'scratch operand']
  %s0 = inlined_call_operand.vmem [shape: f32[128,4], index: 0, kind: input, shape index: {}]
  %s1 = inlined_call_operand.hbm [shape: s32[1,128], index: 1, kind: input, shape index: {}]
  %s2 = inlined_call_operand.vmem [shape: f32[32,6], index: 2, kind: input, shape index: {}]
  %s3 = inlined_call_operand.vmem [shape: s32[32,1], index: 3, kind: input, shape index: {}]
  %s4 = inlined_call_operand.vmem [shape: s32[32,1], index: 4, kind: input, shape index: {}]
  %s5 = inlined_call_operand.hbm [shape: bf16[4,128], index: 5, kind: input, shape index: {}]
  %s6 = inlined_call_operand.hbm [shape: f32[1,128], index: 6, kind: input, shape index: {}]
  %s7 = inlined_call_operand.hbm [shape: bf16[6,128], index: 7, kind: input, shape index: {}]
  %s8 = inlined_call_operand.hbm [shape: f32[1,128], index: 8, kind: input, shape index: {}]
  %s9 = inlined_call_operand.vmem [shape: bf16[128,128], index: 9, kind: input, shape index: {}]
  %s10 = inlined_call_operand.vmem [shape: bf16[128,128], index: 10, kind: input, shape index: {}]
  %s11 = inlined_call_operand.vmem [shape: bf16[128,128], index: 11, kind: input, shape index: {}]
  %s12 = inlined_call_operand.vmem [shape: bf16[128,128], index: 12, kind: input, shape index: {}]
  %s13 = inlined_call_operand.vmem [shape: f32[1,128], index: 13, kind: input, shape index: {}]
  %s14 = inlined_call_operand.hbm [shape: bf16[128,128], index: 14, kind: input, shape index: {}]
  %s15 = inlined_call_operand.vmem [shape: f32[1,128], index: 15, kind: input, shape index: {}]
  %s16 = inlined_call_operand.hbm [shape: bf16[128,128], index: 16, kind: input, shape index: {}]
  %s17 = inlined_call_operand.vmem [shape: f32[1,128], index: 17, kind: input, shape index: {}]
  %s18 = inlined_call_operand.hbm [shape: f32[2,128], index: 18, kind: output, shape index: {}]
  %s19 = sld [smem:[#allocation0]]
  $region141: #{tpu_custom_call.1} parent=0
    _
  %s21 = ssub.s32 1, %s19
  %s22 = scalar_select 0, %s21, %s19
  $region1: #{tpu_custom_call.1} parent=0
    #allocation7 [shape = 'u8[512]{0}', space=vmem, size = 0x400, scoped, tag = 'input window, operand 1, single buffered']
    #allocation8 [shape = 's32[2]{0}', space=sflag, size = 0x8, scoped, tag = 'scoped memory for tpu_custom_call.1']
    #allocation9 [shape = 's32[2]{0}', space=sflag, size = 0x8, scoped, tag = 'scoped memory for tpu_custom_call.1']
    #allocation10 [shape = 'u8[1024]{0}', space=vmem, size = 0x400, scoped, tag = 'input window, operand 5, single buffered']
    #allocation11 [shape = 's32[1]{0}', space=sflag, size = 0x4, scoped, tag = 'scoped memory for tpu_custom_call.1']
    #allocation12 [shape = 'u8[512]{0}', space=vmem, size = 0x400, scoped, tag = 'input window, operand 6, single buffered']
    #allocation13 [shape = 'u8[2048]{0}', space=vmem, size = 0x800, scoped, tag = 'input window, operand 7, single buffered']
    #allocation14 [shape = 's32[1]{0}', space=sflag, size = 0x4, scoped, tag = 'scoped memory for tpu_custom_call.1']
    #allocation15 [shape = 'u8[512]{0}', space=vmem, size = 0x400, scoped, tag = 'input window, operand 8, single buffered']
    #allocation16 [shape = 'u8[32768]{0}', space=vmem, size = 0x8000, scoped, tag = 'input window, operand 14, single buffered']
    #allocation17 [shape = 's32[1]{0}', space=sflag, size = 0x4, scoped, tag = 'scoped memory for tpu_custom_call.1']
    #allocation18 [shape = 'u8[32768]{0}', space=vmem, size = 0x8000, scoped, tag = 'input window, operand 16, single buffered']
    #allocation19 [shape = 'u8[1024]{0}', space=vmem, size = 0x400, scoped, tag = 'output window, operand 0, single buffered']
    %23 = vsyncpa [#allocation8], 0
    %24 = vsyncpa [#allocation11], 0
    %25 = vsyncpa [#allocation14], 0
    %26 = vsyncpa [#allocation17], 0
    %27 = vsyncpa [#allocation9], 0
    loop: start=0, step=1, limit=4
    $region2: #{tpu_custom_call.1} parent=1 // loop_pre_header
      _
    $region3: #{tpu_custom_call.1} parent=1 // loop_header
      %s29 = sphi 0, %s33
      %p30 = scmp.ge.s32.totalorder %s29, 4
      %s37 = sphi 0, %s37
      %s39 = sphi 0, %s37
      %s40 = sphi 0, %s39
      %s54 = sphi 0, %s40
      %s58 = sphi 0, %s58
      %s60 = sphi 0, %s58
      %s61 = sphi 0, %s60
      %s75 = sphi 0, %s61
      %s81 = sphi 0, %s83
      %s84 = sphi 0, %s81
      %s85 = sphi 0, %s84
      %s101 = sphi 0, %s85
      %s107 = sphi 0, %s109
      %s110 = sphi 0, %s107
      %s111 = sphi 0, %s110
      %s127 = sphi 0, %s111
      %s133 = sphi 0, %s135
      %s136 = sphi 0, %s133
      %s137 = sphi 0, %s136
      %s153 = sphi 0, %s137
      %s157 = sphi 0, %s157
      %s159 = sphi 0, %s157
      %s160 = sphi 0, %s159
      %s174 = sphi 0, %s160
      %s178 = sphi 0, %s178
      %s180 = sphi 0, %s178
      %s181 = sphi 0, %s180
      %s195 = sphi 0, %s181
      %s199 = sphi 0, %s199
      %s201 = sphi 0, %s199
      %s202 = sphi 0, %s201
      %s216 = sphi 0, %s202
      %s220 = sphi 0, %s220
      %s222 = sphi 0, %s220
      %s223 = sphi 0, %s222
      %s237 = sphi 0, %s223
      %s241 = sphi 0, %s241
      %s243 = sphi 0, %s241
      %s244 = sphi 0, %s243
      %s258 = sphi 0, %s244
      %s262 = sphi 0, %s262
      %s264 = sphi 0, %s262
      %s265 = sphi 0, %s264
      %s279 = sphi 0, %s265
      %s283 = sphi 0, %s283
      %s285 = sphi 0, %s283
      %s286 = sphi 0, %s285
      %s300 = sphi 0, %s286
      %s304 = sphi 0, %s304
      %s306 = sphi 0, %s304
      %s307 = sphi 0, %s306
      %s321 = sphi 0, %s307
      %s325 = sphi 0, %s325
      %s327 = sphi 0, %s325
      %s328 = sphi 0, %s327
      %s342 = sphi 0, %s328
      %s346 = sphi 0, %s346
      %s348 = sphi 0, %s346
      %s349 = sphi 0, %s348
      %s363 = sphi 0, %s349
      %s367 = sphi 0, %s367
      %s369 = sphi 0, %s367
      %s370 = sphi 0, %s369
      %s384 = sphi 0, %s370
      %s388 = sphi 0, %s388
      %s390 = sphi 0, %s388
      %s391 = sphi 0, %s390
      %s405 = sphi 0, %s391
      %s409 = sphi 0, %s409
      %s411 = sphi 0, %s409
      %s412 = sphi 0, %s411
      %s426 = sphi 0, %s412
      %s430 = sphi 0, %s430
      %s432 = sphi 0, %s430
      %s433 = sphi 0, %s432
      %s447 = sphi 0, %s433
    $region4: #{tpu_custom_call.1} parent=1 // loop_header_branch
      %32 = sbr.rel (%p30) target = $region8
    $region5: #{tpu_custom_call.1} parent=1 // loop_body
      %s34 = ssub.s32 %s29, 1
      %s35 = ssub.s32 %s29, 2
      %s36 = sadd.s32 %s29, 1
      %s38 = sadd.s32 %s37, 1
      %p41 = scmp.eq.s32.totalorder %s29, 1
      %p42 = scmp.ne.s32.totalorder %s37, %s39
      %p43 = scmp.eq.s32.totalorder %s29, 0
      %p44 = por %p42, %p43
      %p45 = scmp.ne.s32.totalorder %s37, %s39
      %p46 = scmp.eq.s32.totalorder %s34, 1
      %p47 = por %p45, %p46
      %p48 = scmp.ne.s32.totalorder %s39, %s40
      %p49 = scmp.eq.s32.totalorder %s34, 0
      %p50 = por %p48, %p49
      %p51 = scmp.ne.s32.totalorder %s39, %s40
      %p52 = scmp.eq.s32.totalorder %s35, 1
      %p53 = por %p51, %p52
      %p55 = scmp.ne.s32.totalorder %s40, %s54
      %p56 = scmp.eq.s32.totalorder %s35, 0
      %p57 = por %p55, %p56
      %s59 = sadd.s32 %s58, 1
      %p62 = scmp.eq.s32.totalorder %s29, 1
      %p63 = scmp.ne.s32.totalorder %s58, %s60
      %p64 = scmp.eq.s32.totalorder %s29, 0
      %p65 = por %p63, %p64
      %p66 = scmp.ne.s32.totalorder %s58, %s60
      %p67 = scmp.eq.s32.totalorder %s34, 1
      %p68 = por %p66, %p67
      %p69 = scmp.ne.s32.totalorder %s60, %s61
      %p70 = scmp.eq.s32.totalorder %s34, 0
      %p71 = por %p69, %p70
      %p72 = scmp.ne.s32.totalorder %s60, %s61
      %p73 = scmp.eq.s32.totalorder %s35, 1
      %p74 = por %p72, %p73
      %p76 = scmp.ne.s32.totalorder %s61, %s75
      %p77 = scmp.eq.s32.totalorder %s35, 0
      %p78 = por %p76, %p77
      %s79 = ssub.s32 %s29, %s36
      %p80 = scmp.eq.s32.totalorder %s79, 0
      %s82 = sadd.s32 %s81, 1
      %s83 = scalar_select %p80, %s81, %s82
      %p86 = pneg %p80
      %p87 = scmp.eq.s32.totalorder %s29, 1
      %p88 = por %p86, %p87
      %p89 = scmp.ne.s32.totalorder %s81, %s84
      %p90 = scmp.eq.s32.totalorder %s29, 0
      %p91 = por %p89, %p90
      %p92 = scmp.ne.s32.totalorder %s81, %s84
      %p93 = scmp.eq.s32.totalorder %s34, 1
      %p94 = por %p92, %p93
      %p95 = scmp.ne.s32.totalorder %s84, %s85
      %p96 = scmp.eq.s32.totalorder %s34, 0
      %p97 = por %p95, %p96
      %p98 = scmp.ne.s32.totalorder %s84, %s85
      %p99 = scmp.eq.s32.totalorder %s35, 1
      %p100 = por %p98, %p99
      %p102 = scmp.ne.s32.totalorder %s85, %s101
      %p103 = scmp.eq.s32.totalorder %s35, 0
      %p104 = por %p102, %p103
      %s105 = ssub.s32 %s29, %s36
      %p106 = scmp.eq.s32.totalorder %s105, 0
      %s108 = sadd.s32 %s107, 1
      %s109 = scalar_select %p106, %s107, %s108
      %p112 = pneg %p106
      %p113 = scmp.eq.s32.totalorder %s29, 1
      %p114 = por %p112, %p113
      %p115 = scmp.ne.s32.totalorder %s107, %s110
      %p116 = scmp.eq.s32.totalorder %s29, 0
      %p117 = por %p115, %p116
      %p118 = scmp.ne.s32.totalorder %s107, %s110
      %p119 = scmp.eq.s32.totalorder %s34, 1
      %p120 = por %p118, %p119
      %p121 = scmp.ne.s32.totalorder %s110, %s111
      %p122 = scmp.eq.s32.totalorder %s34, 0
      %p123 = por %p121, %p122
      %p124 = scmp.ne.s32.totalorder %s110, %s111
      %p125 = scmp.eq.s32.totalorder %s35, 1
      %p126 = por %p124, %p125
      %p128 = scmp.ne.s32.totalorder %s111, %s127
      %p129 = scmp.eq.s32.totalorder %s35, 0
      %p130 = por %p128, %p129
      %s131 = ssub.s32 %s29, %s36
      %p132 = scmp.eq.s32.totalorder %s131, 0
      %s134 = sadd.s32 %s133, 1
      %s135 = scalar_select %p132, %s133, %s134
      %p138 = pneg %p132
      %p139 = scmp.eq.s32.totalorder %s29, 1
      %p140 = por %p138, %p139
      %p141 = scmp.ne.s32.totalorder %s133, %s136
      %p142 = scmp.eq.s32.totalorder %s29, 0
      %p143 = por %p141, %p142
      %p144 = scmp.ne.s32.totalorder %s133, %s136
      %p145 = scmp.eq.s32.totalorder %s34, 1
      %p146 = por %p144, %p145
      %p147 = scmp.ne.s32.totalorder %s136, %s137
      %p148 = scmp.eq.s32.totalorder %s34, 0
      %p149 = por %p147, %p148
      %p150 = scmp.ne.s32.totalorder %s136, %s137
      %p151 = scmp.eq.s32.totalorder %s35, 1
      %p152 = por %p150, %p151
      %p154 = scmp.ne.s32.totalorder %s137, %s153
      %p155 = scmp.eq.s32.totalorder %s35, 0
      %p156 = por %p154, %p155
      %s158 = sadd.s32 %s157, 1
      %p161 = scmp.eq.s32.totalorder %s29, 1
      %p162 = scmp.ne.s32.totalorder %s157, %s159
      %p163 = scmp.eq.s32.totalorder %s29, 0
      %p164 = por %p162, %p163
      %p165 = scmp.ne.s32.totalorder %s157, %s159
      %p166 = scmp.eq.s32.totalorder %s34, 1
      %p167 = por %p165, %p166
      %p168 = scmp.ne.s32.totalorder %s159, %s160
      %p169 = scmp.eq.s32.totalorder %s34, 0
      %p170 = por %p168, %p169
      %p171 = scmp.ne.s32.totalorder %s159, %s160
      %p172 = scmp.eq.s32.totalorder %s35, 1
      %p173 = por %p171, %p172
      %p175 = scmp.ne.s32.totalorder %s160, %s174
      %p176 = scmp.eq.s32.totalorder %s35, 0
      %p177 = por %p175, %p176
      %s179 = sadd.s32 %s178, 1
      %p182 = scmp.eq.s32.totalorder %s29, 1
      %p183 = scmp.ne.s32.totalorder %s178, %s180
      %p184 = scmp.eq.s32.totalorder %s29, 0
      %p185 = por %p183, %p184
      %p186 = scmp.ne.s32.totalorder %s178, %s180
      %p187 = scmp.eq.s32.totalorder %s34, 1
      %p188 = por %p186, %p187
      %p189 = scmp.ne.s32.totalorder %s180, %s181
      %p190 = scmp.eq.s32.totalorder %s34, 0
      %p191 = por %p189, %p190
      %p192 = scmp.ne.s32.totalorder %s180, %s181
      %p193 = scmp.eq.s32.totalorder %s35, 1
      %p194 = por %p192, %p193
      %p196 = scmp.ne.s32.totalorder %s181, %s195
      %p197 = scmp.eq.s32.totalorder %s35, 0
      %p198 = por %p196, %p197
      %s200 = sadd.s32 %s199, 1
      %p203 = scmp.eq.s32.totalorder %s29, 1
      %p204 = scmp.ne.s32.totalorder %s199, %s201
      %p205 = scmp.eq.s32.totalorder %s29, 0
      %p206 = por %p204, %p205
      %p207 = scmp.ne.s32.totalorder %s199, %s201
      %p208 = scmp.eq.s32.totalorder %s34, 1
      %p209 = por %p207, %p208
      %p210 = scmp.ne.s32.totalorder %s201, %s202
      %p211 = scmp.eq.s32.totalorder %s34, 0
      %p212 = por %p210, %p211
      %p213 = scmp.ne.s32.totalorder %s201, %s202
      %p214 = scmp.eq.s32.totalorder %s35, 1
      %p215 = por %p213, %p214
      %p217 = scmp.ne.s32.totalorder %s202, %s216
      %p218 = scmp.eq.s32.totalorder %s35, 0
      %p219 = por %p217, %p218
      %s221 = sadd.s32 %s220, 1
      %p224 = scmp.eq.s32.totalorder %s29, 1
      %p225 = scmp.ne.s32.totalorder %s220, %s222
      %p226 = scmp.eq.s32.totalorder %s29, 0
      %p227 = por %p225, %p226
      %p228 = scmp.ne.s32.totalorder %s220, %s222
      %p229 = scmp.eq.s32.totalorder %s34, 1
      %p230 = por %p228, %p229
      %p231 = scmp.ne.s32.totalorder %s222, %s223
      %p232 = scmp.eq.s32.totalorder %s34, 0
      %p233 = por %p231, %p232
      %p234 = scmp.ne.s32.totalorder %s222, %s223
      %p235 = scmp.eq.s32.totalorder %s35, 1
      %p236 = por %p234, %p235
      %p238 = scmp.ne.s32.totalorder %s223, %s237
      %p239 = scmp.eq.s32.totalorder %s35, 0
      %p240 = por %p238, %p239
      %s242 = sadd.s32 %s241, 1
      %p245 = scmp.eq.s32.totalorder %s29, 1
      %p246 = scmp.ne.s32.totalorder %s241, %s243
      %p247 = scmp.eq.s32.totalorder %s29, 0
      %p248 = por %p246, %p247
      %p249 = scmp.ne.s32.totalorder %s241, %s243
      %p250 = scmp.eq.s32.totalorder %s34, 1
      %p251 = por %p249, %p250
      %p252 = scmp.ne.s32.totalorder %s243, %s244
      %p253 = scmp.eq.s32.totalorder %s34, 0
      %p254 = por %p252, %p253
      %p255 = scmp.ne.s32.totalorder %s243, %s244
      %p256 = scmp.eq.s32.totalorder %s35, 1
      %p257 = por %p255, %p256
      %p259 = scmp.ne.s32.totalorder %s244, %s258
      %p260 = scmp.eq.s32.totalorder %s35, 0
      %p261 = por %p259, %p260
      %s263 = sadd.s32 %s262, 1
      %p266 = scmp.eq.s32.totalorder %s29, 1
      %p267 = scmp.ne.s32.totalorder %s262, %s264
      %p268 = scmp.eq.s32.totalorder %s29, 0
      %p269 = por %p267, %p268
      %p270 = scmp.ne.s32.totalorder %s262, %s264
      %p271 = scmp.eq.s32.totalorder %s34, 1
      %p272 = por %p270, %p271
      %p273 = scmp.ne.s32.totalorder %s264, %s265
      %p274 = scmp.eq.s32.totalorder %s34, 0
      %p275 = por %p273, %p274
      %p276 = scmp.ne.s32.totalorder %s264, %s265
      %p277 = scmp.eq.s32.totalorder %s35, 1
      %p278 = por %p276, %p277
      %p280 = scmp.ne.s32.totalorder %s265, %s279
      %p281 = scmp.eq.s32.totalorder %s35, 0
      %p282 = por %p280, %p281
      %s284 = sadd.s32 %s283, 1
      %p287 = scmp.eq.s32.totalorder %s29, 1
      %p288 = scmp.ne.s32.totalorder %s283, %s285
      %p289 = scmp.eq.s32.totalorder %s29, 0
      %p290 = por %p288, %p289
      %p291 = scmp.ne.s32.totalorder %s283, %s285
      %p292 = scmp.eq.s32.totalorder %s34, 1
      %p293 = por %p291, %p292
      %p294 = scmp.ne.s32.totalorder %s285, %s286
      %p295 = scmp.eq.s32.totalorder %s34, 0
      %p296 = por %p294, %p295
      %p297 = scmp.ne.s32.totalorder %s285, %s286
      %p298 = scmp.eq.s32.totalorder %s35, 1
      %p299 = por %p297, %p298
      %p301 = scmp.ne.s32.totalorder %s286, %s300
      %p302 = scmp.eq.s32.totalorder %s35, 0
      %p303 = por %p301, %p302
      %s305 = sadd.s32 %s304, 1
      %p308 = scmp.eq.s32.totalorder %s29, 1
      %p309 = scmp.ne.s32.totalorder %s304, %s306
      %p310 = scmp.eq.s32.totalorder %s29, 0
      %p311 = por %p309, %p310
      %p312 = scmp.ne.s32.totalorder %s304, %s306
      %p313 = scmp.eq.s32.totalorder %s34, 1
      %p314 = por %p312, %p313
      %p315 = scmp.ne.s32.totalorder %s306, %s307
      %p316 = scmp.eq.s32.totalorder %s34, 0
      %p317 = por %p315, %p316
      %p318 = scmp.ne.s32.totalorder %s306, %s307
      %p319 = scmp.eq.s32.totalorder %s35, 1
      %p320 = por %p318, %p319
      %p322 = scmp.ne.s32.totalorder %s307, %s321
      %p323 = scmp.eq.s32.totalorder %s35, 0
      %p324 = por %p322, %p323
      %s326 = sadd.s32 %s325, 1
      %p329 = scmp.eq.s32.totalorder %s29, 1
      %p330 = scmp.ne.s32.totalorder %s325, %s327
      %p331 = scmp.eq.s32.totalorder %s29, 0
      %p332 = por %p330, %p331
      %p333 = scmp.ne.s32.totalorder %s325, %s327
      %p334 = scmp.eq.s32.totalorder %s34, 1
      %p335 = por %p333, %p334
      %p336 = scmp.ne.s32.totalorder %s327, %s328
      %p337 = scmp.eq.s32.totalorder %s34, 0
      %p338 = por %p336, %p337
      %p339 = scmp.ne.s32.totalorder %s327, %s328
      %p340 = scmp.eq.s32.totalorder %s35, 1
      %p341 = por %p339, %p340
      %p343 = scmp.ne.s32.totalorder %s328, %s342
      %p344 = scmp.eq.s32.totalorder %s35, 0
      %p345 = por %p343, %p344
      %s347 = sadd.s32 %s346, 1
      %p350 = scmp.eq.s32.totalorder %s29, 1
      %p351 = scmp.ne.s32.totalorder %s346, %s348
      %p352 = scmp.eq.s32.totalorder %s29, 0
      %p353 = por %p351, %p352
      %p354 = scmp.ne.s32.totalorder %s346, %s348
      %p355 = scmp.eq.s32.totalorder %s34, 1
      %p356 = por %p354, %p355
      %p357 = scmp.ne.s32.totalorder %s348, %s349
      %p358 = scmp.eq.s32.totalorder %s34, 0
      %p359 = por %p357, %p358
      %p360 = scmp.ne.s32.totalorder %s348, %s349
      %p361 = scmp.eq.s32.totalorder %s35, 1
      %p362 = por %p360, %p361
      %p364 = scmp.ne.s32.totalorder %s349, %s363
      %p365 = scmp.eq.s32.totalorder %s35, 0
      %p366 = por %p364, %p365
      %s368 = sadd.s32 %s367, 1
      %p371 = scmp.eq.s32.totalorder %s29, 1
      %p372 = scmp.ne.s32.totalorder %s367, %s369
      %p373 = scmp.eq.s32.totalorder %s29, 0
      %p374 = por %p372, %p373
      %p375 = scmp.ne.s32.totalorder %s367, %s369
      %p376 = scmp.eq.s32.totalorder %s34, 1
      %p377 = por %p375, %p376
      %p378 = scmp.ne.s32.totalorder %s369, %s370
      %p379 = scmp.eq.s32.totalorder %s34, 0
      %p380 = por %p378, %p379
      %p381 = scmp.ne.s32.totalorder %s369, %s370
      %p382 = scmp.eq.s32.totalorder %s35, 1
      %p383 = por %p381, %p382
      %p385 = scmp.ne.s32.totalorder %s370, %s384
      %p386 = scmp.eq.s32.totalorder %s35, 0
      %p387 = por %p385, %p386
      %s389 = sadd.s32 %s388, 1
      %p392 = scmp.eq.s32.totalorder %s29, 1
      %p393 = scmp.ne.s32.totalorder %s388, %s390
      %p394 = scmp.eq.s32.totalorder %s29, 0
      %p395 = por %p393, %p394
      %p396 = scmp.ne.s32.totalorder %s388, %s390
      %p397 = scmp.eq.s32.totalorder %s34, 1
      %p398 = por %p396, %p397
      %p399 = scmp.ne.s32.totalorder %s390, %s391
      %p400 = scmp.eq.s32.totalorder %s34, 0
      %p401 = por %p399, %p400
      %p402 = scmp.ne.s32.totalorder %s390, %s391
      %p403 = scmp.eq.s32.totalorder %s35, 1
      %p404 = por %p402, %p403
      %p406 = scmp.ne.s32.totalorder %s391, %s405
      %p407 = scmp.eq.s32.totalorder %s35, 0
      %p408 = por %p406, %p407
      %s410 = sadd.s32 %s409, 1
      %p413 = scmp.eq.s32.totalorder %s29, 1
      %p414 = scmp.ne.s32.totalorder %s409, %s411
      %p415 = scmp.eq.s32.totalorder %s29, 0
      %p416 = por %p414, %p415
      %p417 = scmp.ne.s32.totalorder %s409, %s411
      %p418 = scmp.eq.s32.totalorder %s34, 1
      %p419 = por %p417, %p418
      %p420 = scmp.ne.s32.totalorder %s411, %s412
      %p421 = scmp.eq.s32.totalorder %s34, 0
      %p422 = por %p420, %p421
      %p423 = scmp.ne.s32.totalorder %s411, %s412
      %p424 = scmp.eq.s32.totalorder %s35, 1
      %p425 = por %p423, %p424
      %p427 = scmp.ne.s32.totalorder %s412, %s426
      %p428 = scmp.eq.s32.totalorder %s35, 0
      %p429 = por %p427, %p428
      %s431 = sadd.s32 %s430, 1
      %p434 = scmp.eq.s32.totalorder %s29, 1
      %p435 = scmp.ne.s32.totalorder %s430, %s432
      %p436 = scmp.eq.s32.totalorder %s29, 0
      %p437 = por %p435, %p436
      %p438 = scmp.ne.s32.totalorder %s430, %s432
      %p439 = scmp.eq.s32.totalorder %s34, 1
      %p440 = por %p438, %p439
      %p441 = scmp.ne.s32.totalorder %s432, %s433
      %p442 = scmp.eq.s32.totalorder %s34, 0
      %p443 = por %p441, %p442
      %p444 = scmp.ne.s32.totalorder %s432, %s433
      %p445 = scmp.eq.s32.totalorder %s35, 1
      %p446 = por %p444, %p445
      %p448 = scmp.ne.s32.totalorder %s433, %s447
      %p449 = scmp.eq.s32.totalorder %s35, 0
      %p450 = por %p448, %p449
      %p451 = scmp.le.s32.totalorder 1, %s29
      %p452 = scmp.lt.s32.totalorder %s29, 3
      %p453 = pnand %p451, %p452
      %p454 = pneg %p453
      // Predicated region
      $region9: #{tpu_custom_call.1} parent=5 // pred_check
        _
      $region10: #{tpu_custom_call.1} parent=5 // pred_check_branch
        %456 = sbr.rel (%p453) target = $region12
      $region11: #{tpu_custom_call.1} parent=5 // pred_region
        %s457 = ssub.s32 %s29, 1
        // Predicated region
        $region13: #{tpu_custom_call.1} parent=11 // pred_check
          %p458 = pneg %p50
        $region14: #{tpu_custom_call.1} parent=11 // pred_check_branch
          %460 = sbr.rel (%p458) target = $region16
        $region15: #{tpu_custom_call.1} parent=11 // pred_region
          _
        $region16: #{tpu_custom_call.1} parent=11 // pred_fallthru
          _
        // Predicated region
        $region17: #{tpu_custom_call.1} parent=11 // pred_check
          %p461 = pneg %p71
        $region18: #{tpu_custom_call.1} parent=11 // pred_check_branch
          %463 = sbr.rel (%p461) target = $region20
        $region19: #{tpu_custom_call.1} parent=11 // pred_region
          %s465 = ssub.s32 16, 16
          %466 = vsyncadd [#allocation8], %s465
          %s468 = sshll.u32 [#allocation7], 4
          %s469 = int_to_ptr.vmem [resolvable:$true] %s468
          %471 = dma.hbm_to_vmem [thread:$0]  %s1, 16, %s469, [#allocation8]
        $region20: #{tpu_custom_call.1} parent=11 // pred_fallthru
          _
        // Predicated region
        $region21: #{tpu_custom_call.1} parent=11 // pred_check
          %p472 = pneg %p170
        $region22: #{tpu_custom_call.1} parent=11 // pred_check_branch
          %474 = sbr.rel (%p472) target = $region24
        $region23: #{tpu_custom_call.1} parent=11 // pred_region
          %s476 = ssub.s32 32, 32
          %477 = vsyncadd [#allocation11], %s476
          %s479 = sshll.u32 [#allocation10], 4
          %s480 = int_to_ptr.vmem [resolvable:$true] %s479
          %482 = dma.hbm_to_vmem [thread:$0]  %s5, 32, %s480, [#allocation11]
        $region24: #{tpu_custom_call.1} parent=11 // pred_fallthru
          _
        // Predicated region
        $region25: #{tpu_custom_call.1} parent=11 // pred_check
          %p483 = pneg %p191
        $region26: #{tpu_custom_call.1} parent=11 // pred_check_branch
          %485 = sbr.rel (%p483) target = $region28
        $region27: #{tpu_custom_call.1} parent=11 // pred_region
          %s487 = ssub.s32 16, 16
          %488 = vsyncadd [#allocation11], %s487
          %s490 = sshll.u32 [#allocation12], 4
          %s491 = int_to_ptr.vmem [resolvable:$true] %s490
          %493 = dma.hbm_to_vmem [thread:$0]  %s6, 16, %s491, [#allocation11]
        $region28: #{tpu_custom_call.1} parent=11 // pred_fallthru
          _
        // Predicated region
        $region29: #{tpu_custom_call.1} parent=11 // pred_check
          %p494 = pneg %p212
        $region30: #{tpu_custom_call.1} parent=11 // pred_check_branch
          %496 = sbr.rel (%p494) target = $region32
        $region31: #{tpu_custom_call.1} parent=11 // pred_region
          %s498 = ssub.s32 64, 64
          %499 = vsyncadd [#allocation14], %s498
          %s501 = sshll.u32 [#allocation13], 4
          %s502 = int_to_ptr.vmem [resolvable:$true] %s501
          %504 = dma.hbm_to_vmem [thread:$0]  %s7, 64, %s502, [#allocation14]
        $region32: #{tpu_custom_call.1} parent=11 // pred_fallthru
          _
        // Predicated region
        $region33: #{tpu_custom_call.1} parent=11 // pred_check
          %p505 = pneg %p233
        $region34: #{tpu_custom_call.1} parent=11 // pred_check_branch
          %507 = sbr.rel (%p505) target = $region36
        $region35: #{tpu_custom_call.1} parent=11 // pred_region
          %s509 = ssub.s32 16, 16
          %510 = vsyncadd [#allocation14], %s509
          %s512 = sshll.u32 [#allocation15], 4
          %s513 = int_to_ptr.vmem [resolvable:$true] %s512
          %515 = dma.hbm_to_vmem [thread:$0]  %s8, 16, %s513, [#allocation14]
        $region36: #{tpu_custom_call.1} parent=11 // pred_fallthru
          _
        // Predicated region
        $region37: #{tpu_custom_call.1} parent=11 // pred_check
          %p516 = pneg %p254
        $region38: #{tpu_custom_call.1} parent=11 // pred_check_branch
          %518 = sbr.rel (%p516) target = $region40
        $region39: #{tpu_custom_call.1} parent=11 // pred_region
          _
        $region40: #{tpu_custom_call.1} parent=11 // pred_fallthru
          _
        // Predicated region
        $region41: #{tpu_custom_call.1} parent=11 // pred_check
          %p519 = pneg %p275
        $region42: #{tpu_custom_call.1} parent=11 // pred_check_branch
          %521 = sbr.rel (%p519) target = $region44
        $region43: #{tpu_custom_call.1} parent=11 // pred_region
          _
        $region44: #{tpu_custom_call.1} parent=11 // pred_fallthru
          _
        // Predicated region
        $region45: #{tpu_custom_call.1} parent=11 // pred_check
          %p522 = pneg %p296
        $region46: #{tpu_custom_call.1} parent=11 // pred_check_branch
          %524 = sbr.rel (%p522) target = $region48
        $region47: #{tpu_custom_call.1} parent=11 // pred_region
          _
        $region48: #{tpu_custom_call.1} parent=11 // pred_fallthru
          _
        // Predicated region
        $region49: #{tpu_custom_call.1} parent=11 // pred_check
          %p525 = pneg %p317
        $region50: #{tpu_custom_call.1} parent=11 // pred_check_branch
          %527 = sbr.rel (%p525) target = $region52
        $region51: #{tpu_custom_call.1} parent=11 // pred_region
          _
        $region52: #{tpu_custom_call.1} parent=11 // pred_fallthru
          _
        // Predicated region
        $region53: #{tpu_custom_call.1} parent=11 // pred_check
          %p528 = pneg %p338
        $region54: #{tpu_custom_call.1} parent=11 // pred_check_branch
          %530 = sbr.rel (%p528) target = $region56
        $region55: #{tpu_custom_call.1} parent=11 // pred_region
          _
        $region56: #{tpu_custom_call.1} parent=11 // pred_fallthru
          _
        // Predicated region
        $region57: #{tpu_custom_call.1} parent=11 // pred_check
          %p531 = pneg %p359
        $region58: #{tpu_custom_call.1} parent=11 // pred_check_branch
          %533 = sbr.rel (%p531) target = $region60
        $region59: #{tpu_custom_call.1} parent=11 // pred_region
          %s535 = ssub.s32 1024, 1024
          %536 = vsyncadd [#allocation17], %s535
          %s537 = sshll.u32 [#allocation16], 4
          %s538 = int_to_ptr.vmem [resolvable:$true] %s537
          %543 = dma.hbm_to_vmem [thread:$0]  %s14, 1024, %s538, [#allocation17], 64, 64, 4
        $region60: #{tpu_custom_call.1} parent=11 // pred_fallthru
          _
        // Predicated region
        $region61: #{tpu_custom_call.1} parent=11 // pred_check
          %p544 = pneg %p380
        $region62: #{tpu_custom_call.1} parent=11 // pred_check_branch
          %546 = sbr.rel (%p544) target = $region64
        $region63: #{tpu_custom_call.1} parent=11 // pred_region
          _
        $region64: #{tpu_custom_call.1} parent=11 // pred_fallthru
          _
        // Predicated region
        $region65: #{tpu_custom_call.1} parent=11 // pred_check
          %p547 = pneg %p401
        $region66: #{tpu_custom_call.1} parent=11 // pred_check_branch
          %549 = sbr.rel (%p547) target = $region68
        $region67: #{tpu_custom_call.1} parent=11 // pred_region
          %s551 = ssub.s32 1024, 1024
          %552 = vsyncadd [#allocation17], %s551
          %s553 = sshll.u32 [#allocation18], 4
          %s554 = int_to_ptr.vmem [resolvable:$true] %s553
          %559 = dma.hbm_to_vmem [thread:$0]  %s16, 1024, %s554, [#allocation17], 64, 64, 4
        $region68: #{tpu_custom_call.1} parent=11 // pred_fallthru
          _
        // Predicated region
        $region69: #{tpu_custom_call.1} parent=11 // pred_check
          %p560 = pneg %p422
        $region70: #{tpu_custom_call.1} parent=11 // pred_check_branch
          %562 = sbr.rel (%p560) target = $region72
        $region71: #{tpu_custom_call.1} parent=11 // pred_region
          _
        $region72: #{tpu_custom_call.1} parent=11 // pred_fallthru
          _
      $region12: #{tpu_custom_call.1} parent=5 // pred_fallthru
        _
      %p563 = scmp.lt.s32.totalorder %s29, 2
      // Predicated region
      $region73: #{tpu_custom_call.1} parent=5 // pred_check
        %p564 = pneg %p563
      $region74: #{tpu_custom_call.1} parent=5 // pred_check_branch
        %566 = sbr.rel (%p564) target = $region76
      $region75: #{tpu_custom_call.1} parent=5 // pred_region
        // Predicated region
        $region77: #{tpu_custom_call.1} parent=75 // pred_check
          %p567 = pneg %p91
        $region78: #{tpu_custom_call.1} parent=75 // pred_check_branch
          %569 = sbr.rel (%p567) target = $region80
        $region79: #{tpu_custom_call.1} parent=75 // pred_region
          %s570 = smul.u32 2, %s29
          %p571 = scmp.lt.s32.totalorder %s570, 3
          %s572 = scalar_select %p571, %s570, 3
          %s573 = smul.addr %s572, 8
          %s574 = scalar_lea.vmem %s2, %s573
          %s575 = smul.u32 2, %s29
        $region80: #{tpu_custom_call.1} parent=75 // pred_fallthru
          _
        // Predicated region
        $region81: #{tpu_custom_call.1} parent=75 // pred_check
          %p576 = pneg %p117
        $region82: #{tpu_custom_call.1} parent=75 // pred_check_branch
          %578 = sbr.rel (%p576) target = $region84
        $region83: #{tpu_custom_call.1} parent=75 // pred_region
          %s579 = smul.u32 2, %s29
          %p580 = scmp.lt.s32.totalorder %s579, 3
          %s581 = scalar_select %p580, %s579, 3
          %s582 = smul.addr %s581, 8
          %s583 = scalar_lea.vmem %s3, %s582
          %s584 = smul.u32 2, %s29
        $region84: #{tpu_custom_call.1} parent=75 // pred_fallthru
          _
        // Predicated region
        $region85: #{tpu_custom_call.1} parent=75 // pred_check
          %p585 = pneg %p143
        $region86: #{tpu_custom_call.1} parent=75 // pred_check_branch
          %587 = sbr.rel (%p585) target = $region88
        $region87: #{tpu_custom_call.1} parent=75 // pred_region
          %s588 = smul.u32 2, %s29
          %p589 = scmp.lt.s32.totalorder %s588, 3
          %s590 = scalar_select %p589, %s588, 3
          %s591 = smul.addr %s590, 8
          %s592 = scalar_lea.vmem %s4, %s591
          %s593 = smul.u32 2, %s29
        $region88: #{tpu_custom_call.1} parent=75 // pred_fallthru
          _
      $region76: #{tpu_custom_call.1} parent=5 // pred_fallthru
        _
      %p594 = scmp.le.s32.totalorder 1, %s29
      %p595 = scmp.lt.s32.totalorder %s29, 3
      %p596 = pnand %p594, %p595
      %p597 = pneg %p596
      // Predicated region
      $region89: #{tpu_custom_call.1} parent=5 // pred_check
        _
      $region90: #{tpu_custom_call.1} parent=5 // pred_check_branch
        %599 = sbr.rel (%p596) target = $region92
      $region91: #{tpu_custom_call.1} parent=5 // pred_region
        %s600 = ssub.s32 %s29, 1
        // Predicated region
        $region93: #{tpu_custom_call.1} parent=91 // pred_check
          %p601 = pneg %p71
        $region94: #{tpu_custom_call.1} parent=91 // pred_check_branch
          %603 = sbr.rel (%p601) target = $region96
        $region95: #{tpu_custom_call.1} parent=91 // pred_region
          %604 = dma.done [#allocation8], 16
        $region96: #{tpu_custom_call.1} parent=91 // pred_fallthru
          _
        // Predicated region
        $region97: #{tpu_custom_call.1} parent=91 // pred_check
          %p605 = pneg %p170
        $region98: #{tpu_custom_call.1} parent=91 // pred_check_branch
          %607 = sbr.rel (%p605) target = $region100
        $region99: #{tpu_custom_call.1} parent=91 // pred_region
          %608 = dma.done [#allocation11], 32
        $region100: #{tpu_custom_call.1} parent=91 // pred_fallthru
          _
        // Predicated region
        $region101: #{tpu_custom_call.1} parent=91 // pred_check
          %p609 = pneg %p191
        $region102: #{tpu_custom_call.1} parent=91 // pred_check_branch
          %611 = sbr.rel (%p609) target = $region104
        $region103: #{tpu_custom_call.1} parent=91 // pred_region
          %612 = dma.done [#allocation11], 16
        $region104: #{tpu_custom_call.1} parent=91 // pred_fallthru
          _
        // Predicated region
        $region105: #{tpu_custom_call.1} parent=91 // pred_check
          %p613 = pneg %p212
        $region106: #{tpu_custom_call.1} parent=91 // pred_check_branch
          %615 = sbr.rel (%p613) target = $region108
        $region107: #{tpu_custom_call.1} parent=91 // pred_region
          %616 = dma.done [#allocation14], 64
        $region108: #{tpu_custom_call.1} parent=91 // pred_fallthru
          _
        // Predicated region
        $region109: #{tpu_custom_call.1} parent=91 // pred_check
          %p617 = pneg %p233
        $region110: #{tpu_custom_call.1} parent=91 // pred_check_branch
          %619 = sbr.rel (%p617) target = $region112
        $region111: #{tpu_custom_call.1} parent=91 // pred_region
          %620 = dma.done [#allocation14], 16
        $region112: #{tpu_custom_call.1} parent=91 // pred_fallthru
          _
        // Predicated region
        $region113: #{tpu_custom_call.1} parent=91 // pred_check
          %p621 = pneg %p359
        $region114: #{tpu_custom_call.1} parent=91 // pred_check_branch
          %623 = sbr.rel (%p621) target = $region116
        $region115: #{tpu_custom_call.1} parent=91 // pred_region
          %624 = dma.done [#allocation17], 1024
        $region116: #{tpu_custom_call.1} parent=91 // pred_fallthru
          _
        // Predicated region
        $region117: #{tpu_custom_call.1} parent=91 // pred_check
          %p625 = pneg %p401
        $region118: #{tpu_custom_call.1} parent=91 // pred_check_branch
          %627 = sbr.rel (%p625) target = $region120
        $region119: #{tpu_custom_call.1} parent=91 // pred_region
          %628 = dma.done [#allocation17], 1024
        $region120: #{tpu_custom_call.1} parent=91 // pred_fallthru
          _
        %p629 = pneg %p50
        %p630 = pneg %p47
        %p631 = pneg %p71
        %p632 = pneg %p68
        %s633 = smul.u32 2, %s34
        %p634 = scmp.lt.s32.totalorder %s633, 3
        %s635 = scalar_select %p634, %s633, 3
        %s636 = smul.addr %s635, 8
        %s637 = scalar_lea.vmem %s2, %s636
        %p638 = pneg %p97
        %p639 = pneg %p94
        %s640 = smul.u32 2, %s34
        %p641 = scmp.lt.s32.totalorder %s640, 3
        %s642 = scalar_select %p641, %s640, 3
        %s643 = smul.addr %s642, 8
        %s644 = scalar_lea.vmem %s3, %s643
        %p645 = pneg %p123
        %p646 = pneg %p120
        %s647 = smul.u32 2, %s34
        %p648 = scmp.lt.s32.totalorder %s647, 3
        %s649 = scalar_select %p648, %s647, 3
        %s650 = smul.addr %s649, 8
        %s651 = scalar_lea.vmem %s4, %s650
        %p652 = pneg %p149
        %p653 = pneg %p146
        %p654 = pneg %p170
        %p655 = pneg %p167
        %p656 = pneg %p191
        %p657 = pneg %p188
        %p658 = pneg %p212
        %p659 = pneg %p209
        %p660 = pneg %p233
        %p661 = pneg %p230
        %p662 = pneg %p254
        %p663 = pneg %p251
        %p664 = pneg %p275
        %p665 = pneg %p272
        %p666 = pneg %p296
        %p667 = pneg %p293
        %p668 = pneg %p317
        %p669 = pneg %p314
        %p670 = pneg %p338
        %p671 = pneg %p335
        %p672 = pneg %p359
        %p673 = pneg %p356
        %p674 = pneg %p380
        %p675 = pneg %p377
        %p676 = pneg %p401
        %p677 = pneg %p398
        %p678 = pneg %p422
        %p679 = pneg %p419
        %p680 = pneg %p443
        %p681 = pneg %p440
        %s682 = smul.u32 2, %s34
        %p683 = scmp.lt.s32.totalorder %s682, 3
        %s684 = scalar_select %p683, %s682, 3
        %s685 = smul.addr %s684, 8
        %s686 = scalar_lea.vmem %s2, %s685
        %s687 = smul.u32 2, %s34
        %s688 = smul.u32 2, %s34
        %p689 = scmp.lt.s32.totalorder %s688, 3
        %s690 = scalar_select %p689, %s688, 3
        %s691 = smul.addr %s690, 8
        %s692 = scalar_lea.vmem %s3, %s691
        %s693 = smul.u32 2, %s34
        %s694 = smul.u32 2, %s34
        %p695 = scmp.lt.s32.totalorder %s694, 3
        %s696 = scalar_select %p695, %s694, 3
        %s697 = smul.addr %s696, 8
        %s698 = scalar_lea.vmem %s4, %s697
        %s699 = smul.u32 2, %s34
        %p701 = scmp.eq.s32.totalorder %s34, 0
        // Predicated region
        $region121: #{tpu_custom_call.1} parent=91 // pred_check
          %p702 = pneg %p701
        $region122: #{tpu_custom_call.1} parent=91 // pred_check_branch
          %704 = sbr.rel (%p702) target = $region124
        $region123: #{tpu_custom_call.1} parent=91 // pred_region
          %v705 = vld [vmem:[%s0] sm:$0xff]
          %v706 = vld [vmem:[%s0 + $0x8] sm:$0xff]
          %v707 = vld [vmem:[%s0 + $0x10] sm:$0xff]
          %v708 = vld [vmem:[%s0 + $0x18] sm:$0xff]
          %v709 = vld [vmem:[%s0 + $0x20] sm:$0xff]
          %v710 = vld [vmem:[%s0 + $0x28] sm:$0xff]
          %v711 = vld [vmem:[%s0 + $0x30] sm:$0xff]
          %v712 = vld [vmem:[%s0 + $0x38] sm:$0xff]
          %v713 = vld [vmem:[%s0 + $0x40] sm:$0xff]
          %v714 = vld [vmem:[%s0 + $0x48] sm:$0xff]
          %v715 = vld [vmem:[%s0 + $0x50] sm:$0xff]
          %v716 = vld [vmem:[%s0 + $0x58] sm:$0xff]
          %v717 = vld [vmem:[%s0 + $0x60] sm:$0xff]
          %v718 = vld [vmem:[%s0 + $0x68] sm:$0xff]
          %v719 = vld [vmem:[%s0 + $0x70] sm:$0xff]
          %v720 = vld [vmem:[%s0 + $0x78] sm:$0xff]
          %v721 = vpack.c.bf16 %v706, %v705
          %v722 = vpack.c.bf16 %v708, %v707
          %v723 = vpack.c.bf16 %v710, %v709
          %v724 = vpack.c.bf16 %v712, %v711
          %v725 = vpack.c.bf16 %v714, %v713
          %v726 = vpack.c.bf16 %v716, %v715
          %v727 = vpack.c.bf16 %v718, %v717
          %v728 = vpack.c.bf16 %v720, %v719
          %v729 = vld [vmem:[#allocation10] sm:$0x3]
          %v730 = vld [vmem:[#allocation12] sm:$0x1]
          %v732 = vlaneseq
          %v733 = vshrl.u32 %v732, 7
          %v734 = vsub.s32 0, %v733
          %v735 = vrot.slane %v730, %v734
          %vm737 = vcmask 31744
          %v739 = vsel %vm737, %v721, 0
          %v742 = vsel %vm737, %v722, 0
          %v745 = vsel %vm737, %v723, 0
          %v748 = vsel %vm737, %v724, 0
          %v751 = vsel %vm737, %v725, 0
          %v754 = vsel %vm737, %v726, 0
          %v757 = vsel %vm737, %v727, 0
          %v760 = vsel %vm737, %v728, 0
          %vm762 = vcmask 1041408
          %v764 = vsel %vm762, %v729, 0
          %766 = vmatprep.subr.bf16.mxu0 0
          %767 = vmatpush1.bf16.msra.mxu0 0
          %768 = vmatprep.subr.bf16.mxu0 0
          %769 = vmatpush1.bf16.msra.mxu0 0
          %770 = vmatprep.subr.bf16.mxu0 0
          %771 = vmatpush1.bf16.msra.mxu0 0
          %772 = vmatprep.subr.bf16.mxu0 0
          %773 = vmatpush1.bf16.msra.mxu0 0
          %774 = vmatprep.subr.bf16.mxu0 0
          %775 = vmatpush1.bf16.msra.mxu0 0
          %776 = vmatprep.subr.bf16.mxu0 0
          %777 = vmatpush1.bf16.msra.mxu0 0
          %778 = vmatprep.subr.bf16.mxu0 0
          %779 = vmatpush1.bf16.msra.mxu0 0
          %780 = vmatprep.subr.bf16.mxu0 0
          %781 = vmatpush1.bf16.msra.mxu0 %v764
          %782 = vmatprep.subr.bf16.mxu0 0
          %783 = vmatpush2.bf16.msra.mxu0 0
          %784 = vmatprep.subr.bf16.mxu0 0
          %785 = vmatpush2.bf16.msra.mxu0 0
          %786 = vmatprep.subr.bf16.mxu0 0
          %787 = vmatpush2.bf16.msra.mxu0 0
          %788 = vmatprep.subr.bf16.mxu0 0
          %789 = vmatpush2.bf16.msra.mxu0 0
          %790 = vmatprep.subr.bf16.mxu0 0
          %791 = vmatpush2.bf16.msra.mxu0 0
          %792 = vmatprep.subr.bf16.mxu0 0
          %793 = vmatpush2.bf16.msra.mxu0 0
          %794 = vmatprep.subr.bf16.mxu0 0
          %795 = vmatpush2.bf16.msra.mxu0 0
          %796 = vmatprep.subr.bf16.mxu0 0
          %797 = vmatpush2.bf16.msra.mxu0 0
          %798 = vmatprep.mubr.bf16.mxu0 0
          %799 = vmatmul.mubr.bf16.gmra.mxu0 %v739
          %v800 = vpop.f32.mrf.mxu0
          %v801 = vadd.f32 %v735, %v800
          %v802 = vpop.f32.mrf.mxu0
          %v803 = vpop.f32.mrf.mxu0
          %v804 = vadd.f32 %v735, %v803
          %v805 = vpop.f32.mrf.mxu0
          %806 = vmatprep.mubr.bf16.mxu0 0
          %807 = vmatmul.mubr.bf16.gmra.mxu0 %v742
          %v808 = vpop.f32.mrf.mxu0
          %v809 = vadd.f32 %v735, %v808
          %v810 = vpop.f32.mrf.mxu0
          %v811 = vpop.f32.mrf.mxu0
          %v812 = vadd.f32 %v735, %v811
          %v813 = vpop.f32.mrf.mxu0
          %814 = vmatprep.mubr.bf16.mxu0 0
          %815 = vmatmul.mubr.bf16.gmra.mxu0 %v745
          %v816 = vpop.f32.mrf.mxu0
          %v817 = vadd.f32 %v735, %v816
          %v818 = vpop.f32.mrf.mxu0
          %v819 = vpop.f32.mrf.mxu0
          %v820 = vadd.f32 %v735, %v819
          %v821 = vpop.f32.mrf.mxu0
          %822 = vmatprep.mubr.bf16.mxu0 0
          %823 = vmatmul.mubr.bf16.gmra.mxu0 %v748
          %v824 = vpop.f32.mrf.mxu0
          %v825 = vadd.f32 %v735, %v824
          %v826 = vpop.f32.mrf.mxu0
          %v827 = vpop.f32.mrf.mxu0
          %v828 = vadd.f32 %v735, %v827
          %v829 = vpop.f32.mrf.mxu0
          %830 = vmatprep.mubr.bf16.mxu0 0
          %831 = vmatmul.mubr.bf16.gmra.mxu0 %v751
          %v832 = vpop.f32.mrf.mxu0
          %v833 = vadd.f32 %v735, %v832
          %v834 = vpop.f32.mrf.mxu0
          %v835 = vpop.f32.mrf.mxu0
          %v836 = vadd.f32 %v735, %v835
          %v837 = vpop.f32.mrf.mxu0
          %838 = vmatprep.mubr.bf16.mxu0 0
          %839 = vmatmul.mubr.bf16.gmra.mxu0 %v754
          %v840 = vpop.f32.mrf.mxu0
          %v841 = vadd.f32 %v735, %v840
          %v842 = vpop.f32.mrf.mxu0
          %v843 = vpop.f32.mrf.mxu0
          %v844 = vadd.f32 %v735, %v843
          %v845 = vpop.f32.mrf.mxu0
          %846 = vmatprep.mubr.bf16.mxu0 0
          %847 = vmatmul.mubr.bf16.gmra.mxu0 %v757
          %v848 = vpop.f32.mrf.mxu0
          %v849 = vadd.f32 %v735, %v848
          %v850 = vpop.f32.mrf.mxu0
          %v851 = vpop.f32.mrf.mxu0
          %v852 = vadd.f32 %v735, %v851
          %v853 = vpop.f32.mrf.mxu0
          %854 = vmatprep.mubr.bf16.mxu0 0
          %855 = vmatmul.mubr.bf16.gmra.mxu0 %v760
          %v856 = vpop.f32.mrf.mxu0
          %v857 = vadd.f32 %v735, %v856
          %v858 = vpop.f32.mrf.mxu0
          %v859 = vpop.f32.mrf.mxu0
          %v860 = vadd.f32 %v735, %v859
          %v861 = vpop.f32.mrf.mxu0
          %862 = vdwg.mxu0
          %863 = vst [vmem:[#allocation2] sm:$0xff] %v801
          %864 = vst [vmem:[#allocation2 + $0x8] sm:$0xff] %v804
          %865 = vst [vmem:[#allocation2 + $0x10] sm:$0xff] %v809
          %866 = vst [vmem:[#allocation2 + $0x18] sm:$0xff] %v812
          %867 = vst [vmem:[#allocation2 + $0x20] sm:$0xff] %v817
          %868 = vst [vmem:[#allocation2 + $0x28] sm:$0xff] %v820
          %869 = vst [vmem:[#allocation2 + $0x30] sm:$0xff] %v825
          %870 = vst [vmem:[#allocation2 + $0x38] sm:$0xff] %v828
          %871 = vst [vmem:[#allocation2 + $0x40] sm:$0xff] %v833
          %872 = vst [vmem:[#allocation2 + $0x48] sm:$0xff] %v836
          %873 = vst [vmem:[#allocation2 + $0x50] sm:$0xff] %v841
          %874 = vst [vmem:[#allocation2 + $0x58] sm:$0xff] %v844
          %875 = vst [vmem:[#allocation2 + $0x60] sm:$0xff] %v849
          %876 = vst [vmem:[#allocation2 + $0x68] sm:$0xff] %v852
          %877 = vst [vmem:[#allocation2 + $0x70] sm:$0xff] %v857
          %878 = vst [vmem:[#allocation2 + $0x78] sm:$0xff] %v860
          %v879 = vpack.c.bf16 %v804, %v801
          %v880 = vpack.c.bf16 %v812, %v809
          %v881 = vpack.c.bf16 %v820, %v817
          %v882 = vpack.c.bf16 %v828, %v825
          %v883 = vpack.c.bf16 %v836, %v833
          %v884 = vpack.c.bf16 %v844, %v841
          %v885 = vpack.c.bf16 %v852, %v849
          %v886 = vpack.c.bf16 %v860, %v857
          %v887 = vld [vmem:[%s9] sm:$0xf]
          %v888 = vld [vmem:[%s9 + $0x4] sm:$0xf]
          %v889 = vld [vmem:[%s9 + $0x8] sm:$0xf]
          %v890 = vld [vmem:[%s9 + $0xc] sm:$0xf]
          %v891 = vld [vmem:[%s9 + $0x10] sm:$0xf]
          %v892 = vld [vmem:[%s9 + $0x14] sm:$0xf]
          %v893 = vld [vmem:[%s9 + $0x18] sm:$0xf]
          %v894 = vld [vmem:[%s9 + $0x1c] sm:$0xf]
          %v895 = vld [vmem:[%s9 + $0x20] sm:$0xf]
          %v896 = vld [vmem:[%s9 + $0x24] sm:$0xf]
          %v897 = vld [vmem:[%s9 + $0x28] sm:$0xf]
          %v898 = vld [vmem:[%s9 + $0x2c] sm:$0xf]
          %v899 = vld [vmem:[%s9 + $0x30] sm:$0xf]
          %v900 = vld [vmem:[%s9 + $0x34] sm:$0xf]
          %v901 = vld [vmem:[%s9 + $0x38] sm:$0xf]
          %v902 = vld [vmem:[%s9 + $0x3c] sm:$0xf]
          %v919 = vunpack.c.l.b16 %v887
          %v920 = vunpack.c.l.b16 %v888
          %v921 = vunpack.c.l.b16 %v889
          %v922 = vunpack.c.l.b16 %v890
          %v923 = vunpack.c.l.b16 %v891
          %v924 = vunpack.c.l.b16 %v892
          %v925 = vunpack.c.l.b16 %v893
          %v926 = vunpack.c.l.b16 %v894
          %v927 = vunpack.c.l.b16 %v895
          %v928 = vunpack.c.l.b16 %v896
          %v929 = vunpack.c.l.b16 %v897
          %v930 = vunpack.c.l.b16 %v898
          %v931 = vunpack.c.l.b16 %v899
          %v932 = vunpack.c.l.b16 %v900
          %v933 = vunpack.c.l.b16 %v901
          %v934 = vunpack.c.l.b16 %v902
          %v935 = vpack.c.b16 %v920, %v919
          %v936 = vpack.c.b16 %v922, %v921
          %v937 = vpack.c.b16 %v924, %v923
          %v938 = vpack.c.b16 %v926, %v925
          %v939 = vpack.c.b16 %v928, %v927
          %v940 = vpack.c.b16 %v930, %v929
          %v941 = vpack.c.b16 %v932, %v931
          %v942 = vpack.c.b16 %v934, %v933
          %951 = vmatprep.subr.bf16.mxu0 0
          %952 = vmatpush1.bf16.msra.mxu0 %v942
          %953 = vmatprep.subr.bf16.mxu0 0
          %954 = vmatpush1.bf16.msra.mxu0 %v941
          %955 = vmatprep.subr.bf16.mxu0 0
          %956 = vmatpush1.bf16.msra.mxu0 %v940
          %957 = vmatprep.subr.bf16.mxu0 0
          %958 = vmatpush1.bf16.msra.mxu0 %v939
          %959 = vmatprep.subr.bf16.mxu0 0
          %960 = vmatpush1.bf16.msra.mxu0 %v938
          %961 = vmatprep.subr.bf16.mxu0 0
          %962 = vmatpush1.bf16.msra.mxu0 %v937
          %963 = vmatprep.subr.bf16.mxu0 0
          %964 = vmatpush1.bf16.msra.mxu0 %v936
          %965 = vmatprep.subr.bf16.mxu0 0
          %966 = vmatpush1.bf16.msra.mxu0 %v935
          %967 = vmatprep.subr.bf16.mxu0 0
          %968 = vmatpush2.bf16.msra.mxu0 0
          %969 = vmatprep.subr.bf16.mxu0 0
          %970 = vmatpush2.bf16.msra.mxu0 0
          %971 = vmatprep.subr.bf16.mxu0 0
          %972 = vmatpush2.bf16.msra.mxu0 0
          %973 = vmatprep.subr.bf16.mxu0 0
          %974 = vmatpush2.bf16.msra.mxu0 0
          %975 = vmatprep.subr.bf16.mxu0 0
          %976 = vmatpush2.bf16.msra.mxu0 0
          %977 = vmatprep.subr.bf16.mxu0 0
          %978 = vmatpush2.bf16.msra.mxu0 0
          %979 = vmatprep.subr.bf16.mxu0 0
          %980 = vmatpush2.bf16.msra.mxu0 0
          %981 = vmatprep.subr.bf16.mxu0 0
          %982 = vmatpush2.bf16.msra.mxu0 0
          %983 = vmatprep.mubr.bf16.mxu0 0
          %984 = vmatmul.mubr.bf16.gmra.mxu0 %v879
          %v985 = vpop.f32.mrf.mxu0
          %v986 = vadd.f32 0.0, %v985
          %v987 = vpop.f32.mrf.mxu0
          %v988 = vpop.f32.mrf.mxu0
          %v989 = vadd.f32 0.0, %v988
          %v990 = vpop.f32.mrf.mxu0
          %991 = vmatprep.mubr.bf16.mxu0 0
          %992 = vmatmul.mubr.bf16.gmra.mxu0 %v880
          %v993 = vpop.f32.mrf.mxu0
          %v994 = vadd.f32 0.0, %v993
          %v995 = vpop.f32.mrf.mxu0
          %v996 = vpop.f32.mrf.mxu0
          %v997 = vadd.f32 0.0, %v996
          %v998 = vpop.f32.mrf.mxu0
          %999 = vmatprep.mubr.bf16.mxu0 0
          %1000 = vmatmul.mubr.bf16.gmra.mxu0 %v881
          %v1001 = vpop.f32.mrf.mxu0
          %v1002 = vadd.f32 0.0, %v1001
          %v1003 = vpop.f32.mrf.mxu0
          %v1004 = vpop.f32.mrf.mxu0
          %v1005 = vadd.f32 0.0, %v1004
          %v1006 = vpop.f32.mrf.mxu0
          %1007 = vmatprep.mubr.bf16.mxu0 0
          %1008 = vmatmul.mubr.bf16.gmra.mxu0 %v882
          %v1009 = vpop.f32.mrf.mxu0
          %v1010 = vadd.f32 0.0, %v1009
          %v1011 = vpop.f32.mrf.mxu0
          %v1012 = vpop.f32.mrf.mxu0
          %v1013 = vadd.f32 0.0, %v1012
          %v1014 = vpop.f32.mrf.mxu0
          %1015 = vmatprep.mubr.bf16.mxu0 0
          %1016 = vmatmul.mubr.bf16.gmra.mxu0 %v883
          %v1017 = vpop.f32.mrf.mxu0
          %v1018 = vadd.f32 0.0, %v1017
          %v1019 = vpop.f32.mrf.mxu0
          %v1020 = vpop.f32.mrf.mxu0
          %v1021 = vadd.f32 0.0, %v1020
          %v1022 = vpop.f32.mrf.mxu0
          %1023 = vmatprep.mubr.bf16.mxu0 0
          %1024 = vmatmul.mubr.bf16.gmra.mxu0 %v884
          %v1025 = vpop.f32.mrf.mxu0
          %v1026 = vadd.f32 0.0, %v1025
          %v1027 = vpop.f32.mrf.mxu0
          %v1028 = vpop.f32.mrf.mxu0
          %v1029 = vadd.f32 0.0, %v1028
          %v1030 = vpop.f32.mrf.mxu0
          %1031 = vmatprep.mubr.bf16.mxu0 0
          %1032 = vmatmul.mubr.bf16.gmra.mxu0 %v885
          %v1033 = vpop.f32.mrf.mxu0
          %v1034 = vadd.f32 0.0, %v1033
          %v1035 = vpop.f32.mrf.mxu0
          %v1036 = vpop.f32.mrf.mxu0
          %v1037 = vadd.f32 0.0, %v1036
          %v1038 = vpop.f32.mrf.mxu0
          %1039 = vmatprep.mubr.bf16.mxu0 0
          %1040 = vmatmul.mubr.bf16.gmra.mxu0 %v886
          %v1041 = vpop.f32.mrf.mxu0
          %v1042 = vadd.f32 0.0, %v1041
          %v1043 = vpop.f32.mrf.mxu0
          %v1044 = vpop.f32.mrf.mxu0
          %v1045 = vadd.f32 0.0, %v1044
          %v1046 = vpop.f32.mrf.mxu0
          %1047 = vdwg.mxu0
          %v1048 = vpack.c.bf16 %v989, %v986
          %v1049 = vpack.c.bf16 %v997, %v994
          %v1050 = vpack.c.bf16 %v1005, %v1002
          %v1051 = vpack.c.bf16 %v1013, %v1010
          %v1052 = vpack.c.bf16 %v1021, %v1018
          %v1053 = vpack.c.bf16 %v1029, %v1026
          %v1054 = vpack.c.bf16 %v1037, %v1034
          %v1055 = vpack.c.bf16 %v1045, %v1042
          %v1064 = vunpack.c.l.b16 %v1048
          %v1065 = vunpack.c.h.b16 %v1048
          %v1066 = vunpack.c.l.b16 %v1049
          %v1067 = vunpack.c.h.b16 %v1049
          %v1068 = vunpack.c.l.b16 %v1050
          %v1069 = vunpack.c.h.b16 %v1050
          %v1070 = vunpack.c.l.b16 %v1051
          %v1071 = vunpack.c.h.b16 %v1051
          %v1072 = vunpack.c.l.b16 %v1052
          %v1073 = vunpack.c.h.b16 %v1052
          %v1074 = vunpack.c.l.b16 %v1053
          %v1075 = vunpack.c.h.b16 %v1053
          %v1076 = vunpack.c.l.b16 %v1054
          %v1077 = vunpack.c.h.b16 %v1054
          %v1078 = vunpack.c.l.b16 %v1055
          %v1079 = vunpack.c.h.b16 %v1055
          %v1080 = vpack.c.b16 %v1064, %v1064
          %v1081 = vpack.c.b16 %v1065, %v1065
          %v1082 = vpack.c.b16 %v1066, %v1066
          %v1083 = vpack.c.b16 %v1067, %v1067
          %v1084 = vpack.c.b16 %v1068, %v1068
          %v1085 = vpack.c.b16 %v1069, %v1069
          %v1086 = vpack.c.b16 %v1070, %v1070
          %v1087 = vpack.c.b16 %v1071, %v1071
          %v1088 = vpack.c.b16 %v1072, %v1072
          %v1089 = vpack.c.b16 %v1073, %v1073
          %v1090 = vpack.c.b16 %v1074, %v1074
          %v1091 = vpack.c.b16 %v1075, %v1075
          %v1092 = vpack.c.b16 %v1076, %v1076
          %v1093 = vpack.c.b16 %v1077, %v1077
          %v1094 = vpack.c.b16 %v1078, %v1078
          %v1095 = vpack.c.b16 %v1079, %v1079
          %1112 = vst [vmem:[#allocation3] sm:$0xf] %v1080
          %1113 = vst [vmem:[#allocation3 + $0x4] sm:$0xf] %v1081
          %1114 = vst [vmem:[#allocation3 + $0x8] sm:$0xf] %v1082
          %1115 = vst [vmem:[#allocation3 + $0xc] sm:$0xf] %v1083
          %1116 = vst [vmem:[#allocation3 + $0x10] sm:$0xf] %v1084
          %1117 = vst [vmem:[#allocation3 + $0x14] sm:$0xf] %v1085
          %1118 = vst [vmem:[#allocation3 + $0x18] sm:$0xf] %v1086
          %1119 = vst [vmem:[#allocation3 + $0x1c] sm:$0xf] %v1087
          %1120 = vst [vmem:[#allocation3 + $0x20] sm:$0xf] %v1088
          %1121 = vst [vmem:[#allocation3 + $0x24] sm:$0xf] %v1089
          %1122 = vst [vmem:[#allocation3 + $0x28] sm:$0xf] %v1090
          %1123 = vst [vmem:[#allocation3 + $0x2c] sm:$0xf] %v1091
          %1124 = vst [vmem:[#allocation3 + $0x30] sm:$0xf] %v1092
          %1125 = vst [vmem:[#allocation3 + $0x34] sm:$0xf] %v1093
          %1126 = vst [vmem:[#allocation3 + $0x38] sm:$0xf] %v1094
          %1127 = vst [vmem:[#allocation3 + $0x3c] sm:$0xf] %v1095
          %v1128 = vld [vmem:[%s10] sm:$0xf]
          %v1129 = vld [vmem:[%s10 + $0x4] sm:$0xf]
          %v1130 = vld [vmem:[%s10 + $0x8] sm:$0xf]
          %v1131 = vld [vmem:[%s10 + $0xc] sm:$0xf]
          %v1132 = vld [vmem:[%s10 + $0x10] sm:$0xf]
          %v1133 = vld [vmem:[%s10 + $0x14] sm:$0xf]
          %v1134 = vld [vmem:[%s10 + $0x18] sm:$0xf]
          %v1135 = vld [vmem:[%s10 + $0x1c] sm:$0xf]
          %v1136 = vld [vmem:[%s10 + $0x20] sm:$0xf]
          %v1137 = vld [vmem:[%s10 + $0x24] sm:$0xf]
          %v1138 = vld [vmem:[%s10 + $0x28] sm:$0xf]
          %v1139 = vld [vmem:[%s10 + $0x2c] sm:$0xf]
          %v1140 = vld [vmem:[%s10 + $0x30] sm:$0xf]
          %v1141 = vld [vmem:[%s10 + $0x34] sm:$0xf]
          %v1142 = vld [vmem:[%s10 + $0x38] sm:$0xf]
          %v1143 = vld [vmem:[%s10 + $0x3c] sm:$0xf]
          %v1160 = vunpack.c.l.b16 %v1128
          %v1161 = vunpack.c.l.b16 %v1129
          %v1162 = vunpack.c.l.b16 %v1130
          %v1163 = vunpack.c.l.b16 %v1131
          %v1164 = vunpack.c.l.b16 %v1132
          %v1165 = vunpack.c.l.b16 %v1133
          %v1166 = vunpack.c.l.b16 %v1134
          %v1167 = vunpack.c.l.b16 %v1135
          %v1168 = vunpack.c.l.b16 %v1136
          %v1169 = vunpack.c.l.b16 %v1137
          %v1170 = vunpack.c.l.b16 %v1138
          %v1171 = vunpack.c.l.b16 %v1139
          %v1172 = vunpack.c.l.b16 %v1140
          %v1173 = vunpack.c.l.b16 %v1141
          %v1174 = vunpack.c.l.b16 %v1142
          %v1175 = vunpack.c.l.b16 %v1143
          %v1176 = vpack.c.b16 %v1161, %v1160
          %v1177 = vpack.c.b16 %v1163, %v1162
          %v1178 = vpack.c.b16 %v1165, %v1164
          %v1179 = vpack.c.b16 %v1167, %v1166
          %v1180 = vpack.c.b16 %v1169, %v1168
          %v1181 = vpack.c.b16 %v1171, %v1170
          %v1182 = vpack.c.b16 %v1173, %v1172
          %v1183 = vpack.c.b16 %v1175, %v1174
          %1192 = vmatprep.subr.bf16.mxu0 0
          %1193 = vmatpush1.bf16.msra.mxu0 %v1183
          %1194 = vmatprep.subr.bf16.mxu0 0
          %1195 = vmatpush1.bf16.msra.mxu0 %v1182
          %1196 = vmatprep.subr.bf16.mxu0 0
          %1197 = vmatpush1.bf16.msra.mxu0 %v1181
          %1198 = vmatprep.subr.bf16.mxu0 0
          %1199 = vmatpush1.bf16.msra.mxu0 %v1180
          %1200 = vmatprep.subr.bf16.mxu0 0
          %1201 = vmatpush1.bf16.msra.mxu0 %v1179
          %1202 = vmatprep.subr.bf16.mxu0 0
          %1203 = vmatpush1.bf16.msra.mxu0 %v1178
          %1204 = vmatprep.subr.bf16.mxu0 0
          %1205 = vmatpush1.bf16.msra.mxu0 %v1177
          %1206 = vmatprep.subr.bf16.mxu0 0
          %1207 = vmatpush1.bf16.msra.mxu0 %v1176
          %1208 = vmatprep.subr.bf16.mxu0 0
          %1209 = vmatpush2.bf16.msra.mxu0 0
          %1210 = vmatprep.subr.bf16.mxu0 0
          %1211 = vmatpush2.bf16.msra.mxu0 0
          %1212 = vmatprep.subr.bf16.mxu0 0
          %1213 = vmatpush2.bf16.msra.mxu0 0
          %1214 = vmatprep.subr.bf16.mxu0 0
          %1215 = vmatpush2.bf16.msra.mxu0 0
          %1216 = vmatprep.subr.bf16.mxu0 0
          %1217 = vmatpush2.bf16.msra.mxu0 0
          %1218 = vmatprep.subr.bf16.mxu0 0
          %1219 = vmatpush2.bf16.msra.mxu0 0
          %1220 = vmatprep.subr.bf16.mxu0 0
          %1221 = vmatpush2.bf16.msra.mxu0 0
          %1222 = vmatprep.subr.bf16.mxu0 0
          %1223 = vmatpush2.bf16.msra.mxu0 0
          %1224 = vmatprep.mubr.bf16.mxu0 0
          %1225 = vmatmul.mubr.bf16.gmra.mxu0 %v879
          %v1226 = vpop.f32.mrf.mxu0
          %v1227 = vadd.f32 0.0, %v1226
          %v1228 = vpop.f32.mrf.mxu0
          %v1229 = vpop.f32.mrf.mxu0
          %v1230 = vadd.f32 0.0, %v1229
          %v1231 = vpop.f32.mrf.mxu0
          %1232 = vmatprep.mubr.bf16.mxu0 0
          %1233 = vmatmul.mubr.bf16.gmra.mxu0 %v880
          %v1234 = vpop.f32.mrf.mxu0
          %v1235 = vadd.f32 0.0, %v1234
          %v1236 = vpop.f32.mrf.mxu0
          %v1237 = vpop.f32.mrf.mxu0
          %v1238 = vadd.f32 0.0, %v1237
          %v1239 = vpop.f32.mrf.mxu0
          %1240 = vmatprep.mubr.bf16.mxu0 0
          %1241 = vmatmul.mubr.bf16.gmra.mxu0 %v881
          %v1242 = vpop.f32.mrf.mxu0
          %v1243 = vadd.f32 0.0, %v1242
          %v1244 = vpop.f32.mrf.mxu0
          %v1245 = vpop.f32.mrf.mxu0
          %v1246 = vadd.f32 0.0, %v1245
          %v1247 = vpop.f32.mrf.mxu0
          %1248 = vmatprep.mubr.bf16.mxu0 0
          %1249 = vmatmul.mubr.bf16.gmra.mxu0 %v882
          %v1250 = vpop.f32.mrf.mxu0
          %v1251 = vadd.f32 0.0, %v1250
          %v1252 = vpop.f32.mrf.mxu0
          %v1253 = vpop.f32.mrf.mxu0
          %v1254 = vadd.f32 0.0, %v1253
          %v1255 = vpop.f32.mrf.mxu0
          %1256 = vmatprep.mubr.bf16.mxu0 0
          %1257 = vmatmul.mubr.bf16.gmra.mxu0 %v883
          %v1258 = vpop.f32.mrf.mxu0
          %v1259 = vadd.f32 0.0, %v1258
          %v1260 = vpop.f32.mrf.mxu0
          %v1261 = vpop.f32.mrf.mxu0
          %v1262 = vadd.f32 0.0, %v1261
          %v1263 = vpop.f32.mrf.mxu0
          %1264 = vmatprep.mubr.bf16.mxu0 0
          %1265 = vmatmul.mubr.bf16.gmra.mxu0 %v884
          %v1266 = vpop.f32.mrf.mxu0
          %v1267 = vadd.f32 0.0, %v1266
          %v1268 = vpop.f32.mrf.mxu0
          %v1269 = vpop.f32.mrf.mxu0
          %v1270 = vadd.f32 0.0, %v1269
          %v1271 = vpop.f32.mrf.mxu0
          %1272 = vmatprep.mubr.bf16.mxu0 0
          %1273 = vmatmul.mubr.bf16.gmra.mxu0 %v885
          %v1274 = vpop.f32.mrf.mxu0
          %v1275 = vadd.f32 0.0, %v1274
          %v1276 = vpop.f32.mrf.mxu0
          %v1277 = vpop.f32.mrf.mxu0
          %v1278 = vadd.f32 0.0, %v1277
          %v1279 = vpop.f32.mrf.mxu0
          %1280 = vmatprep.mubr.bf16.mxu0 0
          %1281 = vmatmul.mubr.bf16.gmra.mxu0 %v886
          %v1282 = vpop.f32.mrf.mxu0
          %v1283 = vadd.f32 0.0, %v1282
          %v1284 = vpop.f32.mrf.mxu0
          %v1285 = vpop.f32.mrf.mxu0
          %v1286 = vadd.f32 0.0, %v1285
          %v1287 = vpop.f32.mrf.mxu0
          %1288 = vdwg.mxu0
          %v1289 = vpack.c.bf16 %v1230, %v1227
          %v1290 = vpack.c.bf16 %v1238, %v1235
          %v1291 = vpack.c.bf16 %v1246, %v1243
          %v1292 = vpack.c.bf16 %v1254, %v1251
          %v1293 = vpack.c.bf16 %v1262, %v1259
          %v1294 = vpack.c.bf16 %v1270, %v1267
          %v1295 = vpack.c.bf16 %v1278, %v1275
          %v1296 = vpack.c.bf16 %v1286, %v1283
          %v1305 = vunpack.c.l.b16 %v1289
          %v1306 = vunpack.c.h.b16 %v1289
          %v1307 = vunpack.c.l.b16 %v1290
          %v1308 = vunpack.c.h.b16 %v1290
          %v1309 = vunpack.c.l.b16 %v1291
          %v1310 = vunpack.c.h.b16 %v1291
          %v1311 = vunpack.c.l.b16 %v1292
          %v1312 = vunpack.c.h.b16 %v1292
          %v1313 = vunpack.c.l.b16 %v1293
          %v1314 = vunpack.c.h.b16 %v1293
          %v1315 = vunpack.c.l.b16 %v1294
          %v1316 = vunpack.c.h.b16 %v1294
          %v1317 = vunpack.c.l.b16 %v1295
          %v1318 = vunpack.c.h.b16 %v1295
          %v1319 = vunpack.c.l.b16 %v1296
          %v1320 = vunpack.c.h.b16 %v1296
          %v1321 = vpack.c.b16 %v1305, %v1305
          %v1322 = vpack.c.b16 %v1306, %v1306
          %v1323 = vpack.c.b16 %v1307, %v1307
          %v1324 = vpack.c.b16 %v1308, %v1308
          %v1325 = vpack.c.b16 %v1309, %v1309
          %v1326 = vpack.c.b16 %v1310, %v1310
          %v1327 = vpack.c.b16 %v1311, %v1311
          %v1328 = vpack.c.b16 %v1312, %v1312
          %v1329 = vpack.c.b16 %v1313, %v1313
          %v1330 = vpack.c.b16 %v1314, %v1314
          %v1331 = vpack.c.b16 %v1315, %v1315
          %v1332 = vpack.c.b16 %v1316, %v1316
          %v1333 = vpack.c.b16 %v1317, %v1317
          %v1334 = vpack.c.b16 %v1318, %v1318
          %v1335 = vpack.c.b16 %v1319, %v1319
          %v1336 = vpack.c.b16 %v1320, %v1320
          %1353 = vst [vmem:[#allocation4] sm:$0xf] %v1321
          %1354 = vst [vmem:[#allocation4 + $0x4] sm:$0xf] %v1322
          %1355 = vst [vmem:[#allocation4 + $0x8] sm:$0xf] %v1323
          %1356 = vst [vmem:[#allocation4 + $0xc] sm:$0xf] %v1324
          %1357 = vst [vmem:[#allocation4 + $0x10] sm:$0xf] %v1325
          %1358 = vst [vmem:[#allocation4 + $0x14] sm:$0xf] %v1326
          %1359 = vst [vmem:[#allocation4 + $0x18] sm:$0xf] %v1327
          %1360 = vst [vmem:[#allocation4 + $0x1c] sm:$0xf] %v1328
          %1361 = vst [vmem:[#allocation4 + $0x20] sm:$0xf] %v1329
          %1362 = vst [vmem:[#allocation4 + $0x24] sm:$0xf] %v1330
          %1363 = vst [vmem:[#allocation4 + $0x28] sm:$0xf] %v1331
          %1364 = vst [vmem:[#allocation4 + $0x2c] sm:$0xf] %v1332
          %1365 = vst [vmem:[#allocation4 + $0x30] sm:$0xf] %v1333
          %1366 = vst [vmem:[#allocation4 + $0x34] sm:$0xf] %v1334
          %1367 = vst [vmem:[#allocation4 + $0x38] sm:$0xf] %v1335
          %1368 = vst [vmem:[#allocation4 + $0x3c] sm:$0xf] %v1336
          %1369 = vst [vmem:[#allocation5] sm:$0xff] 0.0
          %1370 = vst [vmem:[#allocation5 + $0x8] sm:$0xff] 0.0
          %1371 = vst [vmem:[#allocation5 + $0x10] sm:$0xff] 0.0
          %1372 = vst [vmem:[#allocation5 + $0x18] sm:$0xff] 0.0
          %1373 = vst [vmem:[#allocation5 + $0x20] sm:$0xff] 0.0
          %1374 = vst [vmem:[#allocation5 + $0x28] sm:$0xff] 0.0
          %1375 = vst [vmem:[#allocation5 + $0x30] sm:$0xff] 0.0
          %1376 = vst [vmem:[#allocation5 + $0x38] sm:$0xff] 0.0
          %1377 = vst [vmem:[#allocation5 + $0x40] sm:$0xff] 0.0
          %1378 = vst [vmem:[#allocation5 + $0x48] sm:$0xff] 0.0
          %1379 = vst [vmem:[#allocation5 + $0x50] sm:$0xff] 0.0
          %1380 = vst [vmem:[#allocation5 + $0x58] sm:$0xff] 0.0
          %1381 = vst [vmem:[#allocation5 + $0x60] sm:$0xff] 0.0
          %1382 = vst [vmem:[#allocation5 + $0x68] sm:$0xff] 0.0
          %1383 = vst [vmem:[#allocation5 + $0x70] sm:$0xff] 0.0
          %1384 = vst [vmem:[#allocation5 + $0x78] sm:$0xff] 0.0
        $region124: #{tpu_custom_call.1} parent=91 // pred_fallthru
          _
        %v1385 = vlaneseq
        %v1386 = vand.u32 %v1385, 127
        %v1387 = vld [vmem:[%s692] sm:$0xff]
        %v1388 = vld [vmem:[%s692 + $0x8] sm:$0xff]
        %1389 = vset.pattern.permute.xlu0 0
        %1390 = vperm.xlu0 %1389, %v1387
        %v1391 = vpop.permute.xlu0 %1390
        %1392 = vset.pattern.permute.xlu0 0
        %1393 = vperm.xlu0 %1392, %v1388
        %v1394 = vpop.permute.xlu0 %1393
        %vm1395 = vcmp.eq.s32.totalorder %v1391, %v1386
        %vm1396 = vcmp.eq.s32.totalorder %v1394, %v1386
        %v1397 = vsel %vm1395, 1, 0
        %v1398 = vsel %vm1396, 1, 0
        %v1399 = vcvt.s32.f32 %v1397
        %v1400 = vcvt.s32.f32 %v1398
        %v1401 = vpack.c.bf16 %v1400, %v1399
        %v1402 = vld [vmem:[%s698] sm:$0xff]
        %v1403 = vld [vmem:[%s698 + $0x8] sm:$0xff]
        %1404 = vset.pattern.permute.xlu0 0
        %1405 = vperm.xlu0 %1404, %v1402
        %v1406 = vpop.permute.xlu0 %1405
        %1407 = vset.pattern.permute.xlu0 0
        %1408 = vperm.xlu0 %1407, %v1403
        %v1409 = vpop.permute.xlu0 %1408
        %vm1410 = vcmp.eq.s32.totalorder %v1406, %v1386
        %vm1411 = vcmp.eq.s32.totalorder %v1409, %v1386
        %v1412 = vsel %vm1410, 1, 0
        %v1413 = vsel %vm1411, 1, 0
        %v1414 = vcvt.s32.f32 %v1412
        %v1415 = vcvt.s32.f32 %v1413
        %v1416 = vpack.c.bf16 %v1415, %v1414
        %v1417 = vld [vmem:[#allocation3] sm:$0xf]
        %v1418 = vld [vmem:[#allocation3 + $0x4] sm:$0xf]
        %v1419 = vld [vmem:[#allocation3 + $0x8] sm:$0xf]
        %v1420 = vld [vmem:[#allocation3 + $0xc] sm:$0xf]
        %v1421 = vld [vmem:[#allocation3 + $0x10] sm:$0xf]
        %v1422 = vld [vmem:[#allocation3 + $0x14] sm:$0xf]
        %v1423 = vld [vmem:[#allocation3 + $0x18] sm:$0xf]
        %v1424 = vld [vmem:[#allocation3 + $0x1c] sm:$0xf]
        %v1425 = vld [vmem:[#allocation3 + $0x20] sm:$0xf]
        %v1426 = vld [vmem:[#allocation3 + $0x24] sm:$0xf]
        %v1427 = vld [vmem:[#allocation3 + $0x28] sm:$0xf]
        %v1428 = vld [vmem:[#allocation3 + $0x2c] sm:$0xf]
        %v1429 = vld [vmem:[#allocation3 + $0x30] sm:$0xf]
        %v1430 = vld [vmem:[#allocation3 + $0x34] sm:$0xf]
        %v1431 = vld [vmem:[#allocation3 + $0x38] sm:$0xf]
        %v1432 = vld [vmem:[#allocation3 + $0x3c] sm:$0xf]
        %v1433 = vld [vmem:[#allocation4] sm:$0xf]
        %v1434 = vld [vmem:[#allocation4 + $0x4] sm:$0xf]
        %v1435 = vld [vmem:[#allocation4 + $0x8] sm:$0xf]
        %v1436 = vld [vmem:[#allocation4 + $0xc] sm:$0xf]
        %v1437 = vld [vmem:[#allocation4 + $0x10] sm:$0xf]
        %v1438 = vld [vmem:[#allocation4 + $0x14] sm:$0xf]
        %v1439 = vld [vmem:[#allocation4 + $0x18] sm:$0xf]
        %v1440 = vld [vmem:[#allocation4 + $0x1c] sm:$0xf]
        %v1441 = vld [vmem:[#allocation4 + $0x20] sm:$0xf]
        %v1442 = vld [vmem:[#allocation4 + $0x24] sm:$0xf]
        %v1443 = vld [vmem:[#allocation4 + $0x28] sm:$0xf]
        %v1444 = vld [vmem:[#allocation4 + $0x2c] sm:$0xf]
        %v1445 = vld [vmem:[#allocation4 + $0x30] sm:$0xf]
        %v1446 = vld [vmem:[#allocation4 + $0x34] sm:$0xf]
        %v1447 = vld [vmem:[#allocation4 + $0x38] sm:$0xf]
        %v1448 = vld [vmem:[#allocation4 + $0x3c] sm:$0xf]
        %v1465 = vunpack.c.l.b16 %v1433
        %v1466 = vunpack.c.l.b16 %v1434
        %v1467 = vunpack.c.l.b16 %v1435
        %v1468 = vunpack.c.l.b16 %v1436
        %v1469 = vunpack.c.l.b16 %v1437
        %v1470 = vunpack.c.l.b16 %v1438
        %v1471 = vunpack.c.l.b16 %v1439
        %v1472 = vunpack.c.l.b16 %v1440
        %v1473 = vunpack.c.l.b16 %v1441
        %v1474 = vunpack.c.l.b16 %v1442
        %v1475 = vunpack.c.l.b16 %v1443
        %v1476 = vunpack.c.l.b16 %v1444
        %v1477 = vunpack.c.l.b16 %v1445
        %v1478 = vunpack.c.l.b16 %v1446
        %v1479 = vunpack.c.l.b16 %v1447
        %v1480 = vunpack.c.l.b16 %v1448
        %v1481 = vpack.c.b16 %v1466, %v1465
        %v1482 = vpack.c.b16 %v1468, %v1467
        %v1483 = vpack.c.b16 %v1470, %v1469
        %v1484 = vpack.c.b16 %v1472, %v1471
        %v1485 = vpack.c.b16 %v1474, %v1473
        %v1486 = vpack.c.b16 %v1476, %v1475
        %v1487 = vpack.c.b16 %v1478, %v1477
        %v1488 = vpack.c.b16 %v1480, %v1479
        %1497 = vmatprep.subr.bf16.mxu0 0
        %1498 = vmatpush1.bf16.msra.mxu0 %v1488
        %1499 = vmatprep.subr.bf16.mxu0 0
        %1500 = vmatpush1.bf16.msra.mxu0 %v1487
        %1501 = vmatprep.subr.bf16.mxu0 0
        %1502 = vmatpush1.bf16.msra.mxu0 %v1486
        %1503 = vmatprep.subr.bf16.mxu0 0
        %1504 = vmatpush1.bf16.msra.mxu0 %v1485
        %1505 = vmatprep.subr.bf16.mxu0 0
        %1506 = vmatpush1.bf16.msra.mxu0 %v1484
        %1507 = vmatprep.subr.bf16.mxu0 0
        %1508 = vmatpush1.bf16.msra.mxu0 %v1483
        %1509 = vmatprep.subr.bf16.mxu0 0
        %1510 = vmatpush1.bf16.msra.mxu0 %v1482
        %1511 = vmatprep.subr.bf16.mxu0 0
        %1512 = vmatpush1.bf16.msra.mxu0 %v1481
        %1513 = vmatprep.subr.bf16.mxu0 0
        %1514 = vmatpush2.bf16.msra.mxu0 0
        %1515 = vmatprep.subr.bf16.mxu0 0
        %1516 = vmatpush2.bf16.msra.mxu0 0
        %1517 = vmatprep.subr.bf16.mxu0 0
        %1518 = vmatpush2.bf16.msra.mxu0 0
        %1519 = vmatprep.subr.bf16.mxu0 0
        %1520 = vmatpush2.bf16.msra.mxu0 0
        %1521 = vmatprep.subr.bf16.mxu0 0
        %1522 = vmatpush2.bf16.msra.mxu0 0
        %1523 = vmatprep.subr.bf16.mxu0 0
        %1524 = vmatpush2.bf16.msra.mxu0 0
        %1525 = vmatprep.subr.bf16.mxu0 0
        %1526 = vmatpush2.bf16.msra.mxu0 0
        %1527 = vmatprep.subr.bf16.mxu0 0
        %1528 = vmatpush2.bf16.msra.mxu0 0
        %1529 = vmatprep.mubr.bf16.mxu0 0
        %1530 = vmatmul.mubr.bf16.gmra.mxu0 %v1416
        %v1531 = vpop.f32.mrf.mxu0
        %v1532 = vadd.f32 0.0, %v1531
        %v1533 = vpop.f32.mrf.mxu0
        %v1534 = vpop.f32.mrf.mxu0
        %v1535 = vadd.f32 0.0, %v1534
        %v1536 = vpop.f32.mrf.mxu0
        %1537 = vdwg.mxu0
        %v1554 = vunpack.c.l.b16 %v1417
        %v1555 = vunpack.c.l.b16 %v1418
        %v1556 = vunpack.c.l.b16 %v1419
        %v1557 = vunpack.c.l.b16 %v1420
        %v1558 = vunpack.c.l.b16 %v1421
        %v1559 = vunpack.c.l.b16 %v1422
        %v1560 = vunpack.c.l.b16 %v1423
        %v1561 = vunpack.c.l.b16 %v1424
        %v1562 = vunpack.c.l.b16 %v1425
        %v1563 = vunpack.c.l.b16 %v1426
        %v1564 = vunpack.c.l.b16 %v1427
        %v1565 = vunpack.c.l.b16 %v1428
        %v1566 = vunpack.c.l.b16 %v1429
        %v1567 = vunpack.c.l.b16 %v1430
        %v1568 = vunpack.c.l.b16 %v1431
        %v1569 = vunpack.c.l.b16 %v1432
        %v1570 = vpack.c.b16 %v1555, %v1554
        %v1571 = vpack.c.b16 %v1557, %v1556
        %v1572 = vpack.c.b16 %v1559, %v1558
        %v1573 = vpack.c.b16 %v1561, %v1560
        %v1574 = vpack.c.b16 %v1563, %v1562
        %v1575 = vpack.c.b16 %v1565, %v1564
        %v1576 = vpack.c.b16 %v1567, %v1566
        %v1577 = vpack.c.b16 %v1569, %v1568
        %1586 = vmatprep.subr.bf16.mxu0 0
        %1587 = vmatpush1.bf16.msra.mxu0 %v1577
        %1588 = vmatprep.subr.bf16.mxu0 0
        %1589 = vmatpush1.bf16.msra.mxu0 %v1576
        %1590 = vmatprep.subr.bf16.mxu0 0
        %1591 = vmatpush1.bf16.msra.mxu0 %v1575
        %1592 = vmatprep.subr.bf16.mxu0 0
        %1593 = vmatpush1.bf16.msra.mxu0 %v1574
        %1594 = vmatprep.subr.bf16.mxu0 0
        %1595 = vmatpush1.bf16.msra.mxu0 %v1573
        %1596 = vmatprep.subr.bf16.mxu0 0
        %1597 = vmatpush1.bf16.msra.mxu0 %v1572
        %1598 = vmatprep.subr.bf16.mxu0 0
        %1599 = vmatpush1.bf16.msra.mxu0 %v1571
        %1600 = vmatprep.subr.bf16.mxu0 0
        %1601 = vmatpush1.bf16.msra.mxu0 %v1570
        %1602 = vmatprep.subr.bf16.mxu0 0
        %1603 = vmatpush2.bf16.msra.mxu0 0
        %1604 = vmatprep.subr.bf16.mxu0 0
        %1605 = vmatpush2.bf16.msra.mxu0 0
        %1606 = vmatprep.subr.bf16.mxu0 0
        %1607 = vmatpush2.bf16.msra.mxu0 0
        %1608 = vmatprep.subr.bf16.mxu0 0
        %1609 = vmatpush2.bf16.msra.mxu0 0
        %1610 = vmatprep.subr.bf16.mxu0 0
        %1611 = vmatpush2.bf16.msra.mxu0 0
        %1612 = vmatprep.subr.bf16.mxu0 0
        %1613 = vmatpush2.bf16.msra.mxu0 0
        %1614 = vmatprep.subr.bf16.mxu0 0
        %1615 = vmatpush2.bf16.msra.mxu0 0
        %1616 = vmatprep.subr.bf16.mxu0 0
        %1617 = vmatpush2.bf16.msra.mxu0 0
        %1618 = vmatprep.mubr.bf16.mxu0 0
        %1619 = vmatmul.mubr.bf16.gmra.mxu0 %v1401
        %v1620 = vpop.f32.mrf.mxu0
        %v1621 = vadd.f32 %v1532, %v1620
        %v1622 = vpop.f32.mrf.mxu0
        %v1623 = vpop.f32.mrf.mxu0
        %v1624 = vadd.f32 %v1535, %v1623
        %v1625 = vpop.f32.mrf.mxu0
        %1626 = vdwg.mxu0
        %v1627 = vld [vmem:[%s686] sm:$0xff]
        %v1628 = vld [vmem:[%s686 + $0x8] sm:$0xff]
        %v1629 = vpack.c.bf16 %v1628, %v1627
        %v1630 = vld [vmem:[#allocation13] sm:$0x7]
        %vm1631 = vcmask 48128
        %v1633 = vsel %vm1631, %v1629, 0
        %vm1635 = vcmask 1042432
        %v1637 = vsel %vm1635, %v1630, 0
        %1639 = vmatprep.subr.bf16.mxu0 0
        %1640 = vmatpush1.bf16.msra.mxu0 0
        %1641 = vmatprep.subr.bf16.mxu0 0
        %1642 = vmatpush1.bf16.msra.mxu0 0
        %1643 = vmatprep.subr.bf16.mxu0 0
        %1644 = vmatpush1.bf16.msra.mxu0 0
        %1645 = vmatprep.subr.bf16.mxu0 0
        %1646 = vmatpush1.bf16.msra.mxu0 0
        %1647 = vmatprep.subr.bf16.mxu0 0
        %1648 = vmatpush1.bf16.msra.mxu0 0
        %1649 = vmatprep.subr.bf16.mxu0 0
        %1650 = vmatpush1.bf16.msra.mxu0 0
        %1651 = vmatprep.subr.bf16.mxu0 0
        %1652 = vmatpush1.bf16.msra.mxu0 0
        %1653 = vmatprep.subr.bf16.mxu0 0
        %1654 = vmatpush1.bf16.msra.mxu0 %v1637
        %1655 = vmatprep.subr.bf16.mxu0 0
        %1656 = vmatpush2.bf16.msra.mxu0 0
        %1657 = vmatprep.subr.bf16.mxu0 0
        %1658 = vmatpush2.bf16.msra.mxu0 0
        %1659 = vmatprep.subr.bf16.mxu0 0
        %1660 = vmatpush2.bf16.msra.mxu0 0
        %1661 = vmatprep.subr.bf16.mxu0 0
        %1662 = vmatpush2.bf16.msra.mxu0 0
        %1663 = vmatprep.subr.bf16.mxu0 0
        %1664 = vmatpush2.bf16.msra.mxu0 0
        %1665 = vmatprep.subr.bf16.mxu0 0
        %1666 = vmatpush2.bf16.msra.mxu0 0
        %1667 = vmatprep.subr.bf16.mxu0 0
        %1668 = vmatpush2.bf16.msra.mxu0 0
        %1669 = vmatprep.subr.bf16.mxu0 0
        %1670 = vmatpush2.bf16.msra.mxu0 0
        %1671 = vmatprep.mubr.bf16.mxu0 0
        %1672 = vmatmul.mubr.bf16.gmra.mxu0 %v1633
        %v1673 = vpop.f32.mrf.mxu0
        %v1674 = vadd.f32 0.0, %v1673
        %v1675 = vpop.f32.mrf.mxu0
        %v1676 = vpop.f32.mrf.mxu0
        %v1677 = vadd.f32 0.0, %v1676
        %v1678 = vpop.f32.mrf.mxu0
        %1679 = vdwg.mxu0
        %v1680 = vadd.f32 %v1621, %v1674
        %v1681 = vadd.f32 %v1624, %v1677
        %v1682 = vld [vmem:[#allocation15] sm:$0x1]
        %v1684 = vlaneseq
        %v1685 = vshrl.u32 %v1684, 7
        %v1686 = vsub.s32 0, %v1685
        %v1687 = vrot.slane %v1682, %v1686
        %v1689 = vadd.f32 %v1680, %v1687
        %v1690 = vadd.f32 %v1681, %v1687
        %v1691 = vmax.f32 %v1689, 0.0
        %v1692 = vmax.f32 %v1690, 0.0
        %v1693 = vld [vmem:[#allocation5] sm:$0xff]
        %v1694 = vld [vmem:[#allocation5 + $0x8] sm:$0xff]
        %v1695 = vld [vmem:[#allocation5 + $0x10] sm:$0xff]
        %v1696 = vld [vmem:[#allocation5 + $0x18] sm:$0xff]
        %v1697 = vld [vmem:[#allocation5 + $0x20] sm:$0xff]
        %v1698 = vld [vmem:[#allocation5 + $0x28] sm:$0xff]
        %v1699 = vld [vmem:[#allocation5 + $0x30] sm:$0xff]
        %v1700 = vld [vmem:[#allocation5 + $0x38] sm:$0xff]
        %v1701 = vld [vmem:[#allocation5 + $0x40] sm:$0xff]
        %v1702 = vld [vmem:[#allocation5 + $0x48] sm:$0xff]
        %v1703 = vld [vmem:[#allocation5 + $0x50] sm:$0xff]
        %v1704 = vld [vmem:[#allocation5 + $0x58] sm:$0xff]
        %v1705 = vld [vmem:[#allocation5 + $0x60] sm:$0xff]
        %v1706 = vld [vmem:[#allocation5 + $0x68] sm:$0xff]
        %v1707 = vld [vmem:[#allocation5 + $0x70] sm:$0xff]
        %v1708 = vld [vmem:[#allocation5 + $0x78] sm:$0xff]
        %v1709 = vpack.c.bf16 %v1692, %v1691
        %1710 = vxpose.xlu0.c.b16.start [1/8] %v1416, 128
        %1711 = vxpose.xlu0.c.b16.cont [2/8] 0, 128
        %1712 = vxpose.xlu0.c.b16.cont [3/8] 0, 128
        %1713 = vxpose.xlu0.c.b16.cont [4/8] 0, 128
        %1714 = vxpose.xlu0.c.b16.cont [5/8] 0, 128
        %1715 = vxpose.xlu0.c.b16.cont [6/8] 0, 128
        %1716 = vxpose.xlu0.c.b16.cont [7/8] 0, 128
        %1717 = vxpose.xlu0.c.b16.end [8/8] 0, 128
        %v1718 = vpop.trf.xlu0
        %v1719 = vpop.trf.xlu0
        %v1720 = vpop.trf.xlu0
        %v1721 = vpop.trf.xlu0
        %v1722 = vpop.trf.xlu0
        %v1723 = vpop.trf.xlu0
        %v1724 = vpop.trf.xlu0
        %v1725 = vpop.trf.xlu0
        %vm1726 = vcmask 130048
        %v1728 = vsel %vm1726, %v1718, 0
        %v1731 = vsel %vm1726, %v1719, 0
        %v1734 = vsel %vm1726, %v1720, 0
        %v1737 = vsel %vm1726, %v1721, 0
        %v1740 = vsel %vm1726, %v1722, 0
        %v1743 = vsel %vm1726, %v1723, 0
        %v1746 = vsel %vm1726, %v1724, 0
        %v1749 = vsel %vm1726, %v1725, 0
        %1751 = vmatprep.subr.bf16.mxu0 0
        %1752 = vmatpush1.bf16.msra.mxu0 0
        %1753 = vmatprep.subr.bf16.mxu0 0
        %1754 = vmatpush1.bf16.msra.mxu0 0
        %1755 = vmatprep.subr.bf16.mxu0 0
        %1756 = vmatpush1.bf16.msra.mxu0 0
        %1757 = vmatprep.subr.bf16.mxu0 0
        %1758 = vmatpush1.bf16.msra.mxu0 0
        %1759 = vmatprep.subr.bf16.mxu0 0
        %1760 = vmatpush1.bf16.msra.mxu0 0
        %1761 = vmatprep.subr.bf16.mxu0 0
        %1762 = vmatpush1.bf16.msra.mxu0 0
        %1763 = vmatprep.subr.bf16.mxu0 0
        %1764 = vmatpush1.bf16.msra.mxu0 0
        %1765 = vmatprep.subr.bf16.mxu0 0
        %1766 = vmatpush1.bf16.msra.mxu0 %v1709
        %1767 = vmatprep.subr.bf16.mxu0 0
        %1768 = vmatpush2.bf16.msra.mxu0 0
        %1769 = vmatprep.subr.bf16.mxu0 0
        %1770 = vmatpush2.bf16.msra.mxu0 0
        %1771 = vmatprep.subr.bf16.mxu0 0
        %1772 = vmatpush2.bf16.msra.mxu0 0
        %1773 = vmatprep.subr.bf16.mxu0 0
        %1774 = vmatpush2.bf16.msra.mxu0 0
        %1775 = vmatprep.subr.bf16.mxu0 0
        %1776 = vmatpush2.bf16.msra.mxu0 0
        %1777 = vmatprep.subr.bf16.mxu0 0
        %1778 = vmatpush2.bf16.msra.mxu0 0
        %1779 = vmatprep.subr.bf16.mxu0 0
        %1780 = vmatpush2.bf16.msra.mxu0 0
        %1781 = vmatprep.subr.bf16.mxu0 0
        %1782 = vmatpush2.bf16.msra.mxu0 0
        %1783 = vmatprep.mubr.bf16.mxu0 0
        %1784 = vmatmul.mubr.bf16.gmra.mxu0 %v1728
        %v1785 = vpop.f32.mrf.mxu0
        %v1786 = vadd.f32 0.0, %v1785
        %v1787 = vpop.f32.mrf.mxu0
        %v1788 = vpop.f32.mrf.mxu0
        %v1789 = vadd.f32 0.0, %v1788
        %v1790 = vpop.f32.mrf.mxu0
        %1791 = vmatprep.mubr.bf16.mxu0 0
        %1792 = vmatmul.mubr.bf16.gmra.mxu0 %v1731
        %v1793 = vpop.f32.mrf.mxu0
        %v1794 = vadd.f32 0.0, %v1793
        %v1795 = vpop.f32.mrf.mxu0
        %v1796 = vpop.f32.mrf.mxu0
        %v1797 = vadd.f32 0.0, %v1796
        %v1798 = vpop.f32.mrf.mxu0
        %1799 = vmatprep.mubr.bf16.mxu0 0
        %1800 = vmatmul.mubr.bf16.gmra.mxu0 %v1734
        %v1801 = vpop.f32.mrf.mxu0
        %v1802 = vadd.f32 0.0, %v1801
        %v1803 = vpop.f32.mrf.mxu0
        %v1804 = vpop.f32.mrf.mxu0
        %v1805 = vadd.f32 0.0, %v1804
        %v1806 = vpop.f32.mrf.mxu0
        %1807 = vmatprep.mubr.bf16.mxu0 0
        %1808 = vmatmul.mubr.bf16.gmra.mxu0 %v1737
        %v1809 = vpop.f32.mrf.mxu0
        %v1810 = vadd.f32 0.0, %v1809
        %v1811 = vpop.f32.mrf.mxu0
        %v1812 = vpop.f32.mrf.mxu0
        %v1813 = vadd.f32 0.0, %v1812
        %v1814 = vpop.f32.mrf.mxu0
        %1815 = vmatprep.mubr.bf16.mxu0 0
        %1816 = vmatmul.mubr.bf16.gmra.mxu0 %v1740
        %v1817 = vpop.f32.mrf.mxu0
        %v1818 = vadd.f32 0.0, %v1817
        %v1819 = vpop.f32.mrf.mxu0
        %v1820 = vpop.f32.mrf.mxu0
        %v1821 = vadd.f32 0.0, %v1820
        %v1822 = vpop.f32.mrf.mxu0
        %1823 = vmatprep.mubr.bf16.mxu0 0
        %1824 = vmatmul.mubr.bf16.gmra.mxu0 %v1743
        %v1825 = vpop.f32.mrf.mxu0
        %v1826 = vadd.f32 0.0, %v1825
        %v1827 = vpop.f32.mrf.mxu0
        %v1828 = vpop.f32.mrf.mxu0
        %v1829 = vadd.f32 0.0, %v1828
        %v1830 = vpop.f32.mrf.mxu0
        %1831 = vmatprep.mubr.bf16.mxu0 0
        %1832 = vmatmul.mubr.bf16.gmra.mxu0 %v1746
        %v1833 = vpop.f32.mrf.mxu0
        %v1834 = vadd.f32 0.0, %v1833
        %v1835 = vpop.f32.mrf.mxu0
        %v1836 = vpop.f32.mrf.mxu0
        %v1837 = vadd.f32 0.0, %v1836
        %v1838 = vpop.f32.mrf.mxu0
        %1839 = vmatprep.mubr.bf16.mxu0 0
        %1840 = vmatmul.mubr.bf16.gmra.mxu0 %v1749
        %v1841 = vpop.f32.mrf.mxu0
        %v1842 = vadd.f32 0.0, %v1841
        %v1843 = vpop.f32.mrf.mxu0
        %v1844 = vpop.f32.mrf.mxu0
        %v1845 = vadd.f32 0.0, %v1844
        %v1846 = vpop.f32.mrf.mxu0
        %1847 = vdwg.mxu0
        %v1848 = vadd.f32 %v1693, %v1786
        %v1849 = vadd.f32 %v1694, %v1789
        %v1850 = vadd.f32 %v1695, %v1794
        %v1851 = vadd.f32 %v1696, %v1797
        %v1852 = vadd.f32 %v1697, %v1802
        %v1853 = vadd.f32 %v1698, %v1805
        %v1854 = vadd.f32 %v1699, %v1810
        %v1855 = vadd.f32 %v1700, %v1813
        %v1856 = vadd.f32 %v1701, %v1818
        %v1857 = vadd.f32 %v1702, %v1821
        %v1858 = vadd.f32 %v1703, %v1826
        %v1859 = vadd.f32 %v1704, %v1829
        %v1860 = vadd.f32 %v1705, %v1834
        %v1861 = vadd.f32 %v1706, %v1837
        %v1862 = vadd.f32 %v1707, %v1842
        %v1863 = vadd.f32 %v1708, %v1845
        %1864 = vst [vmem:[#allocation5] sm:$0xff] %v1848
        %1865 = vst [vmem:[#allocation5 + $0x8] sm:$0xff] %v1849
        %1866 = vst [vmem:[#allocation5 + $0x10] sm:$0xff] %v1850
        %1867 = vst [vmem:[#allocation5 + $0x18] sm:$0xff] %v1851
        %1868 = vst [vmem:[#allocation5 + $0x20] sm:$0xff] %v1852
        %1869 = vst [vmem:[#allocation5 + $0x28] sm:$0xff] %v1853
        %1870 = vst [vmem:[#allocation5 + $0x30] sm:$0xff] %v1854
        %1871 = vst [vmem:[#allocation5 + $0x38] sm:$0xff] %v1855
        %1872 = vst [vmem:[#allocation5 + $0x40] sm:$0xff] %v1856
        %1873 = vst [vmem:[#allocation5 + $0x48] sm:$0xff] %v1857
        %1874 = vst [vmem:[#allocation5 + $0x50] sm:$0xff] %v1858
        %1875 = vst [vmem:[#allocation5 + $0x58] sm:$0xff] %v1859
        %1876 = vst [vmem:[#allocation5 + $0x60] sm:$0xff] %v1860
        %1877 = vst [vmem:[#allocation5 + $0x68] sm:$0xff] %v1861
        %1878 = vst [vmem:[#allocation5 + $0x70] sm:$0xff] %v1862
        %1879 = vst [vmem:[#allocation5 + $0x78] sm:$0xff] %v1863
        %p1880 = scmp.eq.s32.totalorder %s34, 1
        // Predicated region
        $region125: #{tpu_custom_call.1} parent=91 // pred_check
          %p1881 = pneg %p1880
        $region126: #{tpu_custom_call.1} parent=91 // pred_check_branch
          %1883 = sbr.rel (%p1881) target = $region128
        $region127: #{tpu_custom_call.1} parent=91 // pred_region
          %v1884 = vld [vmem:[#allocation5] sm:$0xff]
          %v1885 = vld [vmem:[#allocation5 + $0x8] sm:$0xff]
          %v1886 = vld [vmem:[#allocation5 + $0x10] sm:$0xff]
          %v1887 = vld [vmem:[#allocation5 + $0x18] sm:$0xff]
          %v1888 = vld [vmem:[#allocation5 + $0x20] sm:$0xff]
          %v1889 = vld [vmem:[#allocation5 + $0x28] sm:$0xff]
          %v1890 = vld [vmem:[#allocation5 + $0x30] sm:$0xff]
          %v1891 = vld [vmem:[#allocation5 + $0x38] sm:$0xff]
          %v1892 = vld [vmem:[#allocation5 + $0x40] sm:$0xff]
          %v1893 = vld [vmem:[#allocation5 + $0x48] sm:$0xff]
          %v1894 = vld [vmem:[#allocation5 + $0x50] sm:$0xff]
          %v1895 = vld [vmem:[#allocation5 + $0x58] sm:$0xff]
          %v1896 = vld [vmem:[#allocation5 + $0x60] sm:$0xff]
          %v1897 = vld [vmem:[#allocation5 + $0x68] sm:$0xff]
          %v1898 = vld [vmem:[#allocation5 + $0x70] sm:$0xff]
          %v1899 = vld [vmem:[#allocation5 + $0x78] sm:$0xff]
          %v1900 = vmax.f32 %v1884, 1.0
          %v1901 = vmax.f32 %v1885, 1.0
          %v1902 = vmax.f32 %v1886, 1.0
          %v1903 = vmax.f32 %v1887, 1.0
          %v1904 = vmax.f32 %v1888, 1.0
          %v1905 = vmax.f32 %v1889, 1.0
          %v1906 = vmax.f32 %v1890, 1.0
          %v1907 = vmax.f32 %v1891, 1.0
          %v1908 = vmax.f32 %v1892, 1.0
          %v1909 = vmax.f32 %v1893, 1.0
          %v1910 = vmax.f32 %v1894, 1.0
          %v1911 = vmax.f32 %v1895, 1.0
          %v1912 = vmax.f32 %v1896, 1.0
          %v1913 = vmax.f32 %v1897, 1.0
          %v1914 = vmax.f32 %v1898, 1.0
          %v1915 = vmax.f32 %v1899, 1.0
          %v1916 = vrcp.pop %v1900
          %v1917 = vrcp.pop %v1901
          %v1918 = vrcp.pop %v1902
          %v1919 = vrcp.pop %v1903
          %v1920 = vrcp.pop %v1904
          %v1921 = vrcp.pop %v1905
          %v1922 = vrcp.pop %v1906
          %v1923 = vrcp.pop %v1907
          %v1924 = vrcp.pop %v1908
          %v1925 = vrcp.pop %v1909
          %v1926 = vrcp.pop %v1910
          %v1927 = vrcp.pop %v1911
          %v1928 = vrcp.pop %v1912
          %v1929 = vrcp.pop %v1913
          %v1930 = vrcp.pop %v1914
          %v1931 = vrcp.pop %v1915
          %1933 = vset.pattern.permute.xlu0 127
          %1934 = vperm.xlu0 %1933, %v1916
          %v1935 = vpop.permute.xlu0 %1934
          %1938 = vset.pattern.permute.xlu0 127
          %1939 = vperm.xlu0 %1938, %v1917
          %v1940 = vpop.permute.xlu0 %1939
          %1943 = vset.pattern.permute.xlu0 127
          %1944 = vperm.xlu0 %1943, %v1918
          %v1945 = vpop.permute.xlu0 %1944
          %1948 = vset.pattern.permute.xlu0 127
          %1949 = vperm.xlu0 %1948, %v1919
          %v1950 = vpop.permute.xlu0 %1949
          %1953 = vset.pattern.permute.xlu0 127
          %1954 = vperm.xlu0 %1953, %v1920
          %v1955 = vpop.permute.xlu0 %1954
          %1958 = vset.pattern.permute.xlu0 127
          %1959 = vperm.xlu0 %1958, %v1921
          %v1960 = vpop.permute.xlu0 %1959
          %1963 = vset.pattern.permute.xlu0 127
          %1964 = vperm.xlu0 %1963, %v1922
          %v1965 = vpop.permute.xlu0 %1964
          %1968 = vset.pattern.permute.xlu0 127
          %1969 = vperm.xlu0 %1968, %v1923
          %v1970 = vpop.permute.xlu0 %1969
          %1973 = vset.pattern.permute.xlu0 127
          %1974 = vperm.xlu0 %1973, %v1924
          %v1975 = vpop.permute.xlu0 %1974
          %1978 = vset.pattern.permute.xlu0 127
          %1979 = vperm.xlu0 %1978, %v1925
          %v1980 = vpop.permute.xlu0 %1979
          %1983 = vset.pattern.permute.xlu0 127
          %1984 = vperm.xlu0 %1983, %v1926
          %v1985 = vpop.permute.xlu0 %1984
          %1988 = vset.pattern.permute.xlu0 127
          %1989 = vperm.xlu0 %1988, %v1927
          %v1990 = vpop.permute.xlu0 %1989
          %1993 = vset.pattern.permute.xlu0 127
          %1994 = vperm.xlu0 %1993, %v1928
          %v1995 = vpop.permute.xlu0 %1994
          %1998 = vset.pattern.permute.xlu0 127
          %1999 = vperm.xlu0 %1998, %v1929
          %v2000 = vpop.permute.xlu0 %1999
          %2003 = vset.pattern.permute.xlu0 127
          %2004 = vperm.xlu0 %2003, %v1930
          %v2005 = vpop.permute.xlu0 %2004
          %2008 = vset.pattern.permute.xlu0 127
          %2009 = vperm.xlu0 %2008, %v1931
          %v2010 = vpop.permute.xlu0 %2009
          %v2012 = vmul.f32 %v1884, %v1935
          %v2013 = vmul.f32 %v1885, %v1940
          %v2014 = vmul.f32 %v1886, %v1945
          %v2015 = vmul.f32 %v1887, %v1950
          %v2016 = vmul.f32 %v1888, %v1955
          %v2017 = vmul.f32 %v1889, %v1960
          %v2018 = vmul.f32 %v1890, %v1965
          %v2019 = vmul.f32 %v1891, %v1970
          %v2020 = vmul.f32 %v1892, %v1975
          %v2021 = vmul.f32 %v1893, %v1980
          %v2022 = vmul.f32 %v1894, %v1985
          %v2023 = vmul.f32 %v1895, %v1990
          %v2024 = vmul.f32 %v1896, %v1995
          %v2025 = vmul.f32 %v1897, %v2000
          %v2026 = vmul.f32 %v1898, %v2005
          %v2027 = vmul.f32 %v1899, %v2010
          %v2028 = vld [vmem:[#allocation2] sm:$0xff]
          %v2029 = vld [vmem:[#allocation2 + $0x8] sm:$0xff]
          %v2030 = vld [vmem:[#allocation2 + $0x10] sm:$0xff]
          %v2031 = vld [vmem:[#allocation2 + $0x18] sm:$0xff]
          %v2032 = vld [vmem:[#allocation2 + $0x20] sm:$0xff]
          %v2033 = vld [vmem:[#allocation2 + $0x28] sm:$0xff]
          %v2034 = vld [vmem:[#allocation2 + $0x30] sm:$0xff]
          %v2035 = vld [vmem:[#allocation2 + $0x38] sm:$0xff]
          %v2036 = vld [vmem:[#allocation2 + $0x40] sm:$0xff]
          %v2037 = vld [vmem:[#allocation2 + $0x48] sm:$0xff]
          %v2038 = vld [vmem:[#allocation2 + $0x50] sm:$0xff]
          %v2039 = vld [vmem:[#allocation2 + $0x58] sm:$0xff]
          %v2040 = vld [vmem:[#allocation2 + $0x60] sm:$0xff]
          %v2041 = vld [vmem:[#allocation2 + $0x68] sm:$0xff]
          %v2042 = vld [vmem:[#allocation2 + $0x70] sm:$0xff]
          %v2043 = vld [vmem:[#allocation2 + $0x78] sm:$0xff]
          %v2044 = vpack.c.bf16 %v2029, %v2028
          %v2045 = vpack.c.bf16 %v2031, %v2030
          %v2046 = vpack.c.bf16 %v2033, %v2032
          %v2047 = vpack.c.bf16 %v2035, %v2034
          %v2048 = vpack.c.bf16 %v2037, %v2036
          %v2049 = vpack.c.bf16 %v2039, %v2038
          %v2050 = vpack.c.bf16 %v2041, %v2040
          %v2051 = vpack.c.bf16 %v2043, %v2042
          %v2052 = vld [vmem:[%s11] sm:$0xf]
          %v2053 = vld [vmem:[%s11 + $0x4] sm:$0xf]
          %v2054 = vld [vmem:[%s11 + $0x8] sm:$0xf]
          %v2055 = vld [vmem:[%s11 + $0xc] sm:$0xf]
          %v2056 = vld [vmem:[%s11 + $0x10] sm:$0xf]
          %v2057 = vld [vmem:[%s11 + $0x14] sm:$0xf]
          %v2058 = vld [vmem:[%s11 + $0x18] sm:$0xf]
          %v2059 = vld [vmem:[%s11 + $0x1c] sm:$0xf]
          %v2060 = vld [vmem:[%s11 + $0x20] sm:$0xf]
          %v2061 = vld [vmem:[%s11 + $0x24] sm:$0xf]
          %v2062 = vld [vmem:[%s11 + $0x28] sm:$0xf]
          %v2063 = vld [vmem:[%s11 + $0x2c] sm:$0xf]
          %v2064 = vld [vmem:[%s11 + $0x30] sm:$0xf]
          %v2065 = vld [vmem:[%s11 + $0x34] sm:$0xf]
          %v2066 = vld [vmem:[%s11 + $0x38] sm:$0xf]
          %v2067 = vld [vmem:[%s11 + $0x3c] sm:$0xf]
          %v2068 = vpack.c.bf16 %v2013, %v2012
          %v2069 = vpack.c.bf16 %v2015, %v2014
          %v2070 = vpack.c.bf16 %v2017, %v2016
          %v2071 = vpack.c.bf16 %v2019, %v2018
          %v2072 = vpack.c.bf16 %v2021, %v2020
          %v2073 = vpack.c.bf16 %v2023, %v2022
          %v2074 = vpack.c.bf16 %v2025, %v2024
          %v2075 = vpack.c.bf16 %v2027, %v2026
          %v2076 = vld [vmem:[%s12] sm:$0xf]
          %v2077 = vld [vmem:[%s12 + $0x4] sm:$0xf]
          %v2078 = vld [vmem:[%s12 + $0x8] sm:$0xf]
          %v2079 = vld [vmem:[%s12 + $0xc] sm:$0xf]
          %v2080 = vld [vmem:[%s12 + $0x10] sm:$0xf]
          %v2081 = vld [vmem:[%s12 + $0x14] sm:$0xf]
          %v2082 = vld [vmem:[%s12 + $0x18] sm:$0xf]
          %v2083 = vld [vmem:[%s12 + $0x1c] sm:$0xf]
          %v2084 = vld [vmem:[%s12 + $0x20] sm:$0xf]
          %v2085 = vld [vmem:[%s12 + $0x24] sm:$0xf]
          %v2086 = vld [vmem:[%s12 + $0x28] sm:$0xf]
          %v2087 = vld [vmem:[%s12 + $0x2c] sm:$0xf]
          %v2088 = vld [vmem:[%s12 + $0x30] sm:$0xf]
          %v2089 = vld [vmem:[%s12 + $0x34] sm:$0xf]
          %v2090 = vld [vmem:[%s12 + $0x38] sm:$0xf]
          %v2091 = vld [vmem:[%s12 + $0x3c] sm:$0xf]
          %v2108 = vunpack.c.l.b16 %v2076
          %v2109 = vunpack.c.l.b16 %v2077
          %v2110 = vunpack.c.l.b16 %v2078
          %v2111 = vunpack.c.l.b16 %v2079
          %v2112 = vunpack.c.l.b16 %v2080
          %v2113 = vunpack.c.l.b16 %v2081
          %v2114 = vunpack.c.l.b16 %v2082
          %v2115 = vunpack.c.l.b16 %v2083
          %v2116 = vunpack.c.l.b16 %v2084
          %v2117 = vunpack.c.l.b16 %v2085
          %v2118 = vunpack.c.l.b16 %v2086
          %v2119 = vunpack.c.l.b16 %v2087
          %v2120 = vunpack.c.l.b16 %v2088
          %v2121 = vunpack.c.l.b16 %v2089
          %v2122 = vunpack.c.l.b16 %v2090
          %v2123 = vunpack.c.l.b16 %v2091
          %v2124 = vpack.c.b16 %v2109, %v2108
          %v2125 = vpack.c.b16 %v2111, %v2110
          %v2126 = vpack.c.b16 %v2113, %v2112
          %v2127 = vpack.c.b16 %v2115, %v2114
          %v2128 = vpack.c.b16 %v2117, %v2116
          %v2129 = vpack.c.b16 %v2119, %v2118
          %v2130 = vpack.c.b16 %v2121, %v2120
          %v2131 = vpack.c.b16 %v2123, %v2122
          %2140 = vmatprep.subr.bf16.mxu0 0
          %2141 = vmatpush1.bf16.msra.mxu0 %v2131
          %2142 = vmatprep.subr.bf16.mxu0 0
          %2143 = vmatpush1.bf16.msra.mxu0 %v2130
          %2144 = vmatprep.subr.bf16.mxu0 0
          %2145 = vmatpush1.bf16.msra.mxu0 %v2129
          %2146 = vmatprep.subr.bf16.mxu0 0
          %2147 = vmatpush1.bf16.msra.mxu0 %v2128
          %2148 = vmatprep.subr.bf16.mxu0 0
          %2149 = vmatpush1.bf16.msra.mxu0 %v2127
          %2150 = vmatprep.subr.bf16.mxu0 0
          %2151 = vmatpush1.bf16.msra.mxu0 %v2126
          %2152 = vmatprep.subr.bf16.mxu0 0
          %2153 = vmatpush1.bf16.msra.mxu0 %v2125
          %2154 = vmatprep.subr.bf16.mxu0 0
          %2155 = vmatpush1.bf16.msra.mxu0 %v2124
          %2156 = vmatprep.subr.bf16.mxu0 0
          %2157 = vmatpush2.bf16.msra.mxu0 0
          %2158 = vmatprep.subr.bf16.mxu0 0
          %2159 = vmatpush2.bf16.msra.mxu0 0
          %2160 = vmatprep.subr.bf16.mxu0 0
          %2161 = vmatpush2.bf16.msra.mxu0 0
          %2162 = vmatprep.subr.bf16.mxu0 0
          %2163 = vmatpush2.bf16.msra.mxu0 0
          %2164 = vmatprep.subr.bf16.mxu0 0
          %2165 = vmatpush2.bf16.msra.mxu0 0
          %2166 = vmatprep.subr.bf16.mxu0 0
          %2167 = vmatpush2.bf16.msra.mxu0 0
          %2168 = vmatprep.subr.bf16.mxu0 0
          %2169 = vmatpush2.bf16.msra.mxu0 0
          %2170 = vmatprep.subr.bf16.mxu0 0
          %2171 = vmatpush2.bf16.msra.mxu0 0
          %2172 = vmatprep.mubr.bf16.mxu0 0
          %2173 = vmatmul.mubr.bf16.gmra.mxu0 %v2068
          %v2174 = vpop.f32.mrf.mxu0
          %v2175 = vadd.f32 0.0, %v2174
          %v2176 = vpop.f32.mrf.mxu0
          %v2177 = vpop.f32.mrf.mxu0
          %v2178 = vadd.f32 0.0, %v2177
          %v2179 = vpop.f32.mrf.mxu0
          %2180 = vmatprep.mubr.bf16.mxu0 0
          %2181 = vmatmul.mubr.bf16.gmra.mxu0 %v2069
          %v2182 = vpop.f32.mrf.mxu0
          %v2183 = vadd.f32 0.0, %v2182
          %v2184 = vpop.f32.mrf.mxu0
          %v2185 = vpop.f32.mrf.mxu0
          %v2186 = vadd.f32 0.0, %v2185
          %v2187 = vpop.f32.mrf.mxu0
          %2188 = vmatprep.mubr.bf16.mxu0 0
          %2189 = vmatmul.mubr.bf16.gmra.mxu0 %v2070
          %v2190 = vpop.f32.mrf.mxu0
          %v2191 = vadd.f32 0.0, %v2190
          %v2192 = vpop.f32.mrf.mxu0
          %v2193 = vpop.f32.mrf.mxu0
          %v2194 = vadd.f32 0.0, %v2193
          %v2195 = vpop.f32.mrf.mxu0
          %2196 = vmatprep.mubr.bf16.mxu0 0
          %2197 = vmatmul.mubr.bf16.gmra.mxu0 %v2071
          %v2198 = vpop.f32.mrf.mxu0
          %v2199 = vadd.f32 0.0, %v2198
          %v2200 = vpop.f32.mrf.mxu0
          %v2201 = vpop.f32.mrf.mxu0
          %v2202 = vadd.f32 0.0, %v2201
          %v2203 = vpop.f32.mrf.mxu0
          %2204 = vmatprep.mubr.bf16.mxu0 0
          %2205 = vmatmul.mubr.bf16.gmra.mxu0 %v2072
          %v2206 = vpop.f32.mrf.mxu0
          %v2207 = vadd.f32 0.0, %v2206
          %v2208 = vpop.f32.mrf.mxu0
          %v2209 = vpop.f32.mrf.mxu0
          %v2210 = vadd.f32 0.0, %v2209
          %v2211 = vpop.f32.mrf.mxu0
          %2212 = vmatprep.mubr.bf16.mxu0 0
          %2213 = vmatmul.mubr.bf16.gmra.mxu0 %v2073
          %v2214 = vpop.f32.mrf.mxu0
          %v2215 = vadd.f32 0.0, %v2214
          %v2216 = vpop.f32.mrf.mxu0
          %v2217 = vpop.f32.mrf.mxu0
          %v2218 = vadd.f32 0.0, %v2217
          %v2219 = vpop.f32.mrf.mxu0
          %2220 = vmatprep.mubr.bf16.mxu0 0
          %2221 = vmatmul.mubr.bf16.gmra.mxu0 %v2074
          %v2222 = vpop.f32.mrf.mxu0
          %v2223 = vadd.f32 0.0, %v2222
          %v2224 = vpop.f32.mrf.mxu0
          %v2225 = vpop.f32.mrf.mxu0
          %v2226 = vadd.f32 0.0, %v2225
          %v2227 = vpop.f32.mrf.mxu0
          %2228 = vmatprep.mubr.bf16.mxu0 0
          %2229 = vmatmul.mubr.bf16.gmra.mxu0 %v2075
          %v2230 = vpop.f32.mrf.mxu0
          %v2231 = vadd.f32 0.0, %v2230
          %v2232 = vpop.f32.mrf.mxu0
          %v2233 = vpop.f32.mrf.mxu0
          %v2234 = vadd.f32 0.0, %v2233
          %v2235 = vpop.f32.mrf.mxu0
          %2236 = vdwg.mxu0
          %v2253 = vunpack.c.l.b16 %v2052
          %v2254 = vunpack.c.l.b16 %v2053
          %v2255 = vunpack.c.l.b16 %v2054
          %v2256 = vunpack.c.l.b16 %v2055
          %v2257 = vunpack.c.l.b16 %v2056
          %v2258 = vunpack.c.l.b16 %v2057
          %v2259 = vunpack.c.l.b16 %v2058
          %v2260 = vunpack.c.l.b16 %v2059
          %v2261 = vunpack.c.l.b16 %v2060
          %v2262 = vunpack.c.l.b16 %v2061
          %v2263 = vunpack.c.l.b16 %v2062
          %v2264 = vunpack.c.l.b16 %v2063
          %v2265 = vunpack.c.l.b16 %v2064
          %v2266 = vunpack.c.l.b16 %v2065
          %v2267 = vunpack.c.l.b16 %v2066
          %v2268 = vunpack.c.l.b16 %v2067
          %v2269 = vpack.c.b16 %v2254, %v2253
          %v2270 = vpack.c.b16 %v2256, %v2255
          %v2271 = vpack.c.b16 %v2258, %v2257
          %v2272 = vpack.c.b16 %v2260, %v2259
          %v2273 = vpack.c.b16 %v2262, %v2261
          %v2274 = vpack.c.b16 %v2264, %v2263
          %v2275 = vpack.c.b16 %v2266, %v2265
          %v2276 = vpack.c.b16 %v2268, %v2267
          %2285 = vmatprep.subr.bf16.mxu0 0
          %2286 = vmatpush1.bf16.msra.mxu0 %v2276
          %2287 = vmatprep.subr.bf16.mxu0 0
          %2288 = vmatpush1.bf16.msra.mxu0 %v2275
          %2289 = vmatprep.subr.bf16.mxu0 0
          %2290 = vmatpush1.bf16.msra.mxu0 %v2274
          %2291 = vmatprep.subr.bf16.mxu0 0
          %2292 = vmatpush1.bf16.msra.mxu0 %v2273
          %2293 = vmatprep.subr.bf16.mxu0 0
          %2294 = vmatpush1.bf16.msra.mxu0 %v2272
          %2295 = vmatprep.subr.bf16.mxu0 0
          %2296 = vmatpush1.bf16.msra.mxu0 %v2271
          %2297 = vmatprep.subr.bf16.mxu0 0
          %2298 = vmatpush1.bf16.msra.mxu0 %v2270
          %2299 = vmatprep.subr.bf16.mxu0 0
          %2300 = vmatpush1.bf16.msra.mxu0 %v2269
          %2301 = vmatprep.subr.bf16.mxu0 0
          %2302 = vmatpush2.bf16.msra.mxu0 0
          %2303 = vmatprep.subr.bf16.mxu0 0
          %2304 = vmatpush2.bf16.msra.mxu0 0
          %2305 = vmatprep.subr.bf16.mxu0 0
          %2306 = vmatpush2.bf16.msra.mxu0 0
          %2307 = vmatprep.subr.bf16.mxu0 0
          %2308 = vmatpush2.bf16.msra.mxu0 0
          %2309 = vmatprep.subr.bf16.mxu0 0
          %2310 = vmatpush2.bf16.msra.mxu0 0
          %2311 = vmatprep.subr.bf16.mxu0 0
          %2312 = vmatpush2.bf16.msra.mxu0 0
          %2313 = vmatprep.subr.bf16.mxu0 0
          %2314 = vmatpush2.bf16.msra.mxu0 0
          %2315 = vmatprep.subr.bf16.mxu0 0
          %2316 = vmatpush2.bf16.msra.mxu0 0
          %2317 = vmatprep.mubr.bf16.mxu0 0
          %2318 = vmatmul.mubr.bf16.gmra.mxu0 %v2044
          %v2319 = vpop.f32.mrf.mxu0
          %v2320 = vadd.f32 %v2175, %v2319
          %v2321 = vpop.f32.mrf.mxu0
          %v2322 = vpop.f32.mrf.mxu0
          %v2323 = vadd.f32 %v2178, %v2322
          %v2324 = vpop.f32.mrf.mxu0
          %2325 = vmatprep.mubr.bf16.mxu0 0
          %2326 = vmatmul.mubr.bf16.gmra.mxu0 %v2045
          %v2327 = vpop.f32.mrf.mxu0
          %v2328 = vadd.f32 %v2183, %v2327
          %v2329 = vpop.f32.mrf.mxu0
          %v2330 = vpop.f32.mrf.mxu0
          %v2331 = vadd.f32 %v2186, %v2330
          %v2332 = vpop.f32.mrf.mxu0
          %2333 = vmatprep.mubr.bf16.mxu0 0
          %2334 = vmatmul.mubr.bf16.gmra.mxu0 %v2046
          %v2335 = vpop.f32.mrf.mxu0
          %v2336 = vadd.f32 %v2191, %v2335
          %v2337 = vpop.f32.mrf.mxu0
          %v2338 = vpop.f32.mrf.mxu0
          %v2339 = vadd.f32 %v2194, %v2338
          %v2340 = vpop.f32.mrf.mxu0
          %2341 = vmatprep.mubr.bf16.mxu0 0
          %2342 = vmatmul.mubr.bf16.gmra.mxu0 %v2047
          %v2343 = vpop.f32.mrf.mxu0
          %v2344 = vadd.f32 %v2199, %v2343
          %v2345 = vpop.f32.mrf.mxu0
          %v2346 = vpop.f32.mrf.mxu0
          %v2347 = vadd.f32 %v2202, %v2346
          %v2348 = vpop.f32.mrf.mxu0
          %2349 = vmatprep.mubr.bf16.mxu0 0
          %2350 = vmatmul.mubr.bf16.gmra.mxu0 %v2048
          %v2351 = vpop.f32.mrf.mxu0
          %v2352 = vadd.f32 %v2207, %v2351
          %v2353 = vpop.f32.mrf.mxu0
          %v2354 = vpop.f32.mrf.mxu0
          %v2355 = vadd.f32 %v2210, %v2354
          %v2356 = vpop.f32.mrf.mxu0
          %2357 = vmatprep.mubr.bf16.mxu0 0
          %2358 = vmatmul.mubr.bf16.gmra.mxu0 %v2049
          %v2359 = vpop.f32.mrf.mxu0
          %v2360 = vadd.f32 %v2215, %v2359
          %v2361 = vpop.f32.mrf.mxu0
          %v2362 = vpop.f32.mrf.mxu0
          %v2363 = vadd.f32 %v2218, %v2362
          %v2364 = vpop.f32.mrf.mxu0
          %2365 = vmatprep.mubr.bf16.mxu0 0
          %2366 = vmatmul.mubr.bf16.gmra.mxu0 %v2050
          %v2367 = vpop.f32.mrf.mxu0
          %v2368 = vadd.f32 %v2223, %v2367
          %v2369 = vpop.f32.mrf.mxu0
          %v2370 = vpop.f32.mrf.mxu0
          %v2371 = vadd.f32 %v2226, %v2370
          %v2372 = vpop.f32.mrf.mxu0
          %2373 = vmatprep.mubr.bf16.mxu0 0
          %2374 = vmatmul.mubr.bf16.gmra.mxu0 %v2051
          %v2375 = vpop.f32.mrf.mxu0
          %v2376 = vadd.f32 %v2231, %v2375
          %v2377 = vpop.f32.mrf.mxu0
          %v2378 = vpop.f32.mrf.mxu0
          %v2379 = vadd.f32 %v2234, %v2378
          %v2380 = vpop.f32.mrf.mxu0
          %2381 = vdwg.mxu0
          %v2382 = vld [vmem:[%s13] sm:$0x1]
          %v2384 = vlaneseq
          %v2385 = vshrl.u32 %v2384, 7
          %v2386 = vsub.s32 0, %v2385
          %v2387 = vrot.slane %v2382, %v2386
          %v2389 = vadd.f32 %v2320, %v2387
          %v2390 = vadd.f32 %v2323, %v2387
          %v2391 = vadd.f32 %v2328, %v2387
          %v2392 = vadd.f32 %v2331, %v2387
          %v2393 = vadd.f32 %v2336, %v2387
          %v2394 = vadd.f32 %v2339, %v2387
          %v2395 = vadd.f32 %v2344, %v2387
          %v2396 = vadd.f32 %v2347, %v2387
          %v2397 = vadd.f32 %v2352, %v2387
          %v2398 = vadd.f32 %v2355, %v2387
          %v2399 = vadd.f32 %v2360, %v2387
          %v2400 = vadd.f32 %v2363, %v2387
          %v2401 = vadd.f32 %v2368, %v2387
          %v2402 = vadd.f32 %v2371, %v2387
          %v2403 = vadd.f32 %v2376, %v2387
          %v2404 = vadd.f32 %v2379, %v2387
          %v2405 = vmax.f32 %v2389, 0.0
          %v2406 = vmax.f32 %v2390, 0.0
          %v2407 = vmax.f32 %v2391, 0.0
          %v2408 = vmax.f32 %v2392, 0.0
          %v2409 = vmax.f32 %v2393, 0.0
          %v2410 = vmax.f32 %v2394, 0.0
          %v2411 = vmax.f32 %v2395, 0.0
          %v2412 = vmax.f32 %v2396, 0.0
          %v2413 = vmax.f32 %v2397, 0.0
          %v2414 = vmax.f32 %v2398, 0.0
          %v2415 = vmax.f32 %v2399, 0.0
          %v2416 = vmax.f32 %v2400, 0.0
          %v2417 = vmax.f32 %v2401, 0.0
          %v2418 = vmax.f32 %v2402, 0.0
          %v2419 = vmax.f32 %v2403, 0.0
          %v2420 = vmax.f32 %v2404, 0.0
          %v2421 = vld [vmem:[#allocation7] sm:$0x1]
          %v2422 = vlaneseq
          %v2423 = vshrl.u32 %v2422, 7
          %v2424 = vlaneseq
          %v2425 = vshrl.u32 %v2424, 7
          %v2426 = vsub.s32 0, %v2425
          %v2427 = vrot.slane %v2421, %v2426
          %vm2428 = vcmp.eq.s32.totalorder %v2427, %v2423
          %v2429 = vsel %vm2428, 1, 0
          %v2430 = vcvt.s32.f32 %v2429
          %v2431 = vpack.c.bf16 %v2430, %v2430
          %v2432 = vpack.c.bf16 %v2406, %v2405
          %v2433 = vpack.c.bf16 %v2408, %v2407
          %v2434 = vpack.c.bf16 %v2410, %v2409
          %v2435 = vpack.c.bf16 %v2412, %v2411
          %v2436 = vpack.c.bf16 %v2414, %v2413
          %v2437 = vpack.c.bf16 %v2416, %v2415
          %v2438 = vpack.c.bf16 %v2418, %v2417
          %v2439 = vpack.c.bf16 %v2420, %v2419
          %2440 = vmatprep.subr.bf16.mxu0 0
          %2441 = vmatpush1.bf16.msra.mxu0 %v2439
          %2442 = vmatprep.subr.bf16.mxu0 0
          %2443 = vmatpush1.bf16.msra.mxu0 %v2438
          %2444 = vmatprep.subr.bf16.mxu0 0
          %2445 = vmatpush1.bf16.msra.mxu0 %v2437
          %2446 = vmatprep.subr.bf16.mxu0 0
          %2447 = vmatpush1.bf16.msra.mxu0 %v2436
          %2448 = vmatprep.subr.bf16.mxu0 0
          %2449 = vmatpush1.bf16.msra.mxu0 %v2435
          %2450 = vmatprep.subr.bf16.mxu0 0
          %2451 = vmatpush1.bf16.msra.mxu0 %v2434
          %2452 = vmatprep.subr.bf16.mxu0 0
          %2453 = vmatpush1.bf16.msra.mxu0 %v2433
          %2454 = vmatprep.subr.bf16.mxu0 0
          %2455 = vmatpush1.bf16.msra.mxu0 %v2432
          %2456 = vmatprep.subr.bf16.mxu0 0
          %2457 = vmatpush2.bf16.msra.mxu0 0
          %2458 = vmatprep.subr.bf16.mxu0 0
          %2459 = vmatpush2.bf16.msra.mxu0 0
          %2460 = vmatprep.subr.bf16.mxu0 0
          %2461 = vmatpush2.bf16.msra.mxu0 0
          %2462 = vmatprep.subr.bf16.mxu0 0
          %2463 = vmatpush2.bf16.msra.mxu0 0
          %2464 = vmatprep.subr.bf16.mxu0 0
          %2465 = vmatpush2.bf16.msra.mxu0 0
          %2466 = vmatprep.subr.bf16.mxu0 0
          %2467 = vmatpush2.bf16.msra.mxu0 0
          %2468 = vmatprep.subr.bf16.mxu0 0
          %2469 = vmatpush2.bf16.msra.mxu0 0
          %2470 = vmatprep.subr.bf16.mxu0 0
          %2471 = vmatpush2.bf16.msra.mxu0 0
          %2472 = vmatprep.mubr.bf16.mxu0 0
          %2473 = vmatmul.mubr.bf16.gmra.mxu0 %v2431
          %v2474 = vpop.f32.mrf.mxu0
          %v2475 = vadd.f32 0.0, %v2474
          %v2476 = vpop.f32.mrf.mxu0
          %v2477 = vpop.f32.mrf.mxu0
          %v2478 = vpop.f32.mrf.mxu0
          %2479 = vdwg.mxu0
          %v2480 = vunpack.c.l.bf16 %v2431
          %vm2481 = vcmask 1041408
          %v2482 = vsel %vm2481, %v2480, 0.0
          %2483 = vadd.xlane.f32.xlu0 %v2482
          %v2484 = vpop.xlane.xlu0 %2483
          %v2485 = vmax.f32 %v2484, 1.0
          %v2486 = vrcp.pop %v2485
          %v2487 = vmul.f32 %v2475, %v2486
          %v2488 = vpack.c.bf16 %v2487, %v2487
          %v2489 = vld [vmem:[#allocation16] sm:$0xf]
          %v2490 = vld [vmem:[#allocation16 + $0x4] sm:$0xf]
          %v2491 = vld [vmem:[#allocation16 + $0x8] sm:$0xf]
          %v2492 = vld [vmem:[#allocation16 + $0xc] sm:$0xf]
          %v2493 = vld [vmem:[#allocation16 + $0x10] sm:$0xf]
          %v2494 = vld [vmem:[#allocation16 + $0x14] sm:$0xf]
          %v2495 = vld [vmem:[#allocation16 + $0x18] sm:$0xf]
          %v2496 = vld [vmem:[#allocation16 + $0x1c] sm:$0xf]
          %v2497 = vld [vmem:[#allocation16 + $0x20] sm:$0xf]
          %v2498 = vld [vmem:[#allocation16 + $0x24] sm:$0xf]
          %v2499 = vld [vmem:[#allocation16 + $0x28] sm:$0xf]
          %v2500 = vld [vmem:[#allocation16 + $0x2c] sm:$0xf]
          %v2501 = vld [vmem:[#allocation16 + $0x30] sm:$0xf]
          %v2502 = vld [vmem:[#allocation16 + $0x34] sm:$0xf]
          %v2503 = vld [vmem:[#allocation16 + $0x38] sm:$0xf]
          %v2504 = vld [vmem:[#allocation16 + $0x3c] sm:$0xf]
          %v2505 = vld [vmem:[%s15] sm:$0x1]
          %v2507 = vlaneseq
          %v2508 = vshrl.u32 %v2507, 7
          %v2509 = vsub.s32 0, %v2508
          %v2510 = vrot.slane %v2505, %v2509
          %v2528 = vunpack.c.l.b16 %v2489
          %v2529 = vunpack.c.l.b16 %v2490
          %v2530 = vunpack.c.l.b16 %v2491
          %v2531 = vunpack.c.l.b16 %v2492
          %v2532 = vunpack.c.l.b16 %v2493
          %v2533 = vunpack.c.l.b16 %v2494
          %v2534 = vunpack.c.l.b16 %v2495
          %v2535 = vunpack.c.l.b16 %v2496
          %v2536 = vunpack.c.l.b16 %v2497
          %v2537 = vunpack.c.l.b16 %v2498
          %v2538 = vunpack.c.l.b16 %v2499
          %v2539 = vunpack.c.l.b16 %v2500
          %v2540 = vunpack.c.l.b16 %v2501
          %v2541 = vunpack.c.l.b16 %v2502
          %v2542 = vunpack.c.l.b16 %v2503
          %v2543 = vunpack.c.l.b16 %v2504
          %v2544 = vpack.c.b16 %v2529, %v2528
          %v2545 = vpack.c.b16 %v2531, %v2530
          %v2546 = vpack.c.b16 %v2533, %v2532
          %v2547 = vpack.c.b16 %v2535, %v2534
          %v2548 = vpack.c.b16 %v2537, %v2536
          %v2549 = vpack.c.b16 %v2539, %v2538
          %v2550 = vpack.c.b16 %v2541, %v2540
          %v2551 = vpack.c.b16 %v2543, %v2542
          %2560 = vmatprep.subr.bf16.mxu0 0
          %2561 = vmatpush1.bf16.msra.mxu0 %v2551
          %2562 = vmatprep.subr.bf16.mxu0 0
          %2563 = vmatpush1.bf16.msra.mxu0 %v2550
          %2564 = vmatprep.subr.bf16.mxu0 0
          %2565 = vmatpush1.bf16.msra.mxu0 %v2549
          %2566 = vmatprep.subr.bf16.mxu0 0
          %2567 = vmatpush1.bf16.msra.mxu0 %v2548
          %2568 = vmatprep.subr.bf16.mxu0 0
          %2569 = vmatpush1.bf16.msra.mxu0 %v2547
          %2570 = vmatprep.subr.bf16.mxu0 0
          %2571 = vmatpush1.bf16.msra.mxu0 %v2546
          %2572 = vmatprep.subr.bf16.mxu0 0
          %2573 = vmatpush1.bf16.msra.mxu0 %v2545
          %2574 = vmatprep.subr.bf16.mxu0 0
          %2575 = vmatpush1.bf16.msra.mxu0 %v2544
          %2576 = vmatprep.subr.bf16.mxu0 0
          %2577 = vmatpush2.bf16.msra.mxu0 0
          %2578 = vmatprep.subr.bf16.mxu0 0
          %2579 = vmatpush2.bf16.msra.mxu0 0
          %2580 = vmatprep.subr.bf16.mxu0 0
          %2581 = vmatpush2.bf16.msra.mxu0 0
          %2582 = vmatprep.subr.bf16.mxu0 0
          %2583 = vmatpush2.bf16.msra.mxu0 0
          %2584 = vmatprep.subr.bf16.mxu0 0
          %2585 = vmatpush2.bf16.msra.mxu0 0
          %2586 = vmatprep.subr.bf16.mxu0 0
          %2587 = vmatpush2.bf16.msra.mxu0 0
          %2588 = vmatprep.subr.bf16.mxu0 0
          %2589 = vmatpush2.bf16.msra.mxu0 0
          %2590 = vmatprep.subr.bf16.mxu0 0
          %2591 = vmatpush2.bf16.msra.mxu0 0
          %2592 = vmatprep.mubr.bf16.mxu0 0
          %2593 = vmatmul.mubr.bf16.gmra.mxu0 %v2488
          %v2594 = vpop.f32.mrf.mxu0
          %v2595 = vadd.f32 %v2510, %v2594
          %v2596 = vpop.f32.mrf.mxu0
          %v2597 = vpop.f32.mrf.mxu0
          %v2598 = vpop.f32.mrf.mxu0
          %2599 = vdwg.mxu0
          %v2600 = vmax.f32 %v2595, 0.0
          %v2601 = vpack.c.bf16 %v2600, %v2600
          %v2602 = vld [vmem:[#allocation18] sm:$0xf]
          %v2603 = vld [vmem:[#allocation18 + $0x4] sm:$0xf]
          %v2604 = vld [vmem:[#allocation18 + $0x8] sm:$0xf]
          %v2605 = vld [vmem:[#allocation18 + $0xc] sm:$0xf]
          %v2606 = vld [vmem:[#allocation18 + $0x10] sm:$0xf]
          %v2607 = vld [vmem:[#allocation18 + $0x14] sm:$0xf]
          %v2608 = vld [vmem:[#allocation18 + $0x18] sm:$0xf]
          %v2609 = vld [vmem:[#allocation18 + $0x1c] sm:$0xf]
          %v2610 = vld [vmem:[#allocation18 + $0x20] sm:$0xf]
          %v2611 = vld [vmem:[#allocation18 + $0x24] sm:$0xf]
          %v2612 = vld [vmem:[#allocation18 + $0x28] sm:$0xf]
          %v2613 = vld [vmem:[#allocation18 + $0x2c] sm:$0xf]
          %v2614 = vld [vmem:[#allocation18 + $0x30] sm:$0xf]
          %v2615 = vld [vmem:[#allocation18 + $0x34] sm:$0xf]
          %v2616 = vld [vmem:[#allocation18 + $0x38] sm:$0xf]
          %v2617 = vld [vmem:[#allocation18 + $0x3c] sm:$0xf]
          %v2618 = vld [vmem:[%s17] sm:$0x1]
          %v2620 = vlaneseq
          %v2621 = vshrl.u32 %v2620, 7
          %v2622 = vsub.s32 0, %v2621
          %v2623 = vrot.slane %v2618, %v2622
          %v2641 = vunpack.c.l.b16 %v2602
          %v2642 = vunpack.c.l.b16 %v2603
          %v2643 = vunpack.c.l.b16 %v2604
          %v2644 = vunpack.c.l.b16 %v2605
          %v2645 = vunpack.c.l.b16 %v2606
          %v2646 = vunpack.c.l.b16 %v2607
          %v2647 = vunpack.c.l.b16 %v2608
          %v2648 = vunpack.c.l.b16 %v2609
          %v2649 = vunpack.c.l.b16 %v2610
          %v2650 = vunpack.c.l.b16 %v2611
          %v2651 = vunpack.c.l.b16 %v2612
          %v2652 = vunpack.c.l.b16 %v2613
          %v2653 = vunpack.c.l.b16 %v2614
          %v2654 = vunpack.c.l.b16 %v2615
          %v2655 = vunpack.c.l.b16 %v2616
          %v2656 = vunpack.c.l.b16 %v2617
          %v2657 = vpack.c.b16 %v2642, %v2641
          %v2658 = vpack.c.b16 %v2644, %v2643
          %v2659 = vpack.c.b16 %v2646, %v2645
          %v2660 = vpack.c.b16 %v2648, %v2647
          %v2661 = vpack.c.b16 %v2650, %v2649
          %v2662 = vpack.c.b16 %v2652, %v2651
          %v2663 = vpack.c.b16 %v2654, %v2653
          %v2664 = vpack.c.b16 %v2656, %v2655
          %2673 = vmatprep.subr.bf16.mxu0 0
          %2674 = vmatpush1.bf16.msra.mxu0 %v2664
          %2675 = vmatprep.subr.bf16.mxu0 0
          %2676 = vmatpush1.bf16.msra.mxu0 %v2663
          %2677 = vmatprep.subr.bf16.mxu0 0
          %2678 = vmatpush1.bf16.msra.mxu0 %v2662
          %2679 = vmatprep.subr.bf16.mxu0 0
          %2680 = vmatpush1.bf16.msra.mxu0 %v2661
          %2681 = vmatprep.subr.bf16.mxu0 0
          %2682 = vmatpush1.bf16.msra.mxu0 %v2660
          %2683 = vmatprep.subr.bf16.mxu0 0
          %2684 = vmatpush1.bf16.msra.mxu0 %v2659
          %2685 = vmatprep.subr.bf16.mxu0 0
          %2686 = vmatpush1.bf16.msra.mxu0 %v2658
          %2687 = vmatprep.subr.bf16.mxu0 0
          %2688 = vmatpush1.bf16.msra.mxu0 %v2657
          %2689 = vmatprep.subr.bf16.mxu0 0
          %2690 = vmatpush2.bf16.msra.mxu0 0
          %2691 = vmatprep.subr.bf16.mxu0 0
          %2692 = vmatpush2.bf16.msra.mxu0 0
          %2693 = vmatprep.subr.bf16.mxu0 0
          %2694 = vmatpush2.bf16.msra.mxu0 0
          %2695 = vmatprep.subr.bf16.mxu0 0
          %2696 = vmatpush2.bf16.msra.mxu0 0
          %2697 = vmatprep.subr.bf16.mxu0 0
          %2698 = vmatpush2.bf16.msra.mxu0 0
          %2699 = vmatprep.subr.bf16.mxu0 0
          %2700 = vmatpush2.bf16.msra.mxu0 0
          %2701 = vmatprep.subr.bf16.mxu0 0
          %2702 = vmatpush2.bf16.msra.mxu0 0
          %2703 = vmatprep.subr.bf16.mxu0 0
          %2704 = vmatpush2.bf16.msra.mxu0 0
          %2705 = vmatprep.mubr.bf16.mxu0 0
          %2706 = vmatmul.mubr.bf16.gmra.mxu0 %v2601
          %v2707 = vpop.f32.mrf.mxu0
          %v2708 = vadd.f32 %v2623, %v2707
          %v2709 = vpop.f32.mrf.mxu0
          %v2710 = vpop.f32.mrf.mxu0
          %v2711 = vpop.f32.mrf.mxu0
          %2712 = vdwg.mxu0
          %2713 = vst [vmem:[#allocation19] sm:$0x3] %v2708
        $region128: #{tpu_custom_call.1} parent=91 // pred_fallthru
          _
        // Predicated region
        $region129: #{tpu_custom_call.1} parent=91 // pred_check
          %p2714 = pneg %p440
        $region130: #{tpu_custom_call.1} parent=91 // pred_check_branch
          %2716 = sbr.rel (%p2714) target = $region132
        $region131: #{tpu_custom_call.1} parent=91 // pred_region
          %s2718 = ssub.s32 32, 32
          %2719 = vsyncadd [#allocation9], %s2718
          %s2721 = sshll.u32 [#allocation19], 4
          %s2722 = int_to_ptr.vmem [resolvable:$true] %s2721
          %2724 = dma.vmem_to_hbm [thread:$0]  %s2722, 32, %s18, [#allocation9]
        $region132: #{tpu_custom_call.1} parent=91 // pred_fallthru
          _
        // Predicated region
        $region133: #{tpu_custom_call.1} parent=91 // pred_check
          %p2725 = pneg %p440
        $region134: #{tpu_custom_call.1} parent=91 // pred_check_branch
          %2727 = sbr.rel (%p2725) target = $region136
        $region135: #{tpu_custom_call.1} parent=91 // pred_region
          %2728 = dma.done [#allocation9], 32
        $region136: #{tpu_custom_call.1} parent=91 // pred_fallthru
          _
      $region92: #{tpu_custom_call.1} parent=5 // pred_fallthru
        _
      %p2729 = scmp.le.s32.totalorder 2, %s29
      // Predicated region
      $region137: #{tpu_custom_call.1} parent=5 // pred_check
        %p2730 = pneg %p2729
      $region138: #{tpu_custom_call.1} parent=5 // pred_check_branch
        %2732 = sbr.rel (%p2730) target = $region140
      $region139: #{tpu_custom_call.1} parent=5 // pred_region
        %s2733 = ssub.s32 %s29, 2
      $region140: #{tpu_custom_call.1} parent=5 // pred_fallthru
        _
    $region6: #{tpu_custom_call.1} parent=1 // loop_footer
      %s33 = sadd.s32 1, %s29
    $region7: #{tpu_custom_call.1} parent=1 // loop_footer_branch
      %28 = sbr.rel target = $region3
    $region8: #{tpu_custom_call.1} parent=1 // loop_exit
      _
    %2734 = vsyncpa [#allocation8], 1
    %s2735 = scalar_lea.sflag [#allocation8], 1
    %2736 = vsyncpa %s2735, 1
    %2737 = vsyncpa [#allocation11], 1
    %2738 = vsyncpa [#allocation14], 1
    %2739 = vsyncpa [#allocation17], 1
    %2740 = vsyncpa [#allocation9], 1
    %s2741 = scalar_lea.sflag [#allocation9], 1
    %2742 = vsyncpa %s2741, 1

</llo_original>
